<compile_context>
chip_gen: v7x
topology: tpu7x:2x2x1
jax: 0.10.0
libtpu: 0.0.40
codegen_flags: <defaults>
</compile_context>

<pallas_src>
import numpy as np

import jax
import jax.numpy as jnp
from jax import lax
from jax.experimental import pallas as pl
from jax.experimental.pallas import tpu as pltpu


# ----------------------------------------------------------------------------
# Fused UpBlock kernel.
# ----------------------------------------------------------------------------
def _build_upblock_call(N, Cin, H, W, Cs, Hs, Ws, F):
    Hc, Wc = 2 * H + 6, 2 * W + 6          # common canvas for all layers
    Pc = Hc * Wc
    OHW = 4 * H * W                        # 2H * 2W

    def conv_taps(xc, w_all, K):
        """Valid conv on the flat canvas: one matmul over KH*KW*Cin taps.

        xc: (cin, Pc) activation canvas, w_all: (F, K*K*cin) with column
        order (kh, kw, cin).  Tap (kh, kw) is a lane shift by kh*Wc + kw.
        """
        cin = xc.shape[0]
        pad = (K - 1) * Wc + (K - 1)
        xp = jnp.concatenate([xc, jnp.zeros((cin, pad), xc.dtype)], axis=1)
        taps = [xp[:, kh * Wc + kw: kh * Wc + kw + Pc]
                for kh in range(K) for kw in range(K)]
        s = jnp.concatenate(taps, axis=0)                  # (K*K*cin, Pc)
        return jnp.dot(w_all, s, preferred_element_type=jnp.float32)

    def kernel(x_ref, s_ref, m_ref, e_ref, wup_ref, wc1_ref, wc2_ref,
               wit_ref, wst_ref, wbx_ref, wbs_ref, b_ref, msk_ref, p_ref,
               o_ref):
        b = b_ref[...]                                     # (F, 6) biases

        # Bilinear 2x upsample + embed at canvas offset (5,5); skip at (4,4).
        xc = jnp.dot(x_ref[0], m_ref[...], preferred_element_type=jnp.float32)
        sc = jnp.dot(s_ref[0], e_ref[...], preferred_element_type=jnp.float32)

        # upsample-conv (3x3, pad=1, no act)
        t = conv_taps(xc, wup_ref[...], 3) + b[:, 0:1]
        # two 3x3 valid convs + ReLU
        t = jnp.maximum(conv_taps(t, wc1_ref[...], 3) + b[:, 1:2], 0.0)
        t = jnp.maximum(conv_taps(t, wc2_ref[...], 3) + b[:, 2:3], 0.0)
        # zero the canvas outside the (2H-4)x(2W-4) valid region so the 5x5
        # "transposed" conv sees exact zero padding.
        t = t * msk_ref[...]
        # 5x5 transposed convs == full-pad convs with pre-flipped kernels.
        xo = conv_taps(t, wit_ref[...], 5) + b[:, 3:4]
        so = conv_taps(sc, wst_ref[...], 5) + b[:, 4:5]

        # 1x1 bottleneck + ReLU, concat replaced by split weights.
        z = (jnp.dot(wbx_ref[...], xo, preferred_element_type=jnp.float32)
             + jnp.dot(wbs_ref[...], so, preferred_element_type=jnp.float32)
             + b[:, 5:6])
        z = jnp.maximum(z, 0.0)
        # Valid-region extraction folded into a 0/1 selection matmul ->
        # lane-dense (F, 2H*2W) store.
        o_ref[...] = jnp.dot(z, p_ref[...],
                             preferred_element_type=jnp.float32)[None]

    const2d = lambda n: (0, 0)
    return pl.pallas_call(
        kernel,
        out_shape=jax.ShapeDtypeStruct((N, F, OHW), jnp.float32),
        grid=(N,),
        in_specs=[
            pl.BlockSpec((1, Cin, H * W), lambda n: (n, 0, 0)),
            pl.BlockSpec((1, Cs, Hs * Ws), lambda n: (n, 0, 0)),
            pl.BlockSpec((H * W, Pc), const2d),      # upsample+embed matrix M
            pl.BlockSpec((Hs * Ws, Pc), const2d),    # skip embed matrix E
            pl.BlockSpec((F, 9 * Cin), const2d),     # W upsample-conv
            pl.BlockSpec((F, 9 * F), const2d),       # W conv1
            pl.BlockSpec((F, 9 * F), const2d),       # W conv2
            pl.BlockSpec((F, 25 * F), const2d),      # W in_trans_conv
            pl.BlockSpec((F, 25 * Cs), const2d),     # W skip_trans_conv
            pl.BlockSpec((F, F), const2d),           # bottleneck W (x half)
            pl.BlockSpec((F, F), const2d),           # bottleneck W (skip half)
            pl.BlockSpec((F, 6), const2d),           # all 6 biases
            pl.BlockSpec((1, Pc), const2d),          # valid-region mask
            pl.BlockSpec((Pc, OHW), const2d),        # output selection P
        ],
        out_specs=pl.BlockSpec((1, F, OHW), lambda n: (n, 0, 0)),
        compiler_params=pltpu.CompilerParams(
            dimension_semantics=("parallel",)),
    )


def up_block_forward(x, skip, prep):
    """x: (N, in_dims, H, W), skip: (N, skip_dims, 2H-4, 2W-4), NCHW."""
    N, Cin, H, W = x.shape
    _, Cs, Hs, Ws = skip.shape
    F = prep["wbx"].shape[0]
    call = _build_upblock_call(N, Cin, H, W, Cs, Hs, Ws, F)
    out = call(
        x.reshape(N, Cin, H * W), skip.reshape(N, Cs, Hs * Ws),
        prep["M"], prep["E"], prep["wup"], prep["wc1"], prep["wc2"],
        prep["wit"], prep["wst"], prep["wbx"], prep["wbs"],
        prep["bias"], prep["mask"], prep["P"])
    return out.reshape(N, F, 2 * H, 2 * W)


# ----------------------------------------------------------------------------
# Parameter / constant preparation (PyTorch layouts -> kernel layouts).
# ----------------------------------------------------------------------------
def _oihw_to_stacked(w):                 # Conv2d (O, I, KH, KW) -> (O, K*K*I)
    O, I, K, _ = w.shape
    return jnp.transpose(w, (0, 2, 3, 1)).reshape(O, K * K * I)


def _tconv_to_stacked(w):                # ConvTranspose2d (I, O, KH, KW)
    w_conv = jnp.transpose(w[:, :, ::-1, ::-1], (1, 0, 2, 3))   # flip -> OIHW
    return _oihw_to_stacked(w_conv)


def _bilinear_matrix(in_size, out_size):
    """PyTorch align_corners=False bilinear interpolation matrix (out, in)."""
    U = np.zeros((out_size, in_size), np.float32)
    for i in range(out_size):
        src = max((i + 0.5) * (in_size / out_size) - 0.5, 0.0)
        lo = int(np.floor(src))
        hi = min(lo + 1, in_size - 1)
        w1 = src - lo
        U[i, lo] += 1.0 - w1
        U[i, hi] += w1
    return U


def prepare_params(raw, x_shape, skip_shape):
    N, Cin, H, W = x_shape
    _, Cs, Hs, Ws = skip_shape
    assert Hs == 2 * H - 4 and Ws == 2 * W - 4, "skip spatial must be 2H-4"
    F = int(raw["up_b"].shape[0])
    Hc, Wc = 2 * H + 6, 2 * W + 6
    Pc = Hc * Wc
    R0 = C0 = 5                            # canvas offset of the upsampled img

    # Upsample + embed matrix: (H*W) -> canvas, zeros outside the 2Hx2W block.
    Uh = _bilinear_matrix(H, 2 * H)
    Uw = _bilinear_matrix(W, 2 * W)
    M4 = np.zeros((H, W, Hc, Wc), np.float32)
    M4[:, :, R0:R0 + 2 * H, C0:C0 + 2 * W] = np.einsum("ia,jb->abij", Uh, Uw)
    M = M4.reshape(H * W, Pc)

    # Skip embed matrix: place the (Hs, Ws) map at canvas offset (4, 4).
    E4 = np.zeros((Hs, Ws, Hc, Wc), np.float32)
    for a in range(Hs):
        for b in range(Ws):
            E4[a, b, 4 + a, 4 + b] = 1.0
    E = E4.reshape(Hs * Ws, Pc)

    # Mask of conv2's valid region (Hs x Ws at (4, 4)).
    mk = np.zeros((Hc, Wc), np.float32)
    mk[4:4 + Hs, 4:4 + Ws] = 1.0
    mask = mk.reshape(1, Pc)

    # Output selection: canvas (r, c) -> output (r, c) for r < 2H, c < 2W.
    P4 = np.zeros((Hc, Wc, 2 * H, 2 * W), np.float32)
    for i in range(2 * H):
        for j in range(2 * W):
            P4[i, j, i, j] = 1.0
    P = P4.reshape(Pc, 4 * H * W)

    return {
        "M": jnp.asarray(M), "E": jnp.asarray(E),
        "mask": jnp.asarray(mask), "P": jnp.asarray(P),
        "wup": _oihw_to_stacked(raw["up_w"]),
        "wc1": _oihw_to_stacked(raw["c1_w"]),
        "wc2": _oihw_to_stacked(raw["c2_w"]),
        "wit": _tconv_to_stacked(raw["it_w"]),
        "wst": _tconv_to_stacked(raw["st_w"]),
        "wbx": raw["bn_w"][:, :F, 0, 0],
        "wbs": raw["bn_w"][:, F:, 0, 0],
        "bias": jnp.stack([raw["up_b"], raw["c1_b"], raw["c2_b"],
                           raw["it_b"], raw["st_b"], raw["bn_b"]], axis=1),
    }


def init_raw_params(key, in_dims, skip_dims, feed_dims):
    """Deterministic parameters in the original PyTorch layouts."""
    ks = jax.random.split(key, 12)
    n = lambda k, shape: 0.1 * jax.random.normal(k, shape, jnp.float32)
    return {
        "up_w": n(ks[0], (feed_dims, in_dims, 3, 3)),   "up_b": n(ks[1], (feed_dims,)),
        "c1_w": n(ks[2], (feed_dims, feed_dims, 3, 3)), "c1_b": n(ks[3], (feed_dims,)),
        "c2_w": n(ks[4], (feed_dims, feed_dims, 3, 3)), "c2_b": n(ks[5], (feed_dims,)),
        "it_w": n(ks[6], (feed_dims, feed_dims, 5, 5)), "it_b": n(ks[7], (feed_dims,)),
        "st_w": n(ks[8], (skip_dims, feed_dims, 5, 5)), "st_b": n(ks[9], (feed_dims,)),
        "bn_w": n(ks[10], (feed_dims, feed_dims * 2, 1, 1)), "bn_b": n(ks[11], (feed_dims,)),
    }


# ----------------------------------------------------------------------------
# Pure-JAX reference (for the in-script correctness check).
# ----------------------------------------------------------------------------
def _upsample_bilinear_2x_ref(x):        # NCHW, align_corners=False
    N, C, H, W = x.shape

    def iw(out, inp):
        i = jnp.arange(out, dtype=jnp.float32)
        src = jnp.maximum((i + 0.5) * (inp / out) - 0.5, 0.0)
        lo = jnp.floor(src).astype(jnp.int32)
        hi = jnp.minimum(lo + 1, inp - 1)
        return lo, hi, src - lo.astype(jnp.float32)

    lo_h, hi_h, wh = iw(2 * H, H)
    lo_w, hi_w, ww = iw(2 * W, W)
    top = jnp.take(x, lo_h, axis=2)
    bot = jnp.take(x, hi_h, axis=2)
    xh = top * (1 - wh)[None, None, :, None] + bot * wh[None, None, :, None]
    left = jnp.take(xh, lo_w, axis=3)
    right = jnp.take(xh, hi_w, axis=3)
    return left * (1 - ww)[None, None, None, :] + right * ww[None, None, None, :]


def ref_forward(x, skip, raw):
    conv = lambda t, w, pad: lax.conv_general_dilated(
        t, w, (1, 1), pad, dimension_numbers=("NCHW", "OIHW", "NCHW"),
        precision=lax.Precision.HIGHEST)
    bias = lambda b: b[None, :, None, None]
    t = _upsample_bilinear_2x_ref(x)
    t = conv(t, raw["up_w"], ((1, 1), (1, 1))) + bias(raw["up_b"])
    t = jax.nn.relu(conv(t, raw["c1_w"], "VALID") + bias(raw["c1_b"]))
    t = jax.nn.relu(conv(t, raw["c2_w"], "VALID") + bias(raw["c2_b"]))
    it_w = jnp.transpose(raw["it_w"][:, :, ::-1, ::-1], (1, 0, 2, 3))
    st_w = jnp.transpose(raw["st_w"][:, :, ::-1, ::-1], (1, 0, 2, 3))
    xo = conv(t, it_w, ((4, 4), (4, 4))) + bias(raw["it_b"])
    so = conv(skip, st_w, ((4, 4), (4, 4))) + bias(raw["st_b"])
    cat = jnp.concatenate([xo, so], axis=1)
    return jax.nn.relu(conv(cat, raw["bn_w"], "VALID") + bias(raw["bn_b"]))


# ----------------------------------------------------------------------------
if __name__ == "__main__":
    N, in_dims, skip_dims, feed_dims = 2, 4, 3, 8
    H = W = 8                               # x: 8x8 -> out 16x16; skip: 12x12

    key = jax.random.PRNGKey(0)
    kx, ks, kp = jax.random.split(key, 3)
    x = jax.random.normal(kx, (N, in_dims, H, W), jnp.float32)
    skip = jax.random.normal(ks, (N, skip_dims, 2 * H - 4, 2 * W - 4),
                             jnp.float32)

    raw = init_raw_params(kp, in_dims, skip_dims, feed_dims)
    prep = prepare_params(raw, x.shape, skip.shape)

    fwd = jax.jit(up_block_forward)
    out = jax.block_until_ready(fwd(x, skip, prep))

    assert out.shape == (N, feed_dims, 2 * H, 2 * W), out.shape
    assert bool(jnp.all(jnp.isfinite(out)))

    # Correctness vs a plain-JAX f32 reference (default MXU precision in the
    # kernel -> loose tolerance; structural bugs would be O(1) off).
    ref = jax.block_until_ready(ref_forward(x, skip, raw))
    assert bool(jnp.allclose(out, ref, rtol=5e-2, atol=5e-2)), (
        float(jnp.max(jnp.abs(out - ref))))

    print("KERNEL_OK")
</pallas_src>

<mosaic_0001>
module attributes {stable_mosaic.version = 11 : i64} {
  func.func @kernel(%arg0: i32, %arg1: memref<1x4x64xf32, #tpu.memory_space<vmem>>, %arg2: memref<1x3x144xf32, #tpu.memory_space<vmem>>, %arg3: memref<64x484xf32, #tpu.memory_space<vmem>>, %arg4: memref<144x484xf32, #tpu.memory_space<vmem>>, %arg5: memref<8x36xf32, #tpu.memory_space<vmem>>, %arg6: memref<8x72xf32, #tpu.memory_space<vmem>>, %arg7: memref<8x72xf32, #tpu.memory_space<vmem>>, %arg8: memref<8x200xf32, #tpu.memory_space<vmem>>, %arg9: memref<8x75xf32, #tpu.memory_space<vmem>>, %arg10: memref<8x8xf32, #tpu.memory_space<vmem>>, %arg11: memref<8x8xf32, #tpu.memory_space<vmem>>, %arg12: memref<8x6xf32, #tpu.memory_space<vmem>>, %arg13: memref<1x484xf32, #tpu.memory_space<vmem>>, %arg14: memref<484x256xf32, #tpu.memory_space<vmem>>, %arg15: memref<1x8x256xf32, #tpu.memory_space<vmem>>) attributes {dimension_semantics = [#tpu.dimension_semantics<parallel>], iteration_bounds = array<i64: 2>, scalar_prefetch = 0 : i64, scratch_operands = 0 : i64, tpu.core_type = #tpu.core_type<tc>, window_params = [{transform_indices = @transform_0, window_bounds = array<i64: 1, 4, 64>}, {transform_indices = @transform_1, window_bounds = array<i64: 1, 3, 144>}, {pipeline_mode = #tpu.pipeline_mode<synchronous>, transform_indices = @transform_2, window_bounds = array<i64: 64, 484>}, {pipeline_mode = #tpu.pipeline_mode<synchronous>, transform_indices = @transform_3, window_bounds = array<i64: 144, 484>}, {pipeline_mode = #tpu.pipeline_mode<synchronous>, transform_indices = @transform_4, window_bounds = array<i64: 8, 36>}, {pipeline_mode = #tpu.pipeline_mode<synchronous>, transform_indices = @transform_5, window_bounds = array<i64: 8, 72>}, {pipeline_mode = #tpu.pipeline_mode<synchronous>, transform_indices = @transform_6, window_bounds = array<i64: 8, 72>}, {pipeline_mode = #tpu.pipeline_mode<synchronous>, transform_indices = @transform_7, window_bounds = array<i64: 8, 200>}, {pipeline_mode = #tpu.pipeline_mode<synchronous>, transform_indices = @transform_8, window_bounds = array<i64: 8, 75>}, {pipeline_mode = #tpu.pipeline_mode<synchronous>, transform_indices = @transform_9, window_bounds = array<i64: 8, 8>}, {pipeline_mode = #tpu.pipeline_mode<synchronous>, transform_indices = @transform_10, window_bounds = array<i64: 8, 8>}, {pipeline_mode = #tpu.pipeline_mode<synchronous>, transform_indices = @transform_11, window_bounds = array<i64: 8, 6>}, {pipeline_mode = #tpu.pipeline_mode<synchronous>, transform_indices = @transform_12, window_bounds = array<i64: 1, 484>}, {pipeline_mode = #tpu.pipeline_mode<synchronous>, transform_indices = @transform_13, window_bounds = array<i64: 484, 256>}, {transform_indices = @transform_14, window_bounds = array<i64: 1, 8, 256>}]} {
    %c0 = arith.constant 0 : index
    %c0_0 = arith.constant 0 : index
    %0 = vector.load %arg12[%c0, %c0_0] : memref<8x6xf32, #tpu.memory_space<vmem>>, vector<8x6xf32>
    %c0_1 = arith.constant 0 : index
    %c0_2 = arith.constant 0 : index
    %c0_3 = arith.constant 0 : index
    %1 = vector.load %arg1[%c0_1, %c0_2, %c0_3] : memref<1x4x64xf32, #tpu.memory_space<vmem>>, vector<1x4x64xf32>
    %2 = vector.shape_cast %1 : vector<1x4x64xf32> to vector<4x64xf32>
    %c0_4 = arith.constant 0 : index
    %c0_5 = arith.constant 0 : index
    %3 = vector.load %arg3[%c0_4, %c0_5] : memref<64x484xf32, #tpu.memory_space<vmem>>, vector<64x484xf32>
    %cst = arith.constant dense<0.000000e+00> : vector<4x484xf32>
    %4 = tpu.matmul %2, %3, %cst {dimension_numbers = #tpu.dot_dimension_numbers<[1], [0], [0], [1], [0, 0, 1, 1], [], []>} : vector<4x64xf32>, vector<64x484xf32>, vector<4x484xf32> -> vector<4x484xf32>
    %c0_6 = arith.constant 0 : index
    %c0_7 = arith.constant 0 : index
    %c0_8 = arith.constant 0 : index
    %5 = vector.load %arg2[%c0_6, %c0_7, %c0_8] : memref<1x3x144xf32, #tpu.memory_space<vmem>>, vector<1x3x144xf32>
    %6 = vector.shape_cast %5 : vector<1x3x144xf32> to vector<3x144xf32>
    %c0_9 = arith.constant 0 : index
    %c0_10 = arith.constant 0 : index
    %7 = vector.load %arg4[%c0_9, %c0_10] : memref<144x484xf32, #tpu.memory_space<vmem>>, vector<144x484xf32>
    %cst_11 = arith.constant dense<0.000000e+00> : vector<3x484xf32>
    %8 = tpu.matmul %6, %7, %cst_11 {dimension_numbers = #tpu.dot_dimension_numbers<[1], [0], [0], [1], [0, 0, 1, 1], [], []>} : vector<3x144xf32>, vector<144x484xf32>, vector<3x484xf32> -> vector<3x484xf32>
    %c0_12 = arith.constant 0 : index
    %c0_13 = arith.constant 0 : index
    %9 = vector.load %arg5[%c0_12, %c0_13] : memref<8x36xf32, #tpu.memory_space<vmem>>, vector<8x36xf32>
    %cst_14 = arith.constant 0.000000e+00 : f32
    %10 = vector.broadcast %cst_14 : f32 to vector<4x46xf32>
    %11 = tpu.concatenate %4, %10 in 1 : vector<4x484xf32>, vector<4x46xf32> -> vector<4x530xf32>
    %12 = vector.extract_strided_slice %11 {offsets = [0, 0], sizes = [4, 484], strides = [1, 1]} : vector<4x530xf32> to vector<4x484xf32>
    %13 = vector.extract_strided_slice %11 {offsets = [0, 1], sizes = [4, 484], strides = [1, 1]} : vector<4x530xf32> to vector<4x484xf32>
    %14 = vector.extract_strided_slice %11 {offsets = [0, 2], sizes = [4, 484], strides = [1, 1]} : vector<4x530xf32> to vector<4x484xf32>
    %15 = vector.extract_strided_slice %11 {offsets = [0, 22], sizes = [4, 484], strides = [1, 1]} : vector<4x530xf32> to vector<4x484xf32>
    %16 = vector.extract_strided_slice %11 {offsets = [0, 23], sizes = [4, 484], strides = [1, 1]} : vector<4x530xf32> to vector<4x484xf32>
    %17 = vector.extract_strided_slice %11 {offsets = [0, 24], sizes = [4, 484], strides = [1, 1]} : vector<4x530xf32> to vector<4x484xf32>
    %18 = vector.extract_strided_slice %11 {offsets = [0, 44], sizes = [4, 484], strides = [1, 1]} : vector<4x530xf32> to vector<4x484xf32>
    %19 = vector.extract_strided_slice %11 {offsets = [0, 45], sizes = [4, 484], strides = [1, 1]} : vector<4x530xf32> to vector<4x484xf32>
    %20 = vector.extract_strided_slice %11 {offsets = [0, 46], sizes = [4, 484], strides = [1, 1]} : vector<4x530xf32> to vector<4x484xf32>
    %21 = tpu.concatenate %12, %13, %14, %15, %16, %17, %18, %19, %20 in 0 : vector<4x484xf32>, vector<4x484xf32>, vector<4x484xf32>, vector<4x484xf32>, vector<4x484xf32>, vector<4x484xf32>, vector<4x484xf32>, vector<4x484xf32>, vector<4x484xf32> -> vector<36x484xf32>
    %cst_15 = arith.constant dense<0.000000e+00> : vector<8x484xf32>
    %22 = tpu.matmul %9, %21, %cst_15 {dimension_numbers = #tpu.dot_dimension_numbers<[1], [0], [0], [1], [0, 0, 1, 1], [], []>} : vector<8x36xf32>, vector<36x484xf32>, vector<8x484xf32> -> vector<8x484xf32>
    %23 = vector.extract_strided_slice %0 {offsets = [0, 0], sizes = [8, 1], strides = [1, 1]} : vector<8x6xf32> to vector<8x1xf32>
    %24 = vector.broadcast %23 : vector<8x1xf32> to vector<8x484xf32>
    %25 = arith.addf %22, %24 : vector<8x484xf32>
    %c0_16 = arith.constant 0 : index
    %c0_17 = arith.constant 0 : index
    %26 = vector.load %arg6[%c0_16, %c0_17] : memref<8x72xf32, #tpu.memory_space<vmem>>, vector<8x72xf32>
    %cst_18 = arith.constant 0.000000e+00 : f32
    %27 = vector.broadcast %cst_18 : f32 to vector<8x46xf32>
    %28 = tpu.concatenate %25, %27 in 1 : vector<8x484xf32>, vector<8x46xf32> -> vector<8x530xf32>
    %29 = vector.extract_strided_slice %28 {offsets = [0, 0], sizes = [8, 484], strides = [1, 1]} : vector<8x530xf32> to vector<8x484xf32>
    %30 = vector.extract_strided_slice %28 {offsets = [0, 1], sizes = [8, 484], strides = [1, 1]} : vector<8x530xf32> to vector<8x484xf32>
    %31 = vector.extract_strided_slice %28 {offsets = [0, 2], sizes = [8, 484], strides = [1, 1]} : vector<8x530xf32> to vector<8x484xf32>
    %32 = vector.extract_strided_slice %28 {offsets = [0, 22], sizes = [8, 484], strides = [1, 1]} : vector<8x530xf32> to vector<8x484xf32>
    %33 = vector.extract_strided_slice %28 {offsets = [0, 23], sizes = [8, 484], strides = [1, 1]} : vector<8x530xf32> to vector<8x484xf32>
    %34 = vector.extract_strided_slice %28 {offsets = [0, 24], sizes = [8, 484], strides = [1, 1]} : vector<8x530xf32> to vector<8x484xf32>
    %35 = vector.extract_strided_slice %28 {offsets = [0, 44], sizes = [8, 484], strides = [1, 1]} : vector<8x530xf32> to vector<8x484xf32>
    %36 = vector.extract_strided_slice %28 {offsets = [0, 45], sizes = [8, 484], strides = [1, 1]} : vector<8x530xf32> to vector<8x484xf32>
    %37 = vector.extract_strided_slice %28 {offsets = [0, 46], sizes = [8, 484], strides = [1, 1]} : vector<8x530xf32> to vector<8x484xf32>
    %38 = tpu.concatenate %29, %30, %31, %32, %33, %34, %35, %36, %37 in 0 : vector<8x484xf32>, vector<8x484xf32>, vector<8x484xf32>, vector<8x484xf32>, vector<8x484xf32>, vector<8x484xf32>, vector<8x484xf32>, vector<8x484xf32>, vector<8x484xf32> -> vector<72x484xf32>
    %cst_19 = arith.constant dense<0.000000e+00> : vector<8x484xf32>
    %39 = tpu.matmul %26, %38, %cst_19 {dimension_numbers = #tpu.dot_dimension_numbers<[1], [0], [0], [1], [0, 0, 1, 1], [], []>} : vector<8x72xf32>, vector<72x484xf32>, vector<8x484xf32> -> vector<8x484xf32>
    %40 = vector.extract_strided_slice %0 {offsets = [0, 1], sizes = [8, 1], strides = [1, 1]} : vector<8x6xf32> to vector<8x1xf32>
    %41 = vector.broadcast %40 : vector<8x1xf32> to vector<8x484xf32>
    %42 = arith.addf %39, %41 : vector<8x484xf32>
    %cst_20 = arith.constant 0.000000e+00 : f32
    %43 = vector.broadcast %cst_20 : f32 to vector<8x484xf32>
    %44 = arith.maximumf %42, %43 : vector<8x484xf32>
    %c0_21 = arith.constant 0 : index
    %c0_22 = arith.constant 0 : index
    %45 = vector.load %arg7[%c0_21, %c0_22] : memref<8x72xf32, #tpu.memory_space<vmem>>, vector<8x72xf32>
    %cst_23 = arith.constant 0.000000e+00 : f32
    %46 = vector.broadcast %cst_23 : f32 to vector<8x46xf32>
    %47 = tpu.concatenate %44, %46 in 1 : vector<8x484xf32>, vector<8x46xf32> -> vector<8x530xf32>
    %48 = vector.extract_strided_slice %47 {offsets = [0, 0], sizes = [8, 484], strides = [1, 1]} : vector<8x530xf32> to vector<8x484xf32>
    %49 = vector.extract_strided_slice %47 {offsets = [0, 1], sizes = [8, 484], strides = [1, 1]} : vector<8x530xf32> to vector<8x484xf32>
    %50 = vector.extract_strided_slice %47 {offsets = [0, 2], sizes = [8, 484], strides = [1, 1]} : vector<8x530xf32> to vector<8x484xf32>
    %51 = vector.extract_strided_slice %47 {offsets = [0, 22], sizes = [8, 484], strides = [1, 1]} : vector<8x530xf32> to vector<8x484xf32>
    %52 = vector.extract_strided_slice %47 {offsets = [0, 23], sizes = [8, 484], strides = [1, 1]} : vector<8x530xf32> to vector<8x484xf32>
    %53 = vector.extract_strided_slice %47 {offsets = [0, 24], sizes = [8, 484], strides = [1, 1]} : vector<8x530xf32> to vector<8x484xf32>
    %54 = vector.extract_strided_slice %47 {offsets = [0, 44], sizes = [8, 484], strides = [1, 1]} : vector<8x530xf32> to vector<8x484xf32>
    %55 = vector.extract_strided_slice %47 {offsets = [0, 45], sizes = [8, 484], strides = [1, 1]} : vector<8x530xf32> to vector<8x484xf32>
    %56 = vector.extract_strided_slice %47 {offsets = [0, 46], sizes = [8, 484], strides = [1, 1]} : vector<8x530xf32> to vector<8x484xf32>
    %57 = tpu.concatenate %48, %49, %50, %51, %52, %53, %54, %55, %56 in 0 : vector<8x484xf32>, vector<8x484xf32>, vector<8x484xf32>, vector<8x484xf32>, vector<8x484xf32>, vector<8x484xf32>, vector<8x484xf32>, vector<8x484xf32>, vector<8x484xf32> -> vector<72x484xf32>
    %cst_24 = arith.constant dense<0.000000e+00> : vector<8x484xf32>
    %58 = tpu.matmul %45, %57, %cst_24 {dimension_numbers = #tpu.dot_dimension_numbers<[1], [0], [0], [1], [0, 0, 1, 1], [], []>} : vector<8x72xf32>, vector<72x484xf32>, vector<8x484xf32> -> vector<8x484xf32>
    %59 = vector.extract_strided_slice %0 {offsets = [0, 2], sizes = [8, 1], strides = [1, 1]} : vector<8x6xf32> to vector<8x1xf32>
    %60 = vector.broadcast %59 : vector<8x1xf32> to vector<8x484xf32>
    %61 = arith.addf %58, %60 : vector<8x484xf32>
    %cst_25 = arith.constant 0.000000e+00 : f32
    %62 = vector.broadcast %cst_25 : f32 to vector<8x484xf32>
    %63 = arith.maximumf %61, %62 : vector<8x484xf32>
    %c0_26 = arith.constant 0 : index
    %c0_27 = arith.constant 0 : index
    %64 = vector.load %arg13[%c0_26, %c0_27] : memref<1x484xf32, #tpu.memory_space<vmem>>, vector<1x484xf32>
    %65 = vector.broadcast %64 : vector<1x484xf32> to vector<8x484xf32>
    %66 = arith.mulf %63, %65 : vector<8x484xf32>
    %c0_28 = arith.constant 0 : index
    %c0_29 = arith.constant 0 : index
    %67 = vector.load %arg8[%c0_28, %c0_29] : memref<8x200xf32, #tpu.memory_space<vmem>>, vector<8x200xf32>
    %cst_30 = arith.constant 0.000000e+00 : f32
    %68 = vector.broadcast %cst_30 : f32 to vector<8x92xf32>
    %69 = tpu.concatenate %66, %68 in 1 : vector<8x484xf32>, vector<8x92xf32> -> vector<8x576xf32>
    %70 = vector.extract_strided_slice %69 {offsets = [0, 0], sizes = [8, 484], strides = [1, 1]} : vector<8x576xf32> to vector<8x484xf32>
    %71 = vector.extract_strided_slice %69 {offsets = [0, 1], sizes = [8, 484], strides = [1, 1]} : vector<8x576xf32> to vector<8x484xf32>
    %72 = vector.extract_strided_slice %69 {offsets = [0, 2], sizes = [8, 484], strides = [1, 1]} : vector<8x576xf32> to vector<8x484xf32>
    %73 = vector.extract_strided_slice %69 {offsets = [0, 3], sizes = [8, 484], strides = [1, 1]} : vector<8x576xf32> to vector<8x484xf32>
    %74 = vector.extract_strided_slice %69 {offsets = [0, 4], sizes = [8, 484], strides = [1, 1]} : vector<8x576xf32> to vector<8x484xf32>
    %75 = vector.extract_strided_slice %69 {offsets = [0, 22], sizes = [8, 484], strides = [1, 1]} : vector<8x576xf32> to vector<8x484xf32>
    %76 = vector.extract_strided_slice %69 {offsets = [0, 23], sizes = [8, 484], strides = [1, 1]} : vector<8x576xf32> to vector<8x484xf32>
    %77 = vector.extract_strided_slice %69 {offsets = [0, 24], sizes = [8, 484], strides = [1, 1]} : vector<8x576xf32> to vector<8x484xf32>
    %78 = vector.extract_strided_slice %69 {offsets = [0, 25], sizes = [8, 484], strides = [1, 1]} : vector<8x576xf32> to vector<8x484xf32>
    %79 = vector.extract_strided_slice %69 {offsets = [0, 26], sizes = [8, 484], strides = [1, 1]} : vector<8x576xf32> to vector<8x484xf32>
    %80 = vector.extract_strided_slice %69 {offsets = [0, 44], sizes = [8, 484], strides = [1, 1]} : vector<8x576xf32> to vector<8x484xf32>
    %81 = vector.extract_strided_slice %69 {offsets = [0, 45], sizes = [8, 484], strides = [1, 1]} : vector<8x576xf32> to vector<8x484xf32>
    %82 = vector.extract_strided_slice %69 {offsets = [0, 46], sizes = [8, 484], strides = [1, 1]} : vector<8x576xf32> to vector<8x484xf32>
    %83 = vector.extract_strided_slice %69 {offsets = [0, 47], sizes = [8, 484], strides = [1, 1]} : vector<8x576xf32> to vector<8x484xf32>
    %84 = vector.extract_strided_slice %69 {offsets = [0, 48], sizes = [8, 484], strides = [1, 1]} : vector<8x576xf32> to vector<8x484xf32>
    %85 = vector.extract_strided_slice %69 {offsets = [0, 66], sizes = [8, 484], strides = [1, 1]} : vector<8x576xf32> to vector<8x484xf32>
    %86 = vector.extract_strided_slice %69 {offsets = [0, 67], sizes = [8, 484], strides = [1, 1]} : vector<8x576xf32> to vector<8x484xf32>
    %87 = vector.extract_strided_slice %69 {offsets = [0, 68], sizes = [8, 484], strides = [1, 1]} : vector<8x576xf32> to vector<8x484xf32>
    %88 = vector.extract_strided_slice %69 {offsets = [0, 69], sizes = [8, 484], strides = [1, 1]} : vector<8x576xf32> to vector<8x484xf32>
    %89 = vector.extract_strided_slice %69 {offsets = [0, 70], sizes = [8, 484], strides = [1, 1]} : vector<8x576xf32> to vector<8x484xf32>
    %90 = vector.extract_strided_slice %69 {offsets = [0, 88], sizes = [8, 484], strides = [1, 1]} : vector<8x576xf32> to vector<8x484xf32>
    %91 = vector.extract_strided_slice %69 {offsets = [0, 89], sizes = [8, 484], strides = [1, 1]} : vector<8x576xf32> to vector<8x484xf32>
    %92 = vector.extract_strided_slice %69 {offsets = [0, 90], sizes = [8, 484], strides = [1, 1]} : vector<8x576xf32> to vector<8x484xf32>
    %93 = vector.extract_strided_slice %69 {offsets = [0, 91], sizes = [8, 484], strides = [1, 1]} : vector<8x576xf32> to vector<8x484xf32>
    %94 = vector.extract_strided_slice %69 {offsets = [0, 92], sizes = [8, 484], strides = [1, 1]} : vector<8x576xf32> to vector<8x484xf32>
    %95 = tpu.concatenate %70, %71, %72, %73, %74, %75, %76, %77, %78, %79, %80, %81, %82, %83, %84, %85 in 0 : vector<8x484xf32>, vector<8x484xf32>, vector<8x484xf32>, vector<8x484xf32>, vector<8x484xf32>, vector<8x484xf32>, vector<8x484xf32>, vector<8x484xf32>, vector<8x484xf32>, vector<8x484xf32>, vector<8x484xf32>, vector<8x484xf32>, vector<8x484xf32>, vector<8x484xf32>, vector<8x484xf32>, vector<8x484xf32> -> vector<128x484xf32>
    %96 = tpu.concatenate %86, %87, %88, %89, %90, %91, %92, %93, %94 in 0 : vector<8x484xf32>, vector<8x484xf32>, vector<8x484xf32>, vector<8x484xf32>, vector<8x484xf32>, vector<8x484xf32>, vector<8x484xf32>, vector<8x484xf32>, vector<8x484xf32> -> vector<72x484xf32>
    %97 = tpu.concatenate %95, %96 in 0 : vector<128x484xf32>, vector<72x484xf32> -> vector<200x484xf32>
    %cst_31 = arith.constant dense<0.000000e+00> : vector<8x484xf32>
    %98 = tpu.matmul %67, %97, %cst_31 {dimension_numbers = #tpu.dot_dimension_numbers<[1], [0], [0], [1], [0, 0, 1, 1], [], []>} : vector<8x200xf32>, vector<200x484xf32>, vector<8x484xf32> -> vector<8x484xf32>
    %99 = vector.extract_strided_slice %0 {offsets = [0, 3], sizes = [8, 1], strides = [1, 1]} : vector<8x6xf32> to vector<8x1xf32>
    %100 = vector.broadcast %99 : vector<8x1xf32> to vector<8x484xf32>
    %101 = arith.addf %98, %100 : vector<8x484xf32>
    %c0_32 = arith.constant 0 : index
    %c0_33 = arith.constant 0 : index
    %102 = vector.load %arg9[%c0_32, %c0_33] : memref<8x75xf32, #tpu.memory_space<vmem>>, vector<8x75xf32>
    %cst_34 = arith.constant 0.000000e+00 : f32
    %103 = vector.broadcast %cst_34 : f32 to vector<3x92xf32>
    %104 = tpu.concatenate %8, %103 in 1 : vector<3x484xf32>, vector<3x92xf32> -> vector<3x576xf32>
    %105 = vector.extract_strided_slice %104 {offsets = [0, 0], sizes = [3, 484], strides = [1, 1]} : vector<3x576xf32> to vector<3x484xf32>
    %106 = vector.extract_strided_slice %104 {offsets = [0, 1], sizes = [3, 484], strides = [1, 1]} : vector<3x576xf32> to vector<3x484xf32>
    %107 = vector.extract_strided_slice %104 {offsets = [0, 2], sizes = [3, 484], strides = [1, 1]} : vector<3x576xf32> to vector<3x484xf32>
    %108 = vector.extract_strided_slice %104 {offsets = [0, 3], sizes = [3, 484], strides = [1, 1]} : vector<3x576xf32> to vector<3x484xf32>
    %109 = vector.extract_strided_slice %104 {offsets = [0, 4], sizes = [3, 484], strides = [1, 1]} : vector<3x576xf32> to vector<3x484xf32>
    %110 = vector.extract_strided_slice %104 {offsets = [0, 22], sizes = [3, 484], strides = [1, 1]} : vector<3x576xf32> to vector<3x484xf32>
    %111 = vector.extract_strided_slice %104 {offsets = [0, 23], sizes = [3, 484], strides = [1, 1]} : vector<3x576xf32> to vector<3x484xf32>
    %112 = vector.extract_strided_slice %104 {offsets = [0, 24], sizes = [3, 484], strides = [1, 1]} : vector<3x576xf32> to vector<3x484xf32>
    %113 = vector.extract_strided_slice %104 {offsets = [0, 25], sizes = [3, 484], strides = [1, 1]} : vector<3x576xf32> to vector<3x484xf32>
    %114 = vector.extract_strided_slice %104 {offsets = [0, 26], sizes = [3, 484], strides = [1, 1]} : vector<3x576xf32> to vector<3x484xf32>
    %115 = vector.extract_strided_slice %104 {offsets = [0, 44], sizes = [3, 484], strides = [1, 1]} : vector<3x576xf32> to vector<3x484xf32>
    %116 = vector.extract_strided_slice %104 {offsets = [0, 45], sizes = [3, 484], strides = [1, 1]} : vector<3x576xf32> to vector<3x484xf32>
    %117 = vector.extract_strided_slice %104 {offsets = [0, 46], sizes = [3, 484], strides = [1, 1]} : vector<3x576xf32> to vector<3x484xf32>
    %118 = vector.extract_strided_slice %104 {offsets = [0, 47], sizes = [3, 484], strides = [1, 1]} : vector<3x576xf32> to vector<3x484xf32>
    %119 = vector.extract_strided_slice %104 {offsets = [0, 48], sizes = [3, 484], strides = [1, 1]} : vector<3x576xf32> to vector<3x484xf32>
    %120 = vector.extract_strided_slice %104 {offsets = [0, 66], sizes = [3, 484], strides = [1, 1]} : vector<3x576xf32> to vector<3x484xf32>
    %121 = vector.extract_strided_slice %104 {offsets = [0, 67], sizes = [3, 484], strides = [1, 1]} : vector<3x576xf32> to vector<3x484xf32>
    %122 = vector.extract_strided_slice %104 {offsets = [0, 68], sizes = [3, 484], strides = [1, 1]} : vector<3x576xf32> to vector<3x484xf32>
    %123 = vector.extract_strided_slice %104 {offsets = [0, 69], sizes = [3, 484], strides = [1, 1]} : vector<3x576xf32> to vector<3x484xf32>
    %124 = vector.extract_strided_slice %104 {offsets = [0, 70], sizes = [3, 484], strides = [1, 1]} : vector<3x576xf32> to vector<3x484xf32>
    %125 = vector.extract_strided_slice %104 {offsets = [0, 88], sizes = [3, 484], strides = [1, 1]} : vector<3x576xf32> to vector<3x484xf32>
    %126 = vector.extract_strided_slice %104 {offsets = [0, 89], sizes = [3, 484], strides = [1, 1]} : vector<3x576xf32> to vector<3x484xf32>
    %127 = vector.extract_strided_slice %104 {offsets = [0, 90], sizes = [3, 484], strides = [1, 1]} : vector<3x576xf32> to vector<3x484xf32>
    %128 = vector.extract_strided_slice %104 {offsets = [0, 91], sizes = [3, 484], strides = [1, 1]} : vector<3x576xf32> to vector<3x484xf32>
    %129 = vector.extract_strided_slice %104 {offsets = [0, 92], sizes = [3, 484], strides = [1, 1]} : vector<3x576xf32> to vector<3x484xf32>
    %130 = tpu.concatenate %105, %106, %107, %108, %109, %110, %111, %112, %113, %114, %115, %116, %117, %118, %119, %120 in 0 : vector<3x484xf32>, vector<3x484xf32>, vector<3x484xf32>, vector<3x484xf32>, vector<3x484xf32>, vector<3x484xf32>, vector<3x484xf32>, vector<3x484xf32>, vector<3x484xf32>, vector<3x484xf32>, vector<3x484xf32>, vector<3x484xf32>, vector<3x484xf32>, vector<3x484xf32>, vector<3x484xf32>, vector<3x484xf32> -> vector<48x484xf32>
    %131 = tpu.concatenate %121, %122, %123, %124, %125, %126, %127, %128, %129 in 0 : vector<3x484xf32>, vector<3x484xf32>, vector<3x484xf32>, vector<3x484xf32>, vector<3x484xf32>, vector<3x484xf32>, vector<3x484xf32>, vector<3x484xf32>, vector<3x484xf32> -> vector<27x484xf32>
    %132 = tpu.concatenate %130, %131 in 0 : vector<48x484xf32>, vector<27x484xf32> -> vector<75x484xf32>
    %cst_35 = arith.constant dense<0.000000e+00> : vector<8x484xf32>
    %133 = tpu.matmul %102, %132, %cst_35 {dimension_numbers = #tpu.dot_dimension_numbers<[1], [0], [0], [1], [0, 0, 1, 1], [], []>} : vector<8x75xf32>, vector<75x484xf32>, vector<8x484xf32> -> vector<8x484xf32>
    %134 = vector.extract_strided_slice %0 {offsets = [0, 4], sizes = [8, 1], strides = [1, 1]} : vector<8x6xf32> to vector<8x1xf32>
    %135 = vector.broadcast %134 : vector<8x1xf32> to vector<8x484xf32>
    %136 = arith.addf %133, %135 : vector<8x484xf32>
    %c0_36 = arith.constant 0 : index
    %c0_37 = arith.constant 0 : index
    %137 = vector.load %arg10[%c0_36, %c0_37] : memref<8x8xf32, #tpu.memory_space<vmem>>, vector<8x8xf32>
    %cst_38 = arith.constant dense<0.000000e+00> : vector<8x484xf32>
    %138 = tpu.matmul %137, %101, %cst_38 {dimension_numbers = #tpu.dot_dimension_numbers<[1], [0], [0], [1], [0, 0, 1, 1], [], []>} : vector<8x8xf32>, vector<8x484xf32>, vector<8x484xf32> -> vector<8x484xf32>
    %c0_39 = arith.constant 0 : index
    %c0_40 = arith.constant 0 : index
    %139 = vector.load %arg11[%c0_39, %c0_40] : memref<8x8xf32, #tpu.memory_space<vmem>>, vector<8x8xf32>
    %cst_41 = arith.constant dense<0.000000e+00> : vector<8x484xf32>
    %140 = tpu.matmul %139, %136, %cst_41 {dimension_numbers = #tpu.dot_dimension_numbers<[1], [0], [0], [1], [0, 0, 1, 1], [], []>} : vector<8x8xf32>, vector<8x484xf32>, vector<8x484xf32> -> vector<8x484xf32>
    %141 = arith.addf %138, %140 : vector<8x484xf32>
    %142 = vector.extract_strided_slice %0 {offsets = [0, 5], sizes = [8, 1], strides = [1, 1]} : vector<8x6xf32> to vector<8x1xf32>
    %143 = vector.broadcast %142 : vector<8x1xf32> to vector<8x484xf32>
    %144 = arith.addf %141, %143 : vector<8x484xf32>
    %cst_42 = arith.constant 0.000000e+00 : f32
    %145 = vector.broadcast %cst_42 : f32 to vector<8x484xf32>
    %146 = arith.maximumf %144, %145 : vector<8x484xf32>
    %c0_43 = arith.constant 0 : index
    %c0_44 = arith.constant 0 : index
    %147 = vector.load %arg14[%c0_43, %c0_44] : memref<484x256xf32, #tpu.memory_space<vmem>>, vector<484x256xf32>
    %cst_45 = arith.constant dense<0.000000e+00> : vector<8x256xf32>
    %148 = tpu.matmul %146, %147, %cst_45 {dimension_numbers = #tpu.dot_dimension_numbers<[1], [0], [0], [1], [0, 0, 1, 1], [], []>} : vector<8x484xf32>, vector<484x256xf32>, vector<8x256xf32> -> vector<8x256xf32>
    %149 = vector.shape_cast %148 : vector<8x256xf32> to vector<1x8x256xf32>
    %c0_46 = arith.constant 0 : index
    %c0_47 = arith.constant 0 : index
    %c0_48 = arith.constant 0 : index
    %150 = vector.load %arg15[%c0_46, %c0_47, %c0_48] : memref<1x8x256xf32, #tpu.memory_space<vmem>>, vector<1x8x256xf32>
    tpu.vector_store %arg15[%c0_46, %c0_47, %c0_48], %149 {strides = array<i32>} : memref<1x8x256xf32, #tpu.memory_space<vmem>>, vector<1x8x256xf32>,
    return
  }
  func.func @transform_0(%arg0: i32) -> (i32, i32, i32) {
    %c0_i32 = arith.constant 0 : i32
    %c0_i32_0 = arith.constant 0 : i32
    %c0_i32_1 = arith.constant 0 : i32
    return %arg0, %c0_i32, %c0_i32_0 : i32, i32, i32
  }
  func.func @transform_1(%arg0: i32) -> (i32, i32, i32) {
    %c0_i32 = arith.constant 0 : i32
    %c0_i32_0 = arith.constant 0 : i32
    %c0_i32_1 = arith.constant 0 : i32
    return %arg0, %c0_i32, %c0_i32_0 : i32, i32, i32
  }
  func.func @transform_2(%arg0: i32) -> (i32, i32) {
    %c0_i32 = arith.constant 0 : i32
    %c0_i32_0 = arith.constant 0 : i32
    %c0_i32_1 = arith.constant 0 : i32
    return %c0_i32, %c0_i32_0 : i32, i32
  }
  func.func @transform_3(%arg0: i32) -> (i32, i32) {
    %c0_i32 = arith.constant 0 : i32
    %c0_i32_0 = arith.constant 0 : i32
    %c0_i32_1 = arith.constant 0 : i32
    return %c0_i32, %c0_i32_0 : i32, i32
  }
  func.func @transform_4(%arg0: i32) -> (i32, i32) {
    %c0_i32 = arith.constant 0 : i32
    %c0_i32_0 = arith.constant 0 : i32
    %c0_i32_1 = arith.constant 0 : i32
    return %c0_i32, %c0_i32_0 : i32, i32
  }
  func.func @transform_5(%arg0: i32) -> (i32, i32) {
    %c0_i32 = arith.constant 0 : i32
    %c0_i32_0 = arith.constant 0 : i32
    %c0_i32_1 = arith.constant 0 : i32
    return %c0_i32, %c0_i32_0 : i32, i32
  }
  func.func @transform_6(%arg0: i32) -> (i32, i32) {
    %c0_i32 = arith.constant 0 : i32
    %c0_i32_0 = arith.constant 0 : i32
    %c0_i32_1 = arith.constant 0 : i32
    return %c0_i32, %c0_i32_0 : i32, i32
  }
  func.func @transform_7(%arg0: i32) -> (i32, i32) {
    %c0_i32 = arith.constant 0 : i32
    %c0_i32_0 = arith.constant 0 : i32
    %c0_i32_1 = arith.constant 0 : i32
    return %c0_i32, %c0_i32_0 : i32, i32
  }
  func.func @transform_8(%arg0: i32) -> (i32, i32) {
    %c0_i32 = arith.constant 0 : i32
    %c0_i32_0 = arith.constant 0 : i32
    %c0_i32_1 = arith.constant 0 : i32
    return %c0_i32, %c0_i32_0 : i32, i32
  }
  func.func @transform_9(%arg0: i32) -> (i32, i32) {
    %c0_i32 = arith.constant 0 : i32
    %c0_i32_0 = arith.constant 0 : i32
    %c0_i32_1 = arith.constant 0 : i32
    return %c0_i32, %c0_i32_0 : i32, i32
  }
  func.func @transform_10(%arg0: i32) -> (i32, i32) {
    %c0_i32 = arith.constant 0 : i32
    %c0_i32_0 = arith.constant 0 : i32
    %c0_i32_1 = arith.constant 0 : i32
    return %c0_i32, %c0_i32_0 : i32, i32
  }
  func.func @transform_11(%arg0: i32) -> (i32, i32) {
    %c0_i32 = arith.constant 0 : i32
    %c0_i32_0 = arith.constant 0 : i32
    %c0_i32_1 = arith.constant 0 : i32
    return %c0_i32, %c0_i32_0 : i32, i32
  }
  func.func @transform_12(%arg0: i32) -> (i32, i32) {
    %c0_i32 = arith.constant 0 : i32
    %c0_i32_0 = arith.constant 0 : i32
    %c0_i32_1 = arith.constant 0 : i32
    return %c0_i32, %c0_i32_0 : i32, i32
  }
  func.func @transform_13(%arg0: i32) -> (i32, i32) {
    %c0_i32 = arith.constant 0 : i32
    %c0_i32_0 = arith.constant 0 : i32
    %c0_i32_1 = arith.constant 0 : i32
    return %c0_i32, %c0_i32_0 : i32, i32
  }
  func.func @transform_14(%arg0: i32) -> (i32, i32, i32) {
    %c0_i32 = arith.constant 0 : i32
    %c0_i32_0 = arith.constant 0 : i32
    %c0_i32_1 = arith.constant 0 : i32
    return %arg0, %c0_i32, %c0_i32_0 : i32, i32, i32
  }
}

</mosaic_0001>

<llo_original>
// kernel: up_block_forward.1
$region0: #{up_block_forward.1}
  #allocation0 [shape = 'u32[]', space=smem, size = 0x4, offset = 0x4, fixed_abs, tag = 'smem constant byte address 0x4 - core index']
  #allocation1 [shape = 'u32[144,128]{1,0:T(1,128)}', space=vmem, size = 0x12000, scoped, tag = 'internal scratch']
  %s0 = inlined_call_operand.vmem [shape: f32[2,4,64], index: 0, kind: input, shape index: {}]
  %s1 = inlined_call_operand.vmem [shape: f32[2,3,144], index: 1, kind: input, shape index: {}]
  %s2 = inlined_call_operand.vmem [shape: f32[64,484], index: 2, kind: input, shape index: {}]
  %s3 = inlined_call_operand.hbm [shape: f32[144,484], index: 3, kind: input, shape index: {}]
  %s4 = inlined_call_operand.vmem [shape: f32[8,36], index: 4, kind: input, shape index: {}]
  %s5 = inlined_call_operand.vmem [shape: f32[8,72], index: 5, kind: input, shape index: {}]
  %s6 = inlined_call_operand.vmem [shape: f32[8,72], index: 6, kind: input, shape index: {}]
  %s7 = inlined_call_operand.vmem [shape: f32[8,200], index: 7, kind: input, shape index: {}]
  %s8 = inlined_call_operand.vmem [shape: f32[8,75], index: 8, kind: input, shape index: {}]
  %s9 = inlined_call_operand.vmem [shape: f32[8,8], index: 9, kind: input, shape index: {}]
  %s10 = inlined_call_operand.vmem [shape: f32[8,8], index: 10, kind: input, shape index: {}]
  %s11 = inlined_call_operand.vmem [shape: f32[8,6], index: 11, kind: input, shape index: {}]
  %s12 = inlined_call_operand.vmem [shape: f32[1,484], index: 12, kind: input, shape index: {}]
  %s13 = inlined_call_operand.hbm [shape: f32[484,256], index: 13, kind: input, shape index: {}]
  %s14 = inlined_call_operand.vmem [shape: f32[2,8,256], index: 14, kind: output, shape index: {}]
  %s15 = sld [smem:[#allocation0]]
  $region97: #{up_block_forward.1} parent=0
    _
  %s17 = ssub.s32 1, %s15
  %s18 = scalar_select 0, %s17, %s15
  $region1: #{up_block_forward.1} parent=0
    #allocation2 [shape = 'u8[294912]{0}', space=vmem, size = 0x48000, scoped, tag = 'input window, operand 3, single buffered']
    #allocation3 [shape = 's32[2]{0}', space=sflag, size = 0x8, scoped, tag = 'scoped memory for up_block_forward.1']
    #allocation4 [shape = 'u8[499712]{0}', space=vmem, size = 0x7a000, scoped, tag = 'input window, operand 13, single buffered']
    #allocation5 [shape = 's32[1]{0}', space=sflag, size = 0x4, scoped, tag = 'scoped memory for up_block_forward.1']
    %19 = vsyncpa [#allocation3], 0
    %20 = vsyncpa [#allocation5], 0
    loop: start=0, step=1, limit=4
    $region2: #{up_block_forward.1} parent=1 // loop_pre_header
      _
    $region3: #{up_block_forward.1} parent=1 // loop_header
      %s22 = sphi 0, %s26
      %p23 = scmp.ge.s32.totalorder %s22, 4
      %s32 = sphi 0, %s34
      %s35 = sphi 0, %s32
      %s36 = sphi 0, %s35
      %s52 = sphi 0, %s36
      %s58 = sphi 0, %s60
      %s61 = sphi 0, %s58
      %s62 = sphi 0, %s61
      %s78 = sphi 0, %s62
      %s82 = sphi 0, %s82
      %s84 = sphi 0, %s82
      %s85 = sphi 0, %s84
      %s99 = sphi 0, %s85
      %s103 = sphi 0, %s103
      %s105 = sphi 0, %s103
      %s106 = sphi 0, %s105
      %s120 = sphi 0, %s106
      %s124 = sphi 0, %s124
      %s126 = sphi 0, %s124
      %s127 = sphi 0, %s126
      %s141 = sphi 0, %s127
      %s145 = sphi 0, %s145
      %s147 = sphi 0, %s145
      %s148 = sphi 0, %s147
      %s162 = sphi 0, %s148
      %s166 = sphi 0, %s166
      %s168 = sphi 0, %s166
      %s169 = sphi 0, %s168
      %s183 = sphi 0, %s169
      %s187 = sphi 0, %s187
      %s189 = sphi 0, %s187
      %s190 = sphi 0, %s189
      %s204 = sphi 0, %s190
      %s208 = sphi 0, %s208
      %s210 = sphi 0, %s208
      %s211 = sphi 0, %s210
      %s225 = sphi 0, %s211
      %s229 = sphi 0, %s229
      %s231 = sphi 0, %s229
      %s232 = sphi 0, %s231
      %s246 = sphi 0, %s232
      %s250 = sphi 0, %s250
      %s252 = sphi 0, %s250
      %s253 = sphi 0, %s252
      %s267 = sphi 0, %s253
      %s271 = sphi 0, %s271
      %s273 = sphi 0, %s271
      %s274 = sphi 0, %s273
      %s288 = sphi 0, %s274
      %s292 = sphi 0, %s292
      %s294 = sphi 0, %s292
      %s295 = sphi 0, %s294
      %s309 = sphi 0, %s295
      %s313 = sphi 0, %s313
      %s315 = sphi 0, %s313
      %s316 = sphi 0, %s315
      %s330 = sphi 0, %s316
      %s336 = sphi 0, %s338
      %s339 = sphi 0, %s336
      %s340 = sphi 0, %s339
      %s356 = sphi 0, %s340
    $region4: #{up_block_forward.1} parent=1 // loop_header_branch
      %25 = sbr.rel (%p23) target = $region8
    $region5: #{up_block_forward.1} parent=1 // loop_body
      %s27 = ssub.s32 %s22, 1
      %s28 = ssub.s32 %s22, 2
      %s29 = sadd.s32 %s22, 1
      %s30 = ssub.s32 %s22, %s29
      %p31 = scmp.eq.s32.totalorder %s30, 0
      %s33 = sadd.s32 %s32, 1
      %s34 = scalar_select %p31, %s32, %s33
      %p37 = pneg %p31
      %p38 = scmp.eq.s32.totalorder %s22, 1
      %p39 = por %p37, %p38
      %p40 = scmp.ne.s32.totalorder %s32, %s35
      %p41 = scmp.eq.s32.totalorder %s22, 0
      %p42 = por %p40, %p41
      %p43 = scmp.ne.s32.totalorder %s32, %s35
      %p44 = scmp.eq.s32.totalorder %s27, 1
      %p45 = por %p43, %p44
      %p46 = scmp.ne.s32.totalorder %s35, %s36
      %p47 = scmp.eq.s32.totalorder %s27, 0
      %p48 = por %p46, %p47
      %p49 = scmp.ne.s32.totalorder %s35, %s36
      %p50 = scmp.eq.s32.totalorder %s28, 1
      %p51 = por %p49, %p50
      %p53 = scmp.ne.s32.totalorder %s36, %s52
      %p54 = scmp.eq.s32.totalorder %s28, 0
      %p55 = por %p53, %p54
      %s56 = ssub.s32 %s22, %s29
      %p57 = scmp.eq.s32.totalorder %s56, 0
      %s59 = sadd.s32 %s58, 1
      %s60 = scalar_select %p57, %s58, %s59
      %p63 = pneg %p57
      %p64 = scmp.eq.s32.totalorder %s22, 1
      %p65 = por %p63, %p64
      %p66 = scmp.ne.s32.totalorder %s58, %s61
      %p67 = scmp.eq.s32.totalorder %s22, 0
      %p68 = por %p66, %p67
      %p69 = scmp.ne.s32.totalorder %s58, %s61
      %p70 = scmp.eq.s32.totalorder %s27, 1
      %p71 = por %p69, %p70
      %p72 = scmp.ne.s32.totalorder %s61, %s62
      %p73 = scmp.eq.s32.totalorder %s27, 0
      %p74 = por %p72, %p73
      %p75 = scmp.ne.s32.totalorder %s61, %s62
      %p76 = scmp.eq.s32.totalorder %s28, 1
      %p77 = por %p75, %p76
      %p79 = scmp.ne.s32.totalorder %s62, %s78
      %p80 = scmp.eq.s32.totalorder %s28, 0
      %p81 = por %p79, %p80
      %s83 = sadd.s32 %s82, 1
      %p86 = scmp.eq.s32.totalorder %s22, 1
      %p87 = scmp.ne.s32.totalorder %s82, %s84
      %p88 = scmp.eq.s32.totalorder %s22, 0
      %p89 = por %p87, %p88
      %p90 = scmp.ne.s32.totalorder %s82, %s84
      %p91 = scmp.eq.s32.totalorder %s27, 1
      %p92 = por %p90, %p91
      %p93 = scmp.ne.s32.totalorder %s84, %s85
      %p94 = scmp.eq.s32.totalorder %s27, 0
      %p95 = por %p93, %p94
      %p96 = scmp.ne.s32.totalorder %s84, %s85
      %p97 = scmp.eq.s32.totalorder %s28, 1
      %p98 = por %p96, %p97
      %p100 = scmp.ne.s32.totalorder %s85, %s99
      %p101 = scmp.eq.s32.totalorder %s28, 0
      %p102 = por %p100, %p101
      %s104 = sadd.s32 %s103, 1
      %p107 = scmp.eq.s32.totalorder %s22, 1
      %p108 = scmp.ne.s32.totalorder %s103, %s105
      %p109 = scmp.eq.s32.totalorder %s22, 0
      %p110 = por %p108, %p109
      %p111 = scmp.ne.s32.totalorder %s103, %s105
      %p112 = scmp.eq.s32.totalorder %s27, 1
      %p113 = por %p111, %p112
      %p114 = scmp.ne.s32.totalorder %s105, %s106
      %p115 = scmp.eq.s32.totalorder %s27, 0
      %p116 = por %p114, %p115
      %p117 = scmp.ne.s32.totalorder %s105, %s106
      %p118 = scmp.eq.s32.totalorder %s28, 1
      %p119 = por %p117, %p118
      %p121 = scmp.ne.s32.totalorder %s106, %s120
      %p122 = scmp.eq.s32.totalorder %s28, 0
      %p123 = por %p121, %p122
      %s125 = sadd.s32 %s124, 1
      %p128 = scmp.eq.s32.totalorder %s22, 1
      %p129 = scmp.ne.s32.totalorder %s124, %s126
      %p130 = scmp.eq.s32.totalorder %s22, 0
      %p131 = por %p129, %p130
      %p132 = scmp.ne.s32.totalorder %s124, %s126
      %p133 = scmp.eq.s32.totalorder %s27, 1
      %p134 = por %p132, %p133
      %p135 = scmp.ne.s32.totalorder %s126, %s127
      %p136 = scmp.eq.s32.totalorder %s27, 0
      %p137 = por %p135, %p136
      %p138 = scmp.ne.s32.totalorder %s126, %s127
      %p139 = scmp.eq.s32.totalorder %s28, 1
      %p140 = por %p138, %p139
      %p142 = scmp.ne.s32.totalorder %s127, %s141
      %p143 = scmp.eq.s32.totalorder %s28, 0
      %p144 = por %p142, %p143
      %s146 = sadd.s32 %s145, 1
      %p149 = scmp.eq.s32.totalorder %s22, 1
      %p150 = scmp.ne.s32.totalorder %s145, %s147
      %p151 = scmp.eq.s32.totalorder %s22, 0
      %p152 = por %p150, %p151
      %p153 = scmp.ne.s32.totalorder %s145, %s147
      %p154 = scmp.eq.s32.totalorder %s27, 1
      %p155 = por %p153, %p154
      %p156 = scmp.ne.s32.totalorder %s147, %s148
      %p157 = scmp.eq.s32.totalorder %s27, 0
      %p158 = por %p156, %p157
      %p159 = scmp.ne.s32.totalorder %s147, %s148
      %p160 = scmp.eq.s32.totalorder %s28, 1
      %p161 = por %p159, %p160
      %p163 = scmp.ne.s32.totalorder %s148, %s162
      %p164 = scmp.eq.s32.totalorder %s28, 0
      %p165 = por %p163, %p164
      %s167 = sadd.s32 %s166, 1
      %p170 = scmp.eq.s32.totalorder %s22, 1
      %p171 = scmp.ne.s32.totalorder %s166, %s168
      %p172 = scmp.eq.s32.totalorder %s22, 0
      %p173 = por %p171, %p172
      %p174 = scmp.ne.s32.totalorder %s166, %s168
      %p175 = scmp.eq.s32.totalorder %s27, 1
      %p176 = por %p174, %p175
      %p177 = scmp.ne.s32.totalorder %s168, %s169
      %p178 = scmp.eq.s32.totalorder %s27, 0
      %p179 = por %p177, %p178
      %p180 = scmp.ne.s32.totalorder %s168, %s169
      %p181 = scmp.eq.s32.totalorder %s28, 1
      %p182 = por %p180, %p181
      %p184 = scmp.ne.s32.totalorder %s169, %s183
      %p185 = scmp.eq.s32.totalorder %s28, 0
      %p186 = por %p184, %p185
      %s188 = sadd.s32 %s187, 1
      %p191 = scmp.eq.s32.totalorder %s22, 1
      %p192 = scmp.ne.s32.totalorder %s187, %s189
      %p193 = scmp.eq.s32.totalorder %s22, 0
      %p194 = por %p192, %p193
      %p195 = scmp.ne.s32.totalorder %s187, %s189
      %p196 = scmp.eq.s32.totalorder %s27, 1
      %p197 = por %p195, %p196
      %p198 = scmp.ne.s32.totalorder %s189, %s190
      %p199 = scmp.eq.s32.totalorder %s27, 0
      %p200 = por %p198, %p199
      %p201 = scmp.ne.s32.totalorder %s189, %s190
      %p202 = scmp.eq.s32.totalorder %s28, 1
      %p203 = por %p201, %p202
      %p205 = scmp.ne.s32.totalorder %s190, %s204
      %p206 = scmp.eq.s32.totalorder %s28, 0
      %p207 = por %p205, %p206
      %s209 = sadd.s32 %s208, 1
      %p212 = scmp.eq.s32.totalorder %s22, 1
      %p213 = scmp.ne.s32.totalorder %s208, %s210
      %p214 = scmp.eq.s32.totalorder %s22, 0
      %p215 = por %p213, %p214
      %p216 = scmp.ne.s32.totalorder %s208, %s210
      %p217 = scmp.eq.s32.totalorder %s27, 1
      %p218 = por %p216, %p217
      %p219 = scmp.ne.s32.totalorder %s210, %s211
      %p220 = scmp.eq.s32.totalorder %s27, 0
      %p221 = por %p219, %p220
      %p222 = scmp.ne.s32.totalorder %s210, %s211
      %p223 = scmp.eq.s32.totalorder %s28, 1
      %p224 = por %p222, %p223
      %p226 = scmp.ne.s32.totalorder %s211, %s225
      %p227 = scmp.eq.s32.totalorder %s28, 0
      %p228 = por %p226, %p227
      %s230 = sadd.s32 %s229, 1
      %p233 = scmp.eq.s32.totalorder %s22, 1
      %p234 = scmp.ne.s32.totalorder %s229, %s231
      %p235 = scmp.eq.s32.totalorder %s22, 0
      %p236 = por %p234, %p235
      %p237 = scmp.ne.s32.totalorder %s229, %s231
      %p238 = scmp.eq.s32.totalorder %s27, 1
      %p239 = por %p237, %p238
      %p240 = scmp.ne.s32.totalorder %s231, %s232
      %p241 = scmp.eq.s32.totalorder %s27, 0
      %p242 = por %p240, %p241
      %p243 = scmp.ne.s32.totalorder %s231, %s232
      %p244 = scmp.eq.s32.totalorder %s28, 1
      %p245 = por %p243, %p244
      %p247 = scmp.ne.s32.totalorder %s232, %s246
      %p248 = scmp.eq.s32.totalorder %s28, 0
      %p249 = por %p247, %p248
      %s251 = sadd.s32 %s250, 1
      %p254 = scmp.eq.s32.totalorder %s22, 1
      %p255 = scmp.ne.s32.totalorder %s250, %s252
      %p256 = scmp.eq.s32.totalorder %s22, 0
      %p257 = por %p255, %p256
      %p258 = scmp.ne.s32.totalorder %s250, %s252
      %p259 = scmp.eq.s32.totalorder %s27, 1
      %p260 = por %p258, %p259
      %p261 = scmp.ne.s32.totalorder %s252, %s253
      %p262 = scmp.eq.s32.totalorder %s27, 0
      %p263 = por %p261, %p262
      %p264 = scmp.ne.s32.totalorder %s252, %s253
      %p265 = scmp.eq.s32.totalorder %s28, 1
      %p266 = por %p264, %p265
      %p268 = scmp.ne.s32.totalorder %s253, %s267
      %p269 = scmp.eq.s32.totalorder %s28, 0
      %p270 = por %p268, %p269
      %s272 = sadd.s32 %s271, 1
      %p275 = scmp.eq.s32.totalorder %s22, 1
      %p276 = scmp.ne.s32.totalorder %s271, %s273
      %p277 = scmp.eq.s32.totalorder %s22, 0
      %p278 = por %p276, %p277
      %p279 = scmp.ne.s32.totalorder %s271, %s273
      %p280 = scmp.eq.s32.totalorder %s27, 1
      %p281 = por %p279, %p280
      %p282 = scmp.ne.s32.totalorder %s273, %s274
      %p283 = scmp.eq.s32.totalorder %s27, 0
      %p284 = por %p282, %p283
      %p285 = scmp.ne.s32.totalorder %s273, %s274
      %p286 = scmp.eq.s32.totalorder %s28, 1
      %p287 = por %p285, %p286
      %p289 = scmp.ne.s32.totalorder %s274, %s288
      %p290 = scmp.eq.s32.totalorder %s28, 0
      %p291 = por %p289, %p290
      %s293 = sadd.s32 %s292, 1
      %p296 = scmp.eq.s32.totalorder %s22, 1
      %p297 = scmp.ne.s32.totalorder %s292, %s294
      %p298 = scmp.eq.s32.totalorder %s22, 0
      %p299 = por %p297, %p298
      %p300 = scmp.ne.s32.totalorder %s292, %s294
      %p301 = scmp.eq.s32.totalorder %s27, 1
      %p302 = por %p300, %p301
      %p303 = scmp.ne.s32.totalorder %s294, %s295
      %p304 = scmp.eq.s32.totalorder %s27, 0
      %p305 = por %p303, %p304
      %p306 = scmp.ne.s32.totalorder %s294, %s295
      %p307 = scmp.eq.s32.totalorder %s28, 1
      %p308 = por %p306, %p307
      %p310 = scmp.ne.s32.totalorder %s295, %s309
      %p311 = scmp.eq.s32.totalorder %s28, 0
      %p312 = por %p310, %p311
      %s314 = sadd.s32 %s313, 1
      %p317 = scmp.eq.s32.totalorder %s22, 1
      %p318 = scmp.ne.s32.totalorder %s313, %s315
      %p319 = scmp.eq.s32.totalorder %s22, 0
      %p320 = por %p318, %p319
      %p321 = scmp.ne.s32.totalorder %s313, %s315
      %p322 = scmp.eq.s32.totalorder %s27, 1
      %p323 = por %p321, %p322
      %p324 = scmp.ne.s32.totalorder %s315, %s316
      %p325 = scmp.eq.s32.totalorder %s27, 0
      %p326 = por %p324, %p325
      %p327 = scmp.ne.s32.totalorder %s315, %s316
      %p328 = scmp.eq.s32.totalorder %s28, 1
      %p329 = por %p327, %p328
      %p331 = scmp.ne.s32.totalorder %s316, %s330
      %p332 = scmp.eq.s32.totalorder %s28, 0
      %p333 = por %p331, %p332
      %s334 = ssub.s32 %s22, %s29
      %p335 = scmp.eq.s32.totalorder %s334, 0
      %s337 = sadd.s32 %s336, 1
      %s338 = scalar_select %p335, %s336, %s337
      %p341 = pneg %p335
      %p342 = scmp.eq.s32.totalorder %s22, 1
      %p343 = por %p341, %p342
      %p344 = scmp.ne.s32.totalorder %s336, %s339
      %p345 = scmp.eq.s32.totalorder %s22, 0
      %p346 = por %p344, %p345
      %p347 = scmp.ne.s32.totalorder %s336, %s339
      %p348 = scmp.eq.s32.totalorder %s27, 1
      %p349 = por %p347, %p348
      %p350 = scmp.ne.s32.totalorder %s339, %s340
      %p351 = scmp.eq.s32.totalorder %s27, 0
      %p352 = por %p350, %p351
      %p353 = scmp.ne.s32.totalorder %s339, %s340
      %p354 = scmp.eq.s32.totalorder %s28, 1
      %p355 = por %p353, %p354
      %p357 = scmp.ne.s32.totalorder %s340, %s356
      %p358 = scmp.eq.s32.totalorder %s28, 0
      %p359 = por %p357, %p358
      %p360 = scmp.le.s32.totalorder 1, %s22
      %p361 = scmp.lt.s32.totalorder %s22, 3
      %p362 = pnand %p360, %p361
      %p363 = pneg %p362
      // Predicated region
      $region9: #{up_block_forward.1} parent=5 // pred_check
        _
      $region10: #{up_block_forward.1} parent=5 // pred_check_branch
        %365 = sbr.rel (%p362) target = $region12
      $region11: #{up_block_forward.1} parent=5 // pred_region
        %s366 = ssub.s32 %s22, 1
        // Predicated region
        $region13: #{up_block_forward.1} parent=11 // pred_check
          %p367 = pneg %p95
        $region14: #{up_block_forward.1} parent=11 // pred_check_branch
          %369 = sbr.rel (%p367) target = $region16
        $region15: #{up_block_forward.1} parent=11 // pred_region
          _
        $region16: #{up_block_forward.1} parent=11 // pred_fallthru
          _
        // Predicated region
        $region17: #{up_block_forward.1} parent=11 // pred_check
          %p370 = pneg %p116
        $region18: #{up_block_forward.1} parent=11 // pred_check_branch
          %372 = sbr.rel (%p370) target = $region20
        $region19: #{up_block_forward.1} parent=11 // pred_region
          %s374 = ssub.s32 9216, 9216
          %375 = vsyncadd [#allocation3], %s374
          %s376 = sshll.u32 [#allocation2], 4
          %s377 = int_to_ptr.vmem [resolvable:$true] %s376
          %382 = dma.hbm_to_vmem [thread:$0]  %s3, 9216, %s377, [#allocation3], 512, 512, 32
        $region20: #{up_block_forward.1} parent=11 // pred_fallthru
          _
        // Predicated region
        $region21: #{up_block_forward.1} parent=11 // pred_check
          %p383 = pneg %p137
        $region22: #{up_block_forward.1} parent=11 // pred_check_branch
          %385 = sbr.rel (%p383) target = $region24
        $region23: #{up_block_forward.1} parent=11 // pred_region
          _
        $region24: #{up_block_forward.1} parent=11 // pred_fallthru
          _
        // Predicated region
        $region25: #{up_block_forward.1} parent=11 // pred_check
          %p386 = pneg %p158
        $region26: #{up_block_forward.1} parent=11 // pred_check_branch
          %388 = sbr.rel (%p386) target = $region28
        $region27: #{up_block_forward.1} parent=11 // pred_region
          _
        $region28: #{up_block_forward.1} parent=11 // pred_fallthru
          _
        // Predicated region
        $region29: #{up_block_forward.1} parent=11 // pred_check
          %p389 = pneg %p179
        $region30: #{up_block_forward.1} parent=11 // pred_check_branch
          %391 = sbr.rel (%p389) target = $region32
        $region31: #{up_block_forward.1} parent=11 // pred_region
          _
        $region32: #{up_block_forward.1} parent=11 // pred_fallthru
          _
        // Predicated region
        $region33: #{up_block_forward.1} parent=11 // pred_check
          %p392 = pneg %p200
        $region34: #{up_block_forward.1} parent=11 // pred_check_branch
          %394 = sbr.rel (%p392) target = $region36
        $region35: #{up_block_forward.1} parent=11 // pred_region
          _
        $region36: #{up_block_forward.1} parent=11 // pred_fallthru
          _
        // Predicated region
        $region37: #{up_block_forward.1} parent=11 // pred_check
          %p395 = pneg %p221
        $region38: #{up_block_forward.1} parent=11 // pred_check_branch
          %397 = sbr.rel (%p395) target = $region40
        $region39: #{up_block_forward.1} parent=11 // pred_region
          _
        $region40: #{up_block_forward.1} parent=11 // pred_fallthru
          _
        // Predicated region
        $region41: #{up_block_forward.1} parent=11 // pred_check
          %p398 = pneg %p242
        $region42: #{up_block_forward.1} parent=11 // pred_check_branch
          %400 = sbr.rel (%p398) target = $region44
        $region43: #{up_block_forward.1} parent=11 // pred_region
          _
        $region44: #{up_block_forward.1} parent=11 // pred_fallthru
          _
        // Predicated region
        $region45: #{up_block_forward.1} parent=11 // pred_check
          %p401 = pneg %p263
        $region46: #{up_block_forward.1} parent=11 // pred_check_branch
          %403 = sbr.rel (%p401) target = $region48
        $region47: #{up_block_forward.1} parent=11 // pred_region
          _
        $region48: #{up_block_forward.1} parent=11 // pred_fallthru
          _
        // Predicated region
        $region49: #{up_block_forward.1} parent=11 // pred_check
          %p404 = pneg %p284
        $region50: #{up_block_forward.1} parent=11 // pred_check_branch
          %406 = sbr.rel (%p404) target = $region52
        $region51: #{up_block_forward.1} parent=11 // pred_region
          _
        $region52: #{up_block_forward.1} parent=11 // pred_fallthru
          _
        // Predicated region
        $region53: #{up_block_forward.1} parent=11 // pred_check
          %p407 = pneg %p305
        $region54: #{up_block_forward.1} parent=11 // pred_check_branch
          %409 = sbr.rel (%p407) target = $region56
        $region55: #{up_block_forward.1} parent=11 // pred_region
          _
        $region56: #{up_block_forward.1} parent=11 // pred_fallthru
          _
        // Predicated region
        $region57: #{up_block_forward.1} parent=11 // pred_check
          %p410 = pneg %p326
        $region58: #{up_block_forward.1} parent=11 // pred_check_branch
          %412 = sbr.rel (%p410) target = $region60
        $region59: #{up_block_forward.1} parent=11 // pred_region
          %s414 = ssub.s32 15616, 15616
          %415 = vsyncadd [#allocation5], %s414
          %s416 = sshll.u32 [#allocation4], 4
          %s417 = int_to_ptr.vmem [resolvable:$true] %s416
          %422 = dma.hbm_to_vmem [thread:$0]  %s13, 15616, %s417, [#allocation5], 256, 256, 16
        $region60: #{up_block_forward.1} parent=11 // pred_fallthru
          _
      $region12: #{up_block_forward.1} parent=5 // pred_fallthru
        _
      %p423 = scmp.lt.s32.totalorder %s22, 2
      // Predicated region
      $region61: #{up_block_forward.1} parent=5 // pred_check
        %p424 = pneg %p423
      $region62: #{up_block_forward.1} parent=5 // pred_check_branch
        %426 = sbr.rel (%p424) target = $region64
      $region63: #{up_block_forward.1} parent=5 // pred_region
        // Predicated region
        $region65: #{up_block_forward.1} parent=63 // pred_check
          %p427 = pneg %p42
        $region66: #{up_block_forward.1} parent=63 // pred_check_branch
          %429 = sbr.rel (%p427) target = $region68
        $region67: #{up_block_forward.1} parent=63 // pred_region
          %p430 = scmp.lt.s32.totalorder %s22, 1
          %s431 = scalar_select %p430, %s22, 1
          %s432 = smul.addr %s431, 4
          %s433 = scalar_lea.vmem %s0, %s432
        $region68: #{up_block_forward.1} parent=63 // pred_fallthru
          _
        // Predicated region
        $region69: #{up_block_forward.1} parent=63 // pred_check
          %p434 = pneg %p68
        $region70: #{up_block_forward.1} parent=63 // pred_check_branch
          %436 = sbr.rel (%p434) target = $region72
        $region71: #{up_block_forward.1} parent=63 // pred_region
          %p437 = scmp.lt.s32.totalorder %s22, 1
          %s438 = scalar_select %p437, %s22, 1
          %s439 = smul.addr %s438, 2
          %s440 = smul.addr %s439, 4
          %s441 = scalar_lea.vmem %s1, %s440
        $region72: #{up_block_forward.1} parent=63 // pred_fallthru
          _
      $region64: #{up_block_forward.1} parent=5 // pred_fallthru
        _
      %p442 = scmp.le.s32.totalorder 1, %s22
      %p443 = scmp.lt.s32.totalorder %s22, 3
      %p444 = pnand %p442, %p443
      %p445 = pneg %p444
      // Predicated region
      $region73: #{up_block_forward.1} parent=5 // pred_check
        _
      $region74: #{up_block_forward.1} parent=5 // pred_check_branch
        %447 = sbr.rel (%p444) target = $region76
      $region75: #{up_block_forward.1} parent=5 // pred_region
        %s448 = ssub.s32 %s22, 1
        // Predicated region
        $region77: #{up_block_forward.1} parent=75 // pred_check
          %p449 = pneg %p116
        $region78: #{up_block_forward.1} parent=75 // pred_check_branch
          %451 = sbr.rel (%p449) target = $region80
        $region79: #{up_block_forward.1} parent=75 // pred_region
          %452 = dma.done [#allocation3], 9216
        $region80: #{up_block_forward.1} parent=75 // pred_fallthru
          _
        // Predicated region
        $region81: #{up_block_forward.1} parent=75 // pred_check
          %p453 = pneg %p326
        $region82: #{up_block_forward.1} parent=75 // pred_check_branch
          %455 = sbr.rel (%p453) target = $region84
        $region83: #{up_block_forward.1} parent=75 // pred_region
          %456 = dma.done [#allocation5], 15616
        $region84: #{up_block_forward.1} parent=75 // pred_fallthru
          _
        %p457 = scmp.lt.s32.totalorder %s27, 1
        %s458 = scalar_select %p457, %s27, 1
        %s459 = smul.addr %s458, 4
        %s460 = scalar_lea.vmem %s0, %s459
        %p461 = pneg %p48
        %p462 = pneg %p45
        %p463 = scmp.lt.s32.totalorder %s27, 1
        %s464 = scalar_select %p463, %s27, 1
        %s465 = smul.addr %s464, 2
        %s466 = smul.addr %s465, 4
        %s467 = scalar_lea.vmem %s1, %s466
        %p468 = pneg %p74
        %p469 = pneg %p71
        %p470 = pneg %p95
        %p471 = pneg %p92
        %p472 = pneg %p116
        %p473 = pneg %p113
        %p474 = pneg %p137
        %p475 = pneg %p134
        %p476 = pneg %p158
        %p477 = pneg %p155
        %p478 = pneg %p179
        %p479 = pneg %p176
        %p480 = pneg %p200
        %p481 = pneg %p197
        %p482 = pneg %p221
        %p483 = pneg %p218
        %p484 = pneg %p242
        %p485 = pneg %p239
        %p486 = pneg %p263
        %p487 = pneg %p260
        %p488 = pneg %p284
        %p489 = pneg %p281
        %p490 = pneg %p305
        %p491 = pneg %p302
        %p492 = pneg %p326
        %p493 = pneg %p323
        %p494 = pneg %p352
        %p495 = pneg %p349
        %p496 = scmp.lt.s32.totalorder %s27, 1
        %s497 = scalar_select %p496, %s27, 1
        %s498 = smul.addr %s497, 2
        %s499 = smul.addr %s498, 8
        %s500 = scalar_lea.vmem %s14, %s499
        %p501 = scmp.lt.s32.totalorder %s27, 1
        %s502 = scalar_select %p501, %s27, 1
        %s503 = smul.addr %s502, 4
        %s504 = scalar_lea.vmem %s0, %s503
        %p505 = scmp.lt.s32.totalorder %s27, 1
        %s506 = scalar_select %p505, %s27, 1
        %s507 = smul.addr %s506, 2
        %s508 = smul.addr %s507, 4
        %s509 = scalar_lea.vmem %s1, %s508
        %p510 = scmp.lt.s32.totalorder %s27, 1
        %s511 = scalar_select %p510, %s27, 1
        %s512 = smul.addr %s511, 2
        %s513 = smul.addr %s512, 8
        %s514 = scalar_lea.vmem %s14, %s513
        %v515 = vld [vmem:[%s11] sm:$0xff]
        %v516 = vld [vmem:[%s504] sm:$0xf]
        %v517 = vld [vmem:[%s2] sm:$0xff]
        %v518 = vld [vmem:[%s2 + $0x8] sm:$0xff]
        %v519 = vld [vmem:[%s2 + $0x10] sm:$0xff]
        %v520 = vld [vmem:[%s2 + $0x18] sm:$0xff]
        %v521 = vld [vmem:[%s2 + $0x20] sm:$0xff]
        %v522 = vld [vmem:[%s2 + $0x28] sm:$0xff]
        %v523 = vld [vmem:[%s2 + $0x30] sm:$0xff]
        %v524 = vld [vmem:[%s2 + $0x38] sm:$0xff]
        %v525 = vld [vmem:[%s2 + $0x40] sm:$0xff]
        %v526 = vld [vmem:[%s2 + $0x48] sm:$0xff]
        %v527 = vld [vmem:[%s2 + $0x50] sm:$0xff]
        %v528 = vld [vmem:[%s2 + $0x58] sm:$0xff]
        %v529 = vld [vmem:[%s2 + $0x60] sm:$0xff]
        %v530 = vld [vmem:[%s2 + $0x68] sm:$0xff]
        %v531 = vld [vmem:[%s2 + $0x70] sm:$0xff]
        %v532 = vld [vmem:[%s2 + $0x78] sm:$0xff]
        %v533 = vld [vmem:[%s2 + $0x80] sm:$0xff]
        %v534 = vld [vmem:[%s2 + $0x88] sm:$0xff]
        %v535 = vld [vmem:[%s2 + $0x90] sm:$0xff]
        %v536 = vld [vmem:[%s2 + $0x98] sm:$0xff]
        %v537 = vld [vmem:[%s2 + $0xa0] sm:$0xff]
        %v538 = vld [vmem:[%s2 + $0xa8] sm:$0xff]
        %v539 = vld [vmem:[%s2 + $0xb0] sm:$0xff]
        %v540 = vld [vmem:[%s2 + $0xb8] sm:$0xff]
        %v541 = vld [vmem:[%s2 + $0xc0] sm:$0xff]
        %v542 = vld [vmem:[%s2 + $0xc8] sm:$0xff]
        %v543 = vld [vmem:[%s2 + $0xd0] sm:$0xff]
        %v544 = vld [vmem:[%s2 + $0xd8] sm:$0xff]
        %v545 = vld [vmem:[%s2 + $0xe0] sm:$0xff]
        %v546 = vld [vmem:[%s2 + $0xe8] sm:$0xff]
        %v547 = vld [vmem:[%s2 + $0xf0] sm:$0xff]
        %v548 = vld [vmem:[%s2 + $0xf8] sm:$0xff]
        %vm549 = vcmask 523264
        %v551 = vsel %vm549, %v516, 0
        %553 = vmatprep.subr.mxu0 %v518
        %554 = vmatpush1.msra.mxu0 %v517
        %555 = vmatprep.subr.mxu0 %v522
        %556 = vmatpush1.msra.mxu0 %v521
        %557 = vmatprep.subr.mxu0 %v526
        %558 = vmatpush1.msra.mxu0 %v525
        %559 = vmatprep.subr.mxu0 %v530
        %560 = vmatpush1.msra.mxu0 %v529
        %561 = vmatprep.subr.mxu0 %v534
        %562 = vmatpush1.msra.mxu0 %v533
        %563 = vmatprep.subr.mxu0 %v538
        %564 = vmatpush1.msra.mxu0 %v537
        %565 = vmatprep.subr.mxu0 %v542
        %566 = vmatpush1.msra.mxu0 %v541
        %567 = vmatprep.subr.mxu0 %v546
        %568 = vmatpush1.msra.mxu0 %v545
        %569 = vmatprep.subr.mxu0 0.0
        %570 = vmatpush1.msra.mxu0 0.0
        %571 = vmatprep.subr.mxu0 0.0
        %572 = vmatpush1.msra.mxu0 0.0
        %573 = vmatprep.subr.mxu0 0.0
        %574 = vmatpush1.msra.mxu0 0.0
        %575 = vmatprep.subr.mxu0 0.0
        %576 = vmatpush1.msra.mxu0 0.0
        %577 = vmatprep.subr.mxu0 0.0
        %578 = vmatpush1.msra.mxu0 0.0
        %579 = vmatprep.subr.mxu0 0.0
        %580 = vmatpush1.msra.mxu0 0.0
        %581 = vmatprep.subr.mxu0 0.0
        %582 = vmatpush1.msra.mxu0 0.0
        %583 = vmatprep.subr.mxu0 0.0
        %584 = vmatpush1.msra.mxu0 0.0
        %585 = vmatprep.subr.mxu0 0.0
        %586 = vmatpush1.msra.mxu0 0.0
        %587 = vmatprep.subr.mxu0 0.0
        %588 = vmatpush1.msra.mxu0 0.0
        %589 = vmatprep.subr.mxu0 0.0
        %590 = vmatpush1.msra.mxu0 0.0
        %591 = vmatprep.subr.mxu0 0.0
        %592 = vmatpush1.msra.mxu0 0.0
        %593 = vmatprep.subr.mxu0 0.0
        %594 = vmatpush1.msra.mxu0 0.0
        %595 = vmatprep.subr.mxu0 0.0
        %596 = vmatpush1.msra.mxu0 0.0
        %597 = vmatprep.subr.mxu0 0.0
        %598 = vmatpush1.msra.mxu0 0.0
        %599 = vmatprep.subr.mxu0 0.0
        %600 = vmatpush1.msra.mxu0 0.0
        %601 = vmatprep.subr.mxu0 0.0
        %602 = vmatpush1.msra.mxu0 0.0
        %603 = vmatprep.subr.mxu0 0.0
        %604 = vmatpush1.msra.mxu0 0.0
        %605 = vmatprep.subr.mxu0 0.0
        %606 = vmatpush1.msra.mxu0 0.0
        %607 = vmatprep.subr.mxu0 0.0
        %608 = vmatpush1.msra.mxu0 0.0
        %609 = vmatprep.subr.mxu0 0.0
        %610 = vmatpush1.msra.mxu0 0.0
        %611 = vmatprep.subr.mxu0 0.0
        %612 = vmatpush1.msra.mxu0 0.0
        %613 = vmatprep.subr.mxu0 0.0
        %614 = vmatpush1.msra.mxu0 0.0
        %615 = vmatprep.subr.mxu0 0.0
        %616 = vmatpush1.msra.mxu0 0.0
        %617 = vmatprep.mubr.f32.mxu0 0.0
        %618 = vmatmul.mubr.f32.gmra.mrb[0].mxu0 %v551
        %v619 = vpop.f32.mrb[0].mxu0
        %v620 = vadd.f32 0.0, %v619
        %v621 = vpop.f32.mrb[0].mxu0
        %v622 = vadd.f32 0.0, %v621
        %623 = vdwg.mxu0
        %624 = vmatprep.subr.mxu0 %v520
        %625 = vmatpush1.msra.mxu0 %v519
        %626 = vmatprep.subr.mxu0 %v524
        %627 = vmatpush1.msra.mxu0 %v523
        %628 = vmatprep.subr.mxu0 %v528
        %629 = vmatpush1.msra.mxu0 %v527
        %630 = vmatprep.subr.mxu0 %v532
        %631 = vmatpush1.msra.mxu0 %v531
        %632 = vmatprep.subr.mxu0 %v536
        %633 = vmatpush1.msra.mxu0 %v535
        %634 = vmatprep.subr.mxu0 %v540
        %635 = vmatpush1.msra.mxu0 %v539
        %636 = vmatprep.subr.mxu0 %v544
        %637 = vmatpush1.msra.mxu0 %v543
        %638 = vmatprep.subr.mxu0 %v548
        %639 = vmatpush1.msra.mxu0 %v547
        %640 = vmatprep.subr.mxu0 0.0
        %641 = vmatpush1.msra.mxu0 0.0
        %642 = vmatprep.subr.mxu0 0.0
        %643 = vmatpush1.msra.mxu0 0.0
        %644 = vmatprep.subr.mxu0 0.0
        %645 = vmatpush1.msra.mxu0 0.0
        %646 = vmatprep.subr.mxu0 0.0
        %647 = vmatpush1.msra.mxu0 0.0
        %648 = vmatprep.subr.mxu0 0.0
        %649 = vmatpush1.msra.mxu0 0.0
        %650 = vmatprep.subr.mxu0 0.0
        %651 = vmatpush1.msra.mxu0 0.0
        %652 = vmatprep.subr.mxu0 0.0
        %653 = vmatpush1.msra.mxu0 0.0
        %654 = vmatprep.subr.mxu0 0.0
        %655 = vmatpush1.msra.mxu0 0.0
        %656 = vmatprep.subr.mxu0 0.0
        %657 = vmatpush1.msra.mxu0 0.0
        %658 = vmatprep.subr.mxu0 0.0
        %659 = vmatpush1.msra.mxu0 0.0
        %660 = vmatprep.subr.mxu0 0.0
        %661 = vmatpush1.msra.mxu0 0.0
        %662 = vmatprep.subr.mxu0 0.0
        %663 = vmatpush1.msra.mxu0 0.0
        %664 = vmatprep.subr.mxu0 0.0
        %665 = vmatpush1.msra.mxu0 0.0
        %666 = vmatprep.subr.mxu0 0.0
        %667 = vmatpush1.msra.mxu0 0.0
        %668 = vmatprep.subr.mxu0 0.0
        %669 = vmatpush1.msra.mxu0 0.0
        %670 = vmatprep.subr.mxu0 0.0
        %671 = vmatpush1.msra.mxu0 0.0
        %672 = vmatprep.subr.mxu0 0.0
        %673 = vmatpush1.msra.mxu0 0.0
        %674 = vmatprep.subr.mxu0 0.0
        %675 = vmatpush1.msra.mxu0 0.0
        %676 = vmatprep.subr.mxu0 0.0
        %677 = vmatpush1.msra.mxu0 0.0
        %678 = vmatprep.subr.mxu0 0.0
        %679 = vmatpush1.msra.mxu0 0.0
        %680 = vmatprep.subr.mxu0 0.0
        %681 = vmatpush1.msra.mxu0 0.0
        %682 = vmatprep.subr.mxu0 0.0
        %683 = vmatpush1.msra.mxu0 0.0
        %684 = vmatprep.subr.mxu0 0.0
        %685 = vmatpush1.msra.mxu0 0.0
        %686 = vmatprep.subr.mxu0 0.0
        %687 = vmatpush1.msra.mxu0 0.0
        %688 = vmatprep.mubr.f32.mxu0 0.0
        %689 = vmatmul.mubr.f32.gmra.mrb[0].mxu0 %v551
        %v690 = vpop.f32.mrb[0].mxu0
        %v691 = vadd.f32 0.0, %v690
        %v692 = vpop.f32.mrb[0].mxu0
        %v693 = vadd.f32 0.0, %v692
        %694 = vdwg.mxu0
        %v695 = vld [vmem:[%s509] sm:$0x77]
        %v696 = vld [vmem:[#allocation2] sm:$0xff]
        %v697 = vld [vmem:[#allocation2 + $0x8] sm:$0xff]
        %v698 = vld [vmem:[#allocation2 + $0x10] sm:$0xff]
        %v699 = vld [vmem:[#allocation2 + $0x18] sm:$0xff]
        %v700 = vld [vmem:[#allocation2 + $0x20] sm:$0xff]
        %v701 = vld [vmem:[#allocation2 + $0x28] sm:$0xff]
        %v702 = vld [vmem:[#allocation2 + $0x30] sm:$0xff]
        %v703 = vld [vmem:[#allocation2 + $0x38] sm:$0xff]
        %v704 = vld [vmem:[#allocation2 + $0x40] sm:$0xff]
        %v705 = vld [vmem:[#allocation2 + $0x48] sm:$0xff]
        %v706 = vld [vmem:[#allocation2 + $0x50] sm:$0xff]
        %v707 = vld [vmem:[#allocation2 + $0x58] sm:$0xff]
        %v708 = vld [vmem:[#allocation2 + $0x60] sm:$0xff]
        %v709 = vld [vmem:[#allocation2 + $0x68] sm:$0xff]
        %v710 = vld [vmem:[#allocation2 + $0x70] sm:$0xff]
        %v711 = vld [vmem:[#allocation2 + $0x78] sm:$0xff]
        %v712 = vld [vmem:[#allocation2 + $0x80] sm:$0xff]
        %v713 = vld [vmem:[#allocation2 + $0x88] sm:$0xff]
        %v714 = vld [vmem:[#allocation2 + $0x90] sm:$0xff]
        %v715 = vld [vmem:[#allocation2 + $0x98] sm:$0xff]
        %v716 = vld [vmem:[#allocation2 + $0xa0] sm:$0xff]
        %v717 = vld [vmem:[#allocation2 + $0xa8] sm:$0xff]
        %v718 = vld [vmem:[#allocation2 + $0xb0] sm:$0xff]
        %v719 = vld [vmem:[#allocation2 + $0xb8] sm:$0xff]
        %v720 = vld [vmem:[#allocation2 + $0xc0] sm:$0xff]
        %v721 = vld [vmem:[#allocation2 + $0xc8] sm:$0xff]
        %v722 = vld [vmem:[#allocation2 + $0xd0] sm:$0xff]
        %v723 = vld [vmem:[#allocation2 + $0xd8] sm:$0xff]
        %v724 = vld [vmem:[#allocation2 + $0xe0] sm:$0xff]
        %v725 = vld [vmem:[#allocation2 + $0xe8] sm:$0xff]
        %v726 = vld [vmem:[#allocation2 + $0xf0] sm:$0xff]
        %v727 = vld [vmem:[#allocation2 + $0xf8] sm:$0xff]
        %v728 = vld [vmem:[#allocation2 + $0x100] sm:$0xff]
        %v729 = vld [vmem:[#allocation2 + $0x108] sm:$0xff]
        %v730 = vld [vmem:[#allocation2 + $0x110] sm:$0xff]
        %v731 = vld [vmem:[#allocation2 + $0x118] sm:$0xff]
        %v732 = vld [vmem:[#allocation2 + $0x120] sm:$0xff]
        %v733 = vld [vmem:[#allocation2 + $0x128] sm:$0xff]
        %v734 = vld [vmem:[#allocation2 + $0x130] sm:$0xff]
        %v735 = vld [vmem:[#allocation2 + $0x138] sm:$0xff]
        %v736 = vld [vmem:[#allocation2 + $0x140] sm:$0xff]
        %v737 = vld [vmem:[#allocation2 + $0x148] sm:$0xff]
        %v738 = vld [vmem:[#allocation2 + $0x150] sm:$0xff]
        %v739 = vld [vmem:[#allocation2 + $0x158] sm:$0xff]
        %v740 = vld [vmem:[#allocation2 + $0x160] sm:$0xff]
        %v741 = vld [vmem:[#allocation2 + $0x168] sm:$0xff]
        %v742 = vld [vmem:[#allocation2 + $0x170] sm:$0xff]
        %v743 = vld [vmem:[#allocation2 + $0x178] sm:$0xff]
        %v744 = vld [vmem:[#allocation2 + $0x180] sm:$0xff]
        %v745 = vld [vmem:[#allocation2 + $0x188] sm:$0xff]
        %v746 = vld [vmem:[#allocation2 + $0x190] sm:$0xff]
        %v747 = vld [vmem:[#allocation2 + $0x198] sm:$0xff]
        %v748 = vld [vmem:[#allocation2 + $0x1a0] sm:$0xff]
        %v749 = vld [vmem:[#allocation2 + $0x1a8] sm:$0xff]
        %v750 = vld [vmem:[#allocation2 + $0x1b0] sm:$0xff]
        %v751 = vld [vmem:[#allocation2 + $0x1b8] sm:$0xff]
        %v752 = vld [vmem:[#allocation2 + $0x1c0] sm:$0xff]
        %v753 = vld [vmem:[#allocation2 + $0x1c8] sm:$0xff]
        %v754 = vld [vmem:[#allocation2 + $0x1d0] sm:$0xff]
        %v755 = vld [vmem:[#allocation2 + $0x1d8] sm:$0xff]
        %v756 = vld [vmem:[#allocation2 + $0x1e0] sm:$0xff]
        %v757 = vld [vmem:[#allocation2 + $0x1e8] sm:$0xff]
        %v758 = vld [vmem:[#allocation2 + $0x1f0] sm:$0xff]
        %v759 = vld [vmem:[#allocation2 + $0x1f8] sm:$0xff]
        %v760 = vld [vmem:[#allocation2 + $0x200] sm:$0xff]
        %v761 = vld [vmem:[#allocation2 + $0x208] sm:$0xff]
        %v762 = vld [vmem:[#allocation2 + $0x210] sm:$0xff]
        %v763 = vld [vmem:[#allocation2 + $0x218] sm:$0xff]
        %v764 = vld [vmem:[#allocation2 + $0x220] sm:$0xff]
        %v765 = vld [vmem:[#allocation2 + $0x228] sm:$0xff]
        %v766 = vld [vmem:[#allocation2 + $0x230] sm:$0xff]
        %v767 = vld [vmem:[#allocation2 + $0x238] sm:$0xff]
        %v769 = vcombine.high %v695, %v695
        %vm770 = vcmask 130048
        %v771 = vsel %vm770, %v769, 0
        %773 = vmatprep.subr.mxu0 %v697
        %774 = vmatpush1.msra.mxu0 %v696
        %775 = vmatprep.subr.mxu0 %v701
        %776 = vmatpush1.msra.mxu0 %v700
        %777 = vmatprep.subr.mxu0 %v705
        %778 = vmatpush1.msra.mxu0 %v704
        %779 = vmatprep.subr.mxu0 %v709
        %780 = vmatpush1.msra.mxu0 %v708
        %781 = vmatprep.subr.mxu0 %v713
        %782 = vmatpush1.msra.mxu0 %v712
        %783 = vmatprep.subr.mxu0 %v717
        %784 = vmatpush1.msra.mxu0 %v716
        %785 = vmatprep.subr.mxu0 %v721
        %786 = vmatpush1.msra.mxu0 %v720
        %787 = vmatprep.subr.mxu0 %v725
        %788 = vmatpush1.msra.mxu0 %v724
        %789 = vmatprep.subr.mxu0 %v729
        %790 = vmatpush1.msra.mxu0 %v728
        %791 = vmatprep.subr.mxu0 %v733
        %792 = vmatpush1.msra.mxu0 %v732
        %793 = vmatprep.subr.mxu0 %v737
        %794 = vmatpush1.msra.mxu0 %v736
        %795 = vmatprep.subr.mxu0 %v741
        %796 = vmatpush1.msra.mxu0 %v740
        %797 = vmatprep.subr.mxu0 %v745
        %798 = vmatpush1.msra.mxu0 %v744
        %799 = vmatprep.subr.mxu0 %v749
        %800 = vmatpush1.msra.mxu0 %v748
        %801 = vmatprep.subr.mxu0 %v753
        %802 = vmatpush1.msra.mxu0 %v752
        %803 = vmatprep.subr.mxu0 %v757
        %804 = vmatpush1.msra.mxu0 %v756
        %805 = vmatprep.subr.mxu0 %v761
        %806 = vmatpush1.msra.mxu0 %v760
        %807 = vmatprep.subr.mxu0 %v765
        %808 = vmatpush1.msra.mxu0 %v764
        %809 = vmatprep.subr.mxu0 0.0
        %810 = vmatpush1.msra.mxu0 0.0
        %811 = vmatprep.subr.mxu0 0.0
        %812 = vmatpush1.msra.mxu0 0.0
        %813 = vmatprep.subr.mxu0 0.0
        %814 = vmatpush1.msra.mxu0 0.0
        %815 = vmatprep.subr.mxu0 0.0
        %816 = vmatpush1.msra.mxu0 0.0
        %817 = vmatprep.subr.mxu0 0.0
        %818 = vmatpush1.msra.mxu0 0.0
        %819 = vmatprep.subr.mxu0 0.0
        %820 = vmatpush1.msra.mxu0 0.0
        %821 = vmatprep.subr.mxu0 0.0
        %822 = vmatpush1.msra.mxu0 0.0
        %823 = vmatprep.subr.mxu0 0.0
        %824 = vmatpush1.msra.mxu0 0.0
        %825 = vmatprep.subr.mxu0 0.0
        %826 = vmatpush1.msra.mxu0 0.0
        %827 = vmatprep.subr.mxu0 0.0
        %828 = vmatpush1.msra.mxu0 0.0
        %829 = vmatprep.subr.mxu0 0.0
        %830 = vmatpush1.msra.mxu0 0.0
        %831 = vmatprep.subr.mxu0 0.0
        %832 = vmatpush1.msra.mxu0 0.0
        %833 = vmatprep.subr.mxu0 0.0
        %834 = vmatpush1.msra.mxu0 0.0
        %835 = vmatprep.subr.mxu0 0.0
        %836 = vmatpush1.msra.mxu0 0.0
        %837 = vmatprep.mubr.f32.mxu0 %v771
        %838 = vmatmul.mubr.f32.gmra.mrb[0].mxu0 %v695
        %v839 = vpop.f32.mrb[0].mxu0
        %v840 = vadd.f32 0.0, %v839
        %v841 = vpop.f32.mrb[0].mxu0
        %v842 = vadd.f32 0.0, %v841
        %843 = vdwg.mxu0
        %844 = vmatprep.subr.mxu0 %v699
        %845 = vmatpush1.msra.mxu0 %v698
        %846 = vmatprep.subr.mxu0 %v703
        %847 = vmatpush1.msra.mxu0 %v702
        %848 = vmatprep.subr.mxu0 %v707
        %849 = vmatpush1.msra.mxu0 %v706
        %850 = vmatprep.subr.mxu0 %v711
        %851 = vmatpush1.msra.mxu0 %v710
        %852 = vmatprep.subr.mxu0 %v715
        %853 = vmatpush1.msra.mxu0 %v714
        %854 = vmatprep.subr.mxu0 %v719
        %855 = vmatpush1.msra.mxu0 %v718
        %856 = vmatprep.subr.mxu0 %v723
        %857 = vmatpush1.msra.mxu0 %v722
        %858 = vmatprep.subr.mxu0 %v727
        %859 = vmatpush1.msra.mxu0 %v726
        %860 = vmatprep.subr.mxu0 %v731
        %861 = vmatpush1.msra.mxu0 %v730
        %862 = vmatprep.subr.mxu0 %v735
        %863 = vmatpush1.msra.mxu0 %v734
        %864 = vmatprep.subr.mxu0 %v739
        %865 = vmatpush1.msra.mxu0 %v738
        %866 = vmatprep.subr.mxu0 %v743
        %867 = vmatpush1.msra.mxu0 %v742
        %868 = vmatprep.subr.mxu0 %v747
        %869 = vmatpush1.msra.mxu0 %v746
        %870 = vmatprep.subr.mxu0 %v751
        %871 = vmatpush1.msra.mxu0 %v750
        %872 = vmatprep.subr.mxu0 %v755
        %873 = vmatpush1.msra.mxu0 %v754
        %874 = vmatprep.subr.mxu0 %v759
        %875 = vmatpush1.msra.mxu0 %v758
        %876 = vmatprep.subr.mxu0 %v763
        %877 = vmatpush1.msra.mxu0 %v762
        %878 = vmatprep.subr.mxu0 %v767
        %879 = vmatpush1.msra.mxu0 %v766
        %880 = vmatprep.subr.mxu0 0.0
        %881 = vmatpush1.msra.mxu0 0.0
        %882 = vmatprep.subr.mxu0 0.0
        %883 = vmatpush1.msra.mxu0 0.0
        %884 = vmatprep.subr.mxu0 0.0
        %885 = vmatpush1.msra.mxu0 0.0
        %886 = vmatprep.subr.mxu0 0.0
        %887 = vmatpush1.msra.mxu0 0.0
        %888 = vmatprep.subr.mxu0 0.0
        %889 = vmatpush1.msra.mxu0 0.0
        %890 = vmatprep.subr.mxu0 0.0
        %891 = vmatpush1.msra.mxu0 0.0
        %892 = vmatprep.subr.mxu0 0.0
        %893 = vmatpush1.msra.mxu0 0.0
        %894 = vmatprep.subr.mxu0 0.0
        %895 = vmatpush1.msra.mxu0 0.0
        %896 = vmatprep.subr.mxu0 0.0
        %897 = vmatpush1.msra.mxu0 0.0
        %898 = vmatprep.subr.mxu0 0.0
        %899 = vmatpush1.msra.mxu0 0.0
        %900 = vmatprep.subr.mxu0 0.0
        %901 = vmatpush1.msra.mxu0 0.0
        %902 = vmatprep.subr.mxu0 0.0
        %903 = vmatpush1.msra.mxu0 0.0
        %904 = vmatprep.subr.mxu0 0.0
        %905 = vmatpush1.msra.mxu0 0.0
        %906 = vmatprep.subr.mxu0 0.0
        %907 = vmatpush1.msra.mxu0 0.0
        %908 = vmatprep.mubr.f32.mxu0 %v771
        %909 = vmatmul.mubr.f32.gmra.mrb[0].mxu0 %v695
        %v910 = vpop.f32.mrb[0].mxu0
        %v911 = vadd.f32 0.0, %v910
        %v912 = vpop.f32.mrb[0].mxu0
        %v913 = vadd.f32 0.0, %v912
        %914 = vdwg.mxu0
        %v915 = vld [vmem:[%s4] sm:$0xff]
        %vm916 = vcmask 818176
        %v917 = vsel %vm916, %v693, 0.0
        %v922 = vrot.slane %v620, 4
        %v923 = vrot.slane %v622, 4
        %v924 = vrot.slane %v691, 4
        %v925 = vrot.slane %v917, 4
        %926 = vrot.lane.b32.xlu0 %v922, 127
        %v927 = vpop.permute.xlu0 %926
        %928 = vrot.lane.b32.xlu0 %v923, 127
        %v929 = vpop.permute.xlu0 %928
        %930 = vrot.lane.b32.xlu0 %v924, 127
        %v931 = vpop.permute.xlu0 %930
        %932 = vrot.lane.b32.xlu0 %v925, 127
        %v933 = vpop.permute.xlu0 %932
        %vm934 = vcmask 1039360
        %v935 = vsel %vm934, %v927, %v929
        %v936 = vsel %vm934, %v929, %v931
        %v937 = vsel %vm934, %v931, %v933
        %942 = vrot.lane.b32.xlu0 %v620, 126
        %v943 = vpop.permute.xlu0 %942
        %944 = vrot.lane.b32.xlu0 %v622, 126
        %v945 = vpop.permute.xlu0 %944
        %946 = vrot.lane.b32.xlu0 %v691, 126
        %v947 = vpop.permute.xlu0 %946
        %948 = vrot.lane.b32.xlu0 %v917, 126
        %v949 = vpop.permute.xlu0 %948
        %vm950 = vcmask 1031168
        %v951 = vsel %vm950, %v943, %v945
        %v952 = vsel %vm950, %v945, %v947
        %v953 = vsel %vm950, %v947, %v949
        %958 = vrot.lane.b32.xlu0 %v922, 106
        %v959 = vpop.permute.xlu0 %958
        %960 = vrot.lane.b32.xlu0 %v923, 106
        %v961 = vpop.permute.xlu0 %960
        %962 = vrot.lane.b32.xlu0 %v924, 106
        %v963 = vpop.permute.xlu0 %962
        %964 = vrot.lane.b32.xlu0 %v925, 106
        %v965 = vpop.permute.xlu0 %964
        %vm966 = vcmask 867328
        %v967 = vsel %vm966, %v959, %v961
        %v968 = vsel %vm966, %v961, %v963
        %v969 = vsel %vm966, %v963, %v965
        %974 = vrot.lane.b32.xlu0 %v620, 105
        %v975 = vpop.permute.xlu0 %974
        %976 = vrot.lane.b32.xlu0 %v622, 105
        %v977 = vpop.permute.xlu0 %976
        %978 = vrot.lane.b32.xlu0 %v691, 105
        %v979 = vpop.permute.xlu0 %978
        %980 = vrot.lane.b32.xlu0 %v917, 105
        %v981 = vpop.permute.xlu0 %980
        %vm982 = vcmask 859136
        %v983 = vsel %vm982, %v975, %v977
        %v984 = vsel %vm982, %v977, %v979
        %v985 = vsel %vm982, %v979, %v981
        %990 = vrot.lane.b32.xlu0 %v922, 104
        %v991 = vpop.permute.xlu0 %990
        %992 = vrot.lane.b32.xlu0 %v923, 104
        %v993 = vpop.permute.xlu0 %992
        %994 = vrot.lane.b32.xlu0 %v924, 104
        %v995 = vpop.permute.xlu0 %994
        %996 = vrot.lane.b32.xlu0 %v925, 104
        %v997 = vpop.permute.xlu0 %996
        %vm998 = vcmask 850944
        %v999 = vsel %vm998, %v991, %v993
        %v1000 = vsel %vm998, %v993, %v995
        %v1001 = vsel %vm998, %v995, %v997
        %1007 = vrot.lane.b32.xlu0 %v620, 84
        %v1008 = vpop.permute.xlu0 %1007
        %1009 = vrot.lane.b32.xlu0 %v622, 84
        %v1010 = vpop.permute.xlu0 %1009
        %1011 = vrot.lane.b32.xlu0 %v691, 84
        %v1012 = vpop.permute.xlu0 %1011
        %1013 = vrot.lane.b32.xlu0 %v917, 84
        %v1014 = vpop.permute.xlu0 %1013
        %1015 = vrot.lane.b32.xlu0 0.0, 84
        %v1016 = vpop.permute.xlu0 %1015
        %vm1017 = vcmask 687104
        %v1018 = vsel %vm1017, %v1008, %v1010
        %v1019 = vsel %vm1017, %v1010, %v1012
        %v1020 = vsel %vm1017, %v1012, %v1014
        %v1021 = vsel %vm1017, %v1014, %v1016
        %v1026 = vrot.slane 0.0, 4
        %1027 = vrot.lane.b32.xlu0 %v922, 83
        %v1028 = vpop.permute.xlu0 %1027
        %1029 = vrot.lane.b32.xlu0 %v923, 83
        %v1030 = vpop.permute.xlu0 %1029
        %1031 = vrot.lane.b32.xlu0 %v924, 83
        %v1032 = vpop.permute.xlu0 %1031
        %1033 = vrot.lane.b32.xlu0 %v925, 83
        %v1034 = vpop.permute.xlu0 %1033
        %1035 = vrot.lane.b32.xlu0 %v1026, 83
        %v1036 = vpop.permute.xlu0 %1035
        %vm1037 = vcmask 678912
        %v1038 = vsel %vm1037, %v1028, %v1030
        %v1039 = vsel %vm1037, %v1030, %v1032
        %v1040 = vsel %vm1037, %v1032, %v1034
        %v1041 = vsel %vm1037, %v1034, %v1036
        %1046 = vrot.lane.b32.xlu0 %v620, 82
        %v1047 = vpop.permute.xlu0 %1046
        %1048 = vrot.lane.b32.xlu0 %v622, 82
        %v1049 = vpop.permute.xlu0 %1048
        %1050 = vrot.lane.b32.xlu0 %v691, 82
        %v1051 = vpop.permute.xlu0 %1050
        %1052 = vrot.lane.b32.xlu0 %v917, 82
        %v1053 = vpop.permute.xlu0 %1052
        %1054 = vrot.lane.b32.xlu0 0.0, 82
        %v1055 = vpop.permute.xlu0 %1054
        %vm1056 = vcmask 670720
        %v1057 = vsel %vm1056, %v1047, %v1049
        %v1058 = vsel %vm1056, %v1049, %v1051
        %v1059 = vsel %vm1056, %v1051, %v1053
        %v1060 = vsel %vm1056, %v1053, %v1055
        %vm1061 = vcmask 1043456
        %v1062 = vsel %vm1061, %v620, %v935
        %v1063 = vsel %vm1061, %v622, %v936
        %v1064 = vsel %vm1061, %v691, %v937
        %v1065 = vsel %vm1061, %v917, %v933
        %v1066 = vsel %vm1061, %v951, %v967
        %v1067 = vsel %vm1061, %v952, %v968
        %v1068 = vsel %vm1061, %v953, %v969
        %v1069 = vsel %vm1061, %v949, %v965
        %v1070 = vsel %vm1061, %v983, %v999
        %v1071 = vsel %vm1061, %v984, %v1000
        %v1072 = vsel %vm1061, %v985, %v1001
        %v1073 = vsel %vm1061, %v981, %v997
        %v1074 = vsel %vm1061, %v1018, %v1038
        %v1075 = vsel %vm1061, %v1019, %v1039
        %v1076 = vsel %vm1061, %v1020, %v1040
        %v1077 = vsel %vm1061, %v1021, %v1041
        %1079 = vset.pattern.permute.xlu0 0
        %1080 = vperm.xlu0 %1079, %v515
        %v1081 = vpop.permute.xlu0 %1080
        %vm1083 = vcmask 293888
        %v1085 = vsel %vm1083, %v915, 0
        %v1087 = vsel %vm1061, %v1057, 0
        %v1089 = vsel %vm1061, %v1058, 0
        %v1091 = vsel %vm1061, %v1059, 0
        %v1093 = vsel %vm1061, %v1060, 0
        %1095 = vmatprep.subr.mxu0 %v1063
        %1096 = vmatpush1.msra.mxu0 %v1062
        %1097 = vmatprep.subr.mxu0 %v1067
        %1098 = vmatpush1.msra.mxu0 %v1066
        %1099 = vmatprep.subr.mxu0 %v1071
        %1100 = vmatpush1.msra.mxu0 %v1070
        %1101 = vmatprep.subr.mxu0 %v1075
        %1102 = vmatpush1.msra.mxu0 %v1074
        %1103 = vmatprep.subr.mxu0 %v1089
        %1104 = vmatpush1.msra.mxu0 %v1087
        %1105 = vmatprep.subr.mxu0 0.0
        %1106 = vmatpush1.msra.mxu0 0.0
        %1107 = vmatprep.subr.mxu0 0.0
        %1108 = vmatpush1.msra.mxu0 0.0
        %1109 = vmatprep.subr.mxu0 0.0
        %1110 = vmatpush1.msra.mxu0 0.0
        %1111 = vmatprep.subr.mxu0 0.0
        %1112 = vmatpush1.msra.mxu0 0.0
        %1113 = vmatprep.subr.mxu0 0.0
        %1114 = vmatpush1.msra.mxu0 0.0
        %1115 = vmatprep.subr.mxu0 0.0
        %1116 = vmatpush1.msra.mxu0 0.0
        %1117 = vmatprep.subr.mxu0 0.0
        %1118 = vmatpush1.msra.mxu0 0.0
        %1119 = vmatprep.subr.mxu0 0.0
        %1120 = vmatpush1.msra.mxu0 0.0
        %1121 = vmatprep.subr.mxu0 0.0
        %1122 = vmatpush1.msra.mxu0 0.0
        %1123 = vmatprep.subr.mxu0 0.0
        %1124 = vmatpush1.msra.mxu0 0.0
        %1125 = vmatprep.subr.mxu0 0.0
        %1126 = vmatpush1.msra.mxu0 0.0
        %1127 = vmatprep.subr.mxu0 0.0
        %1128 = vmatpush1.msra.mxu0 0.0
        %1129 = vmatprep.subr.mxu0 0.0
        %1130 = vmatpush1.msra.mxu0 0.0
        %1131 = vmatprep.subr.mxu0 0.0
        %1132 = vmatpush1.msra.mxu0 0.0
        %1133 = vmatprep.subr.mxu0 0.0
        %1134 = vmatpush1.msra.mxu0 0.0
        %1135 = vmatprep.subr.mxu0 0.0
        %1136 = vmatpush1.msra.mxu0 0.0
        %1137 = vmatprep.subr.mxu0 0.0
        %1138 = vmatpush1.msra.mxu0 0.0
        %1139 = vmatprep.subr.mxu0 0.0
        %1140 = vmatpush1.msra.mxu0 0.0
        %1141 = vmatprep.subr.mxu0 0.0
        %1142 = vmatpush1.msra.mxu0 0.0
        %1143 = vmatprep.subr.mxu0 0.0
        %1144 = vmatpush1.msra.mxu0 0.0
        %1145 = vmatprep.subr.mxu0 0.0
        %1146 = vmatpush1.msra.mxu0 0.0
        %1147 = vmatprep.subr.mxu0 0.0
        %1148 = vmatpush1.msra.mxu0 0.0
        %1149 = vmatprep.subr.mxu0 0.0
        %1150 = vmatpush1.msra.mxu0 0.0
        %1151 = vmatprep.subr.mxu0 0.0
        %1152 = vmatpush1.msra.mxu0 0.0
        %1153 = vmatprep.subr.mxu0 0.0
        %1154 = vmatpush1.msra.mxu0 0.0
        %1155 = vmatprep.subr.mxu0 0.0
        %1156 = vmatpush1.msra.mxu0 0.0
        %1157 = vmatprep.subr.mxu0 0.0
        %1158 = vmatpush1.msra.mxu0 0.0
        %1159 = vmatprep.mubr.f32.mxu0 0.0
        %1160 = vmatmul.mubr.f32.gmra.mrb[0].mxu0 %v1085
        %v1161 = vpop.f32.mrb[0].mxu0
        %v1162 = vadd.f32 %v1081, %v1161
        %v1163 = vpop.f32.mrb[0].mxu0
        %v1164 = vadd.f32 %v1081, %v1163
        %1165 = vdwg.mxu0
        %1166 = vmatprep.subr.mxu0 %v1065
        %1167 = vmatpush1.msra.mxu0 %v1064
        %1168 = vmatprep.subr.mxu0 %v1069
        %1169 = vmatpush1.msra.mxu0 %v1068
        %1170 = vmatprep.subr.mxu0 %v1073
        %1171 = vmatpush1.msra.mxu0 %v1072
        %1172 = vmatprep.subr.mxu0 %v1077
        %1173 = vmatpush1.msra.mxu0 %v1076
        %1174 = vmatprep.subr.mxu0 %v1093
        %1175 = vmatpush1.msra.mxu0 %v1091
        %1176 = vmatprep.subr.mxu0 0.0
        %1177 = vmatpush1.msra.mxu0 0.0
        %1178 = vmatprep.subr.mxu0 0.0
        %1179 = vmatpush1.msra.mxu0 0.0
        %1180 = vmatprep.subr.mxu0 0.0
        %1181 = vmatpush1.msra.mxu0 0.0
        %1182 = vmatprep.subr.mxu0 0.0
        %1183 = vmatpush1.msra.mxu0 0.0
        %1184 = vmatprep.subr.mxu0 0.0
        %1185 = vmatpush1.msra.mxu0 0.0
        %1186 = vmatprep.subr.mxu0 0.0
        %1187 = vmatpush1.msra.mxu0 0.0
        %1188 = vmatprep.subr.mxu0 0.0
        %1189 = vmatpush1.msra.mxu0 0.0
        %1190 = vmatprep.subr.mxu0 0.0
        %1191 = vmatpush1.msra.mxu0 0.0
        %1192 = vmatprep.subr.mxu0 0.0
        %1193 = vmatpush1.msra.mxu0 0.0
        %1194 = vmatprep.subr.mxu0 0.0
        %1195 = vmatpush1.msra.mxu0 0.0
        %1196 = vmatprep.subr.mxu0 0.0
        %1197 = vmatpush1.msra.mxu0 0.0
        %1198 = vmatprep.subr.mxu0 0.0
        %1199 = vmatpush1.msra.mxu0 0.0
        %1200 = vmatprep.subr.mxu0 0.0
        %1201 = vmatpush1.msra.mxu0 0.0
        %1202 = vmatprep.subr.mxu0 0.0
        %1203 = vmatpush1.msra.mxu0 0.0
        %1204 = vmatprep.subr.mxu0 0.0
        %1205 = vmatpush1.msra.mxu0 0.0
        %1206 = vmatprep.subr.mxu0 0.0
        %1207 = vmatpush1.msra.mxu0 0.0
        %1208 = vmatprep.subr.mxu0 0.0
        %1209 = vmatpush1.msra.mxu0 0.0
        %1210 = vmatprep.subr.mxu0 0.0
        %1211 = vmatpush1.msra.mxu0 0.0
        %1212 = vmatprep.subr.mxu0 0.0
        %1213 = vmatpush1.msra.mxu0 0.0
        %1214 = vmatprep.subr.mxu0 0.0
        %1215 = vmatpush1.msra.mxu0 0.0
        %1216 = vmatprep.subr.mxu0 0.0
        %1217 = vmatpush1.msra.mxu0 0.0
        %1218 = vmatprep.subr.mxu0 0.0
        %1219 = vmatpush1.msra.mxu0 0.0
        %1220 = vmatprep.subr.mxu0 0.0
        %1221 = vmatpush1.msra.mxu0 0.0
        %1222 = vmatprep.subr.mxu0 0.0
        %1223 = vmatpush1.msra.mxu0 0.0
        %1224 = vmatprep.subr.mxu0 0.0
        %1225 = vmatpush1.msra.mxu0 0.0
        %1226 = vmatprep.subr.mxu0 0.0
        %1227 = vmatpush1.msra.mxu0 0.0
        %1228 = vmatprep.subr.mxu0 0.0
        %1229 = vmatpush1.msra.mxu0 0.0
        %1230 = vmatprep.mubr.f32.mxu0 0.0
        %1231 = vmatmul.mubr.f32.gmra.mrb[0].mxu0 %v1085
        %v1232 = vpop.f32.mrb[0].mxu0
        %v1233 = vadd.f32 %v1081, %v1232
        %v1234 = vpop.f32.mrb[0].mxu0
        %v1235 = vadd.f32 %v1081, %v1234
        %1236 = vdwg.mxu0
        %v1237 = vld [vmem:[%s5] sm:$0xff]
        %v1238 = vsel %vm916, %v1235, 0.0
        %1243 = vrot.lane.b32.xlu0 %v1162, 127
        %v1244 = vpop.permute.xlu0 %1243
        %1245 = vrot.lane.b32.xlu0 %v1164, 127
        %v1246 = vpop.permute.xlu0 %1245
        %1247 = vrot.lane.b32.xlu0 %v1233, 127
        %v1248 = vpop.permute.xlu0 %1247
        %1249 = vrot.lane.b32.xlu0 %v1238, 127
        %v1250 = vpop.permute.xlu0 %1249
        %v1251 = vsel %vm934, %v1244, %v1246
        %v1252 = vsel %vm934, %v1246, %v1248
        %v1253 = vsel %vm934, %v1248, %v1250
        %1258 = vrot.lane.b32.xlu0 %v1162, 126
        %v1259 = vpop.permute.xlu0 %1258
        %1260 = vrot.lane.b32.xlu0 %v1164, 126
        %v1261 = vpop.permute.xlu0 %1260
        %1262 = vrot.lane.b32.xlu0 %v1233, 126
        %v1263 = vpop.permute.xlu0 %1262
        %1264 = vrot.lane.b32.xlu0 %v1238, 126
        %v1265 = vpop.permute.xlu0 %1264
        %v1266 = vsel %vm950, %v1259, %v1261
        %v1267 = vsel %vm950, %v1261, %v1263
        %v1268 = vsel %vm950, %v1263, %v1265
        %1273 = vrot.lane.b32.xlu0 %v1162, 106
        %v1274 = vpop.permute.xlu0 %1273
        %1275 = vrot.lane.b32.xlu0 %v1164, 106
        %v1276 = vpop.permute.xlu0 %1275
        %1277 = vrot.lane.b32.xlu0 %v1233, 106
        %v1278 = vpop.permute.xlu0 %1277
        %1279 = vrot.lane.b32.xlu0 %v1238, 106
        %v1280 = vpop.permute.xlu0 %1279
        %v1281 = vsel %vm966, %v1274, %v1276
        %v1282 = vsel %vm966, %v1276, %v1278
        %v1283 = vsel %vm966, %v1278, %v1280
        %1288 = vrot.lane.b32.xlu0 %v1162, 105
        %v1289 = vpop.permute.xlu0 %1288
        %1290 = vrot.lane.b32.xlu0 %v1164, 105
        %v1291 = vpop.permute.xlu0 %1290
        %1292 = vrot.lane.b32.xlu0 %v1233, 105
        %v1293 = vpop.permute.xlu0 %1292
        %1294 = vrot.lane.b32.xlu0 %v1238, 105
        %v1295 = vpop.permute.xlu0 %1294
        %v1296 = vsel %vm982, %v1289, %v1291
        %v1297 = vsel %vm982, %v1291, %v1293
        %v1298 = vsel %vm982, %v1293, %v1295
        %1303 = vrot.lane.b32.xlu0 %v1162, 104
        %v1304 = vpop.permute.xlu0 %1303
        %1305 = vrot.lane.b32.xlu0 %v1164, 104
        %v1306 = vpop.permute.xlu0 %1305
        %1307 = vrot.lane.b32.xlu0 %v1233, 104
        %v1308 = vpop.permute.xlu0 %1307
        %1309 = vrot.lane.b32.xlu0 %v1238, 104
        %v1310 = vpop.permute.xlu0 %1309
        %v1311 = vsel %vm998, %v1304, %v1306
        %v1312 = vsel %vm998, %v1306, %v1308
        %v1313 = vsel %vm998, %v1308, %v1310
        %1318 = vrot.lane.b32.xlu0 %v1162, 84
        %v1319 = vpop.permute.xlu0 %1318
        %1320 = vrot.lane.b32.xlu0 %v1164, 84
        %v1321 = vpop.permute.xlu0 %1320
        %1322 = vrot.lane.b32.xlu0 %v1233, 84
        %v1323 = vpop.permute.xlu0 %1322
        %1324 = vrot.lane.b32.xlu0 %v1238, 84
        %v1325 = vpop.permute.xlu0 %1324
        %v1326 = vsel %vm1017, %v1319, %v1321
        %v1327 = vsel %vm1017, %v1321, %v1323
        %v1328 = vsel %vm1017, %v1323, %v1325
        %v1329 = vsel %vm1017, %v1325, %v1016
        %1334 = vrot.lane.b32.xlu0 %v1162, 83
        %v1335 = vpop.permute.xlu0 %1334
        %1336 = vrot.lane.b32.xlu0 %v1164, 83
        %v1337 = vpop.permute.xlu0 %1336
        %1338 = vrot.lane.b32.xlu0 %v1233, 83
        %v1339 = vpop.permute.xlu0 %1338
        %1340 = vrot.lane.b32.xlu0 %v1238, 83
        %v1341 = vpop.permute.xlu0 %1340
        %1342 = vrot.lane.b32.xlu0 0.0, 83
        %v1343 = vpop.permute.xlu0 %1342
        %v1344 = vsel %vm1037, %v1335, %v1337
        %v1345 = vsel %vm1037, %v1337, %v1339
        %v1346 = vsel %vm1037, %v1339, %v1341
        %v1347 = vsel %vm1037, %v1341, %v1343
        %1352 = vrot.lane.b32.xlu0 %v1162, 82
        %v1353 = vpop.permute.xlu0 %1352
        %1354 = vrot.lane.b32.xlu0 %v1164, 82
        %v1355 = vpop.permute.xlu0 %1354
        %1356 = vrot.lane.b32.xlu0 %v1233, 82
        %v1357 = vpop.permute.xlu0 %1356
        %1358 = vrot.lane.b32.xlu0 %v1238, 82
        %v1359 = vpop.permute.xlu0 %1358
        %v1360 = vsel %vm1056, %v1353, %v1355
        %v1361 = vsel %vm1056, %v1355, %v1357
        %v1362 = vsel %vm1056, %v1357, %v1359
        %v1363 = vsel %vm1056, %v1359, %v1055
        %1368 = vset.pattern.permute.xlu0 1
        %1369 = vperm.xlu0 %1368, %v515
        %v1370 = vpop.permute.xlu0 %1369
        %vm1372 = vcmask 588800
        %v1374 = vsel %vm1372, %v1237, 0
        %1376 = vmatprep.subr.mxu0 %v1164
        %1377 = vmatpush1.msra.mxu0 %v1162
        %1378 = vmatprep.subr.mxu0 %v1252
        %1379 = vmatpush1.msra.mxu0 %v1251
        %1380 = vmatprep.subr.mxu0 %v1267
        %1381 = vmatpush1.msra.mxu0 %v1266
        %1382 = vmatprep.subr.mxu0 %v1282
        %1383 = vmatpush1.msra.mxu0 %v1281
        %1384 = vmatprep.subr.mxu0 %v1297
        %1385 = vmatpush1.msra.mxu0 %v1296
        %1386 = vmatprep.subr.mxu0 %v1312
        %1387 = vmatpush1.msra.mxu0 %v1311
        %1388 = vmatprep.subr.mxu0 %v1327
        %1389 = vmatpush1.msra.mxu0 %v1326
        %1390 = vmatprep.subr.mxu0 %v1345
        %1391 = vmatpush1.msra.mxu0 %v1344
        %1392 = vmatprep.subr.mxu0 %v1361
        %1393 = vmatpush1.msra.mxu0 %v1360
        %1394 = vmatprep.subr.mxu0 0.0
        %1395 = vmatpush1.msra.mxu0 0.0
        %1396 = vmatprep.subr.mxu0 0.0
        %1397 = vmatpush1.msra.mxu0 0.0
        %1398 = vmatprep.subr.mxu0 0.0
        %1399 = vmatpush1.msra.mxu0 0.0
        %1400 = vmatprep.subr.mxu0 0.0
        %1401 = vmatpush1.msra.mxu0 0.0
        %1402 = vmatprep.subr.mxu0 0.0
        %1403 = vmatpush1.msra.mxu0 0.0
        %1404 = vmatprep.subr.mxu0 0.0
        %1405 = vmatpush1.msra.mxu0 0.0
        %1406 = vmatprep.subr.mxu0 0.0
        %1407 = vmatpush1.msra.mxu0 0.0
        %1408 = vmatprep.subr.mxu0 0.0
        %1409 = vmatpush1.msra.mxu0 0.0
        %1410 = vmatprep.subr.mxu0 0.0
        %1411 = vmatpush1.msra.mxu0 0.0
        %1412 = vmatprep.subr.mxu0 0.0
        %1413 = vmatpush1.msra.mxu0 0.0
        %1414 = vmatprep.subr.mxu0 0.0
        %1415 = vmatpush1.msra.mxu0 0.0
        %1416 = vmatprep.subr.mxu0 0.0
        %1417 = vmatpush1.msra.mxu0 0.0
        %1418 = vmatprep.subr.mxu0 0.0
        %1419 = vmatpush1.msra.mxu0 0.0
        %1420 = vmatprep.subr.mxu0 0.0
        %1421 = vmatpush1.msra.mxu0 0.0
        %1422 = vmatprep.subr.mxu0 0.0
        %1423 = vmatpush1.msra.mxu0 0.0
        %1424 = vmatprep.subr.mxu0 0.0
        %1425 = vmatpush1.msra.mxu0 0.0
        %1426 = vmatprep.subr.mxu0 0.0
        %1427 = vmatpush1.msra.mxu0 0.0
        %1428 = vmatprep.subr.mxu0 0.0
        %1429 = vmatpush1.msra.mxu0 0.0
        %1430 = vmatprep.subr.mxu0 0.0
        %1431 = vmatpush1.msra.mxu0 0.0
        %1432 = vmatprep.subr.mxu0 0.0
        %1433 = vmatpush1.msra.mxu0 0.0
        %1434 = vmatprep.subr.mxu0 0.0
        %1435 = vmatpush1.msra.mxu0 0.0
        %1436 = vmatprep.subr.mxu0 0.0
        %1437 = vmatpush1.msra.mxu0 0.0
        %1438 = vmatprep.subr.mxu0 0.0
        %1439 = vmatpush1.msra.mxu0 0.0
        %1440 = vmatprep.mubr.f32.mxu0 0.0
        %1441 = vmatmul.mubr.f32.gmra.mrb[0].mxu0 %v1374
        %v1442 = vpop.f32.mrb[0].mxu0
        %v1443 = vadd.f32 %v1370, %v1442
        %v1444 = vpop.f32.mrb[0].mxu0
        %v1445 = vadd.f32 %v1370, %v1444
        %1446 = vdwg.mxu0
        %1447 = vmatprep.subr.mxu0 %v1238
        %1448 = vmatpush1.msra.mxu0 %v1233
        %1449 = vmatprep.subr.mxu0 %v1250
        %1450 = vmatpush1.msra.mxu0 %v1253
        %1451 = vmatprep.subr.mxu0 %v1265
        %1452 = vmatpush1.msra.mxu0 %v1268
        %1453 = vmatprep.subr.mxu0 %v1280
        %1454 = vmatpush1.msra.mxu0 %v1283
        %1455 = vmatprep.subr.mxu0 %v1295
        %1456 = vmatpush1.msra.mxu0 %v1298
        %1457 = vmatprep.subr.mxu0 %v1310
        %1458 = vmatpush1.msra.mxu0 %v1313
        %1459 = vmatprep.subr.mxu0 %v1329
        %1460 = vmatpush1.msra.mxu0 %v1328
        %1461 = vmatprep.subr.mxu0 %v1347
        %1462 = vmatpush1.msra.mxu0 %v1346
        %1463 = vmatprep.subr.mxu0 %v1363
        %1464 = vmatpush1.msra.mxu0 %v1362
        %1465 = vmatprep.subr.mxu0 0.0
        %1466 = vmatpush1.msra.mxu0 0.0
        %1467 = vmatprep.subr.mxu0 0.0
        %1468 = vmatpush1.msra.mxu0 0.0
        %1469 = vmatprep.subr.mxu0 0.0
        %1470 = vmatpush1.msra.mxu0 0.0
        %1471 = vmatprep.subr.mxu0 0.0
        %1472 = vmatpush1.msra.mxu0 0.0
        %1473 = vmatprep.subr.mxu0 0.0
        %1474 = vmatpush1.msra.mxu0 0.0
        %1475 = vmatprep.subr.mxu0 0.0
        %1476 = vmatpush1.msra.mxu0 0.0
        %1477 = vmatprep.subr.mxu0 0.0
        %1478 = vmatpush1.msra.mxu0 0.0
        %1479 = vmatprep.subr.mxu0 0.0
        %1480 = vmatpush1.msra.mxu0 0.0
        %1481 = vmatprep.subr.mxu0 0.0
        %1482 = vmatpush1.msra.mxu0 0.0
        %1483 = vmatprep.subr.mxu0 0.0
        %1484 = vmatpush1.msra.mxu0 0.0
        %1485 = vmatprep.subr.mxu0 0.0
        %1486 = vmatpush1.msra.mxu0 0.0
        %1487 = vmatprep.subr.mxu0 0.0
        %1488 = vmatpush1.msra.mxu0 0.0
        %1489 = vmatprep.subr.mxu0 0.0
        %1490 = vmatpush1.msra.mxu0 0.0
        %1491 = vmatprep.subr.mxu0 0.0
        %1492 = vmatpush1.msra.mxu0 0.0
        %1493 = vmatprep.subr.mxu0 0.0
        %1494 = vmatpush1.msra.mxu0 0.0
        %1495 = vmatprep.subr.mxu0 0.0
        %1496 = vmatpush1.msra.mxu0 0.0
        %1497 = vmatprep.subr.mxu0 0.0
        %1498 = vmatpush1.msra.mxu0 0.0
        %1499 = vmatprep.subr.mxu0 0.0
        %1500 = vmatpush1.msra.mxu0 0.0
        %1501 = vmatprep.subr.mxu0 0.0
        %1502 = vmatpush1.msra.mxu0 0.0
        %1503 = vmatprep.subr.mxu0 0.0
        %1504 = vmatpush1.msra.mxu0 0.0
        %1505 = vmatprep.subr.mxu0 0.0
        %1506 = vmatpush1.msra.mxu0 0.0
        %1507 = vmatprep.subr.mxu0 0.0
        %1508 = vmatpush1.msra.mxu0 0.0
        %1509 = vmatprep.subr.mxu0 0.0
        %1510 = vmatpush1.msra.mxu0 0.0
        %1511 = vmatprep.mubr.f32.mxu0 0.0
        %1512 = vmatmul.mubr.f32.gmra.mrb[0].mxu0 %v1374
        %v1513 = vpop.f32.mrb[0].mxu0
        %v1514 = vadd.f32 %v1370, %v1513
        %v1515 = vpop.f32.mrb[0].mxu0
        %v1516 = vadd.f32 %v1370, %v1515
        %1517 = vdwg.mxu0
        %v1518 = vmax.f32 %v1443, 0.0
        %v1519 = vmax.f32 %v1445, 0.0
        %v1520 = vmax.f32 %v1514, 0.0
        %v1521 = vmax.f32 %v1516, 0.0
        %v1522 = vld [vmem:[%s6] sm:$0xff]
        %v1523 = vsel %vm916, %v1521, 0.0
        %1528 = vrot.lane.b32.xlu0 %v1518, 127
        %v1529 = vpop.permute.xlu0 %1528
        %1530 = vrot.lane.b32.xlu0 %v1519, 127
        %v1531 = vpop.permute.xlu0 %1530
        %1532 = vrot.lane.b32.xlu0 %v1520, 127
        %v1533 = vpop.permute.xlu0 %1532
        %1534 = vrot.lane.b32.xlu0 %v1523, 127
        %v1535 = vpop.permute.xlu0 %1534
        %v1536 = vsel %vm934, %v1529, %v1531
        %v1537 = vsel %vm934, %v1531, %v1533
        %v1538 = vsel %vm934, %v1533, %v1535
        %1543 = vrot.lane.b32.xlu0 %v1518, 126
        %v1544 = vpop.permute.xlu0 %1543
        %1545 = vrot.lane.b32.xlu0 %v1519, 126
        %v1546 = vpop.permute.xlu0 %1545
        %1547 = vrot.lane.b32.xlu0 %v1520, 126
        %v1548 = vpop.permute.xlu0 %1547
        %1549 = vrot.lane.b32.xlu0 %v1523, 126
        %v1550 = vpop.permute.xlu0 %1549
        %v1551 = vsel %vm950, %v1544, %v1546
        %v1552 = vsel %vm950, %v1546, %v1548
        %v1553 = vsel %vm950, %v1548, %v1550
        %1558 = vrot.lane.b32.xlu0 %v1518, 106
        %v1559 = vpop.permute.xlu0 %1558
        %1560 = vrot.lane.b32.xlu0 %v1519, 106
        %v1561 = vpop.permute.xlu0 %1560
        %1562 = vrot.lane.b32.xlu0 %v1520, 106
        %v1563 = vpop.permute.xlu0 %1562
        %1564 = vrot.lane.b32.xlu0 %v1523, 106
        %v1565 = vpop.permute.xlu0 %1564
        %v1566 = vsel %vm966, %v1559, %v1561
        %v1567 = vsel %vm966, %v1561, %v1563
        %v1568 = vsel %vm966, %v1563, %v1565
        %1573 = vrot.lane.b32.xlu0 %v1518, 105
        %v1574 = vpop.permute.xlu0 %1573
        %1575 = vrot.lane.b32.xlu0 %v1519, 105
        %v1576 = vpop.permute.xlu0 %1575
        %1577 = vrot.lane.b32.xlu0 %v1520, 105
        %v1578 = vpop.permute.xlu0 %1577
        %1579 = vrot.lane.b32.xlu0 %v1523, 105
        %v1580 = vpop.permute.xlu0 %1579
        %v1581 = vsel %vm982, %v1574, %v1576
        %v1582 = vsel %vm982, %v1576, %v1578
        %v1583 = vsel %vm982, %v1578, %v1580
        %1588 = vrot.lane.b32.xlu0 %v1518, 104
        %v1589 = vpop.permute.xlu0 %1588
        %1590 = vrot.lane.b32.xlu0 %v1519, 104
        %v1591 = vpop.permute.xlu0 %1590
        %1592 = vrot.lane.b32.xlu0 %v1520, 104
        %v1593 = vpop.permute.xlu0 %1592
        %1594 = vrot.lane.b32.xlu0 %v1523, 104
        %v1595 = vpop.permute.xlu0 %1594
        %v1596 = vsel %vm998, %v1589, %v1591
        %v1597 = vsel %vm998, %v1591, %v1593
        %v1598 = vsel %vm998, %v1593, %v1595
        %1603 = vrot.lane.b32.xlu0 %v1518, 84
        %v1604 = vpop.permute.xlu0 %1603
        %1605 = vrot.lane.b32.xlu0 %v1519, 84
        %v1606 = vpop.permute.xlu0 %1605
        %1607 = vrot.lane.b32.xlu0 %v1520, 84
        %v1608 = vpop.permute.xlu0 %1607
        %1609 = vrot.lane.b32.xlu0 %v1523, 84
        %v1610 = vpop.permute.xlu0 %1609
        %v1611 = vsel %vm1017, %v1604, %v1606
        %v1612 = vsel %vm1017, %v1606, %v1608
        %v1613 = vsel %vm1017, %v1608, %v1610
        %v1614 = vsel %vm1017, %v1610, %v1016
        %1619 = vrot.lane.b32.xlu0 %v1518, 83
        %v1620 = vpop.permute.xlu0 %1619
        %1621 = vrot.lane.b32.xlu0 %v1519, 83
        %v1622 = vpop.permute.xlu0 %1621
        %1623 = vrot.lane.b32.xlu0 %v1520, 83
        %v1624 = vpop.permute.xlu0 %1623
        %1625 = vrot.lane.b32.xlu0 %v1523, 83
        %v1626 = vpop.permute.xlu0 %1625
        %v1627 = vsel %vm1037, %v1620, %v1622
        %v1628 = vsel %vm1037, %v1622, %v1624
        %v1629 = vsel %vm1037, %v1624, %v1626
        %v1630 = vsel %vm1037, %v1626, %v1343
        %1635 = vrot.lane.b32.xlu0 %v1518, 82
        %v1636 = vpop.permute.xlu0 %1635
        %1637 = vrot.lane.b32.xlu0 %v1519, 82
        %v1638 = vpop.permute.xlu0 %1637
        %1639 = vrot.lane.b32.xlu0 %v1520, 82
        %v1640 = vpop.permute.xlu0 %1639
        %1641 = vrot.lane.b32.xlu0 %v1523, 82
        %v1642 = vpop.permute.xlu0 %1641
        %v1643 = vsel %vm1056, %v1636, %v1638
        %v1644 = vsel %vm1056, %v1638, %v1640
        %v1645 = vsel %vm1056, %v1640, %v1642
        %v1646 = vsel %vm1056, %v1642, %v1055
        %1651 = vset.pattern.permute.xlu0 2
        %1652 = vperm.xlu0 %1651, %v515
        %v1653 = vpop.permute.xlu0 %1652
        %v1656 = vsel %vm1372, %v1522, 0
        %1658 = vmatprep.subr.mxu0 %v1519
        %1659 = vmatpush1.msra.mxu0 %v1518
        %1660 = vmatprep.subr.mxu0 %v1537
        %1661 = vmatpush1.msra.mxu0 %v1536
        %1662 = vmatprep.subr.mxu0 %v1552
        %1663 = vmatpush1.msra.mxu0 %v1551
        %1664 = vmatprep.subr.mxu0 %v1567
        %1665 = vmatpush1.msra.mxu0 %v1566
        %1666 = vmatprep.subr.mxu0 %v1582
        %1667 = vmatpush1.msra.mxu0 %v1581
        %1668 = vmatprep.subr.mxu0 %v1597
        %1669 = vmatpush1.msra.mxu0 %v1596
        %1670 = vmatprep.subr.mxu0 %v1612
        %1671 = vmatpush1.msra.mxu0 %v1611
        %1672 = vmatprep.subr.mxu0 %v1628
        %1673 = vmatpush1.msra.mxu0 %v1627
        %1674 = vmatprep.subr.mxu0 %v1644
        %1675 = vmatpush1.msra.mxu0 %v1643
        %1676 = vmatprep.subr.mxu0 0.0
        %1677 = vmatpush1.msra.mxu0 0.0
        %1678 = vmatprep.subr.mxu0 0.0
        %1679 = vmatpush1.msra.mxu0 0.0
        %1680 = vmatprep.subr.mxu0 0.0
        %1681 = vmatpush1.msra.mxu0 0.0
        %1682 = vmatprep.subr.mxu0 0.0
        %1683 = vmatpush1.msra.mxu0 0.0
        %1684 = vmatprep.subr.mxu0 0.0
        %1685 = vmatpush1.msra.mxu0 0.0
        %1686 = vmatprep.subr.mxu0 0.0
        %1687 = vmatpush1.msra.mxu0 0.0
        %1688 = vmatprep.subr.mxu0 0.0
        %1689 = vmatpush1.msra.mxu0 0.0
        %1690 = vmatprep.subr.mxu0 0.0
        %1691 = vmatpush1.msra.mxu0 0.0
        %1692 = vmatprep.subr.mxu0 0.0
        %1693 = vmatpush1.msra.mxu0 0.0
        %1694 = vmatprep.subr.mxu0 0.0
        %1695 = vmatpush1.msra.mxu0 0.0
        %1696 = vmatprep.subr.mxu0 0.0
        %1697 = vmatpush1.msra.mxu0 0.0
        %1698 = vmatprep.subr.mxu0 0.0
        %1699 = vmatpush1.msra.mxu0 0.0
        %1700 = vmatprep.subr.mxu0 0.0
        %1701 = vmatpush1.msra.mxu0 0.0
        %1702 = vmatprep.subr.mxu0 0.0
        %1703 = vmatpush1.msra.mxu0 0.0
        %1704 = vmatprep.subr.mxu0 0.0
        %1705 = vmatpush1.msra.mxu0 0.0
        %1706 = vmatprep.subr.mxu0 0.0
        %1707 = vmatpush1.msra.mxu0 0.0
        %1708 = vmatprep.subr.mxu0 0.0
        %1709 = vmatpush1.msra.mxu0 0.0
        %1710 = vmatprep.subr.mxu0 0.0
        %1711 = vmatpush1.msra.mxu0 0.0
        %1712 = vmatprep.subr.mxu0 0.0
        %1713 = vmatpush1.msra.mxu0 0.0
        %1714 = vmatprep.subr.mxu0 0.0
        %1715 = vmatpush1.msra.mxu0 0.0
        %1716 = vmatprep.subr.mxu0 0.0
        %1717 = vmatpush1.msra.mxu0 0.0
        %1718 = vmatprep.subr.mxu0 0.0
        %1719 = vmatpush1.msra.mxu0 0.0
        %1720 = vmatprep.subr.mxu0 0.0
        %1721 = vmatpush1.msra.mxu0 0.0
        %1722 = vmatprep.mubr.f32.mxu0 0.0
        %1723 = vmatmul.mubr.f32.gmra.mrb[0].mxu0 %v1656
        %v1724 = vpop.f32.mrb[0].mxu0
        %v1725 = vadd.f32 %v1653, %v1724
        %v1726 = vpop.f32.mrb[0].mxu0
        %v1727 = vadd.f32 %v1653, %v1726
        %1728 = vdwg.mxu0
        %1729 = vmatprep.subr.mxu0 %v1523
        %1730 = vmatpush1.msra.mxu0 %v1520
        %1731 = vmatprep.subr.mxu0 %v1535
        %1732 = vmatpush1.msra.mxu0 %v1538
        %1733 = vmatprep.subr.mxu0 %v1550
        %1734 = vmatpush1.msra.mxu0 %v1553
        %1735 = vmatprep.subr.mxu0 %v1565
        %1736 = vmatpush1.msra.mxu0 %v1568
        %1737 = vmatprep.subr.mxu0 %v1580
        %1738 = vmatpush1.msra.mxu0 %v1583
        %1739 = vmatprep.subr.mxu0 %v1595
        %1740 = vmatpush1.msra.mxu0 %v1598
        %1741 = vmatprep.subr.mxu0 %v1614
        %1742 = vmatpush1.msra.mxu0 %v1613
        %1743 = vmatprep.subr.mxu0 %v1630
        %1744 = vmatpush1.msra.mxu0 %v1629
        %1745 = vmatprep.subr.mxu0 %v1646
        %1746 = vmatpush1.msra.mxu0 %v1645
        %1747 = vmatprep.subr.mxu0 0.0
        %1748 = vmatpush1.msra.mxu0 0.0
        %1749 = vmatprep.subr.mxu0 0.0
        %1750 = vmatpush1.msra.mxu0 0.0
        %1751 = vmatprep.subr.mxu0 0.0
        %1752 = vmatpush1.msra.mxu0 0.0
        %1753 = vmatprep.subr.mxu0 0.0
        %1754 = vmatpush1.msra.mxu0 0.0
        %1755 = vmatprep.subr.mxu0 0.0
        %1756 = vmatpush1.msra.mxu0 0.0
        %1757 = vmatprep.subr.mxu0 0.0
        %1758 = vmatpush1.msra.mxu0 0.0
        %1759 = vmatprep.subr.mxu0 0.0
        %1760 = vmatpush1.msra.mxu0 0.0
        %1761 = vmatprep.subr.mxu0 0.0
        %1762 = vmatpush1.msra.mxu0 0.0
        %1763 = vmatprep.subr.mxu0 0.0
        %1764 = vmatpush1.msra.mxu0 0.0
        %1765 = vmatprep.subr.mxu0 0.0
        %1766 = vmatpush1.msra.mxu0 0.0
        %1767 = vmatprep.subr.mxu0 0.0
        %1768 = vmatpush1.msra.mxu0 0.0
        %1769 = vmatprep.subr.mxu0 0.0
        %1770 = vmatpush1.msra.mxu0 0.0
        %1771 = vmatprep.subr.mxu0 0.0
        %1772 = vmatpush1.msra.mxu0 0.0
        %1773 = vmatprep.subr.mxu0 0.0
        %1774 = vmatpush1.msra.mxu0 0.0
        %1775 = vmatprep.subr.mxu0 0.0
        %1776 = vmatpush1.msra.mxu0 0.0
        %1777 = vmatprep.subr.mxu0 0.0
        %1778 = vmatpush1.msra.mxu0 0.0
        %1779 = vmatprep.subr.mxu0 0.0
        %1780 = vmatpush1.msra.mxu0 0.0
        %1781 = vmatprep.subr.mxu0 0.0
        %1782 = vmatpush1.msra.mxu0 0.0
        %1783 = vmatprep.subr.mxu0 0.0
        %1784 = vmatpush1.msra.mxu0 0.0
        %1785 = vmatprep.subr.mxu0 0.0
        %1786 = vmatpush1.msra.mxu0 0.0
        %1787 = vmatprep.subr.mxu0 0.0
        %1788 = vmatpush1.msra.mxu0 0.0
        %1789 = vmatprep.subr.mxu0 0.0
        %1790 = vmatpush1.msra.mxu0 0.0
        %1791 = vmatprep.subr.mxu0 0.0
        %1792 = vmatpush1.msra.mxu0 0.0
        %1793 = vmatprep.mubr.f32.mxu0 0.0
        %1794 = vmatmul.mubr.f32.gmra.mrb[0].mxu0 %v1656
        %v1795 = vpop.f32.mrb[0].mxu0
        %v1796 = vadd.f32 %v1653, %v1795
        %v1797 = vpop.f32.mrb[0].mxu0
        %v1798 = vadd.f32 %v1653, %v1797
        %1799 = vdwg.mxu0
        %v1800 = vmax.f32 %v1725, 0.0
        %v1801 = vmax.f32 %v1727, 0.0
        %v1802 = vmax.f32 %v1796, 0.0
        %v1803 = vmax.f32 %v1798, 0.0
        %v1804 = vld [vmem:[%s12] sm:$0xf]
        %v1806 = vlaneseq
        %v1807 = vshrl.u32 %v1806, 7
        %v1808 = vsub.s32 0, %v1807
        %v1809 = vrot.slane %v1804, %v1808
        %v1810 = vlaneseq
        %v1811 = vshrl.u32 %v1810, 7
        %v1812 = vsub.s32 1, %v1811
        %v1813 = vrot.slane %v1804, %v1812
        %v1814 = vlaneseq
        %v1815 = vshrl.u32 %v1814, 7
        %v1816 = vsub.s32 2, %v1815
        %v1817 = vrot.slane %v1804, %v1816
        %v1818 = vlaneseq
        %v1819 = vshrl.u32 %v1818, 7
        %v1820 = vsub.s32 3, %v1819
        %v1821 = vrot.slane %v1804, %v1820
        %v1826 = vmul.f32 %v1800, %v1809
        %v1827 = vmul.f32 %v1801, %v1813
        %v1828 = vmul.f32 %v1802, %v1817
        %v1829 = vmul.f32 %v1803, %v1821
        %v1830 = vld [vmem:[%s7] sm:$0xff]
        %v1831 = vld [vmem:[%s7 + $0x8] sm:$0xff]
        %v1832 = vsel %vm916, %v1829, 0.0
        %1837 = vrot.lane.b32.xlu0 %v1826, 127
        %v1838 = vpop.permute.xlu0 %1837
        %1839 = vrot.lane.b32.xlu0 %v1827, 127
        %v1840 = vpop.permute.xlu0 %1839
        %1841 = vrot.lane.b32.xlu0 %v1828, 127
        %v1842 = vpop.permute.xlu0 %1841
        %1843 = vrot.lane.b32.xlu0 %v1832, 127
        %v1844 = vpop.permute.xlu0 %1843
        %v1845 = vsel %vm934, %v1838, %v1840
        %v1846 = vsel %vm934, %v1840, %v1842
        %v1847 = vsel %vm934, %v1842, %v1844
        %1852 = vrot.lane.b32.xlu0 %v1826, 126
        %v1853 = vpop.permute.xlu0 %1852
        %1854 = vrot.lane.b32.xlu0 %v1827, 126
        %v1855 = vpop.permute.xlu0 %1854
        %1856 = vrot.lane.b32.xlu0 %v1828, 126
        %v1857 = vpop.permute.xlu0 %1856
        %1858 = vrot.lane.b32.xlu0 %v1832, 126
        %v1859 = vpop.permute.xlu0 %1858
        %v1860 = vsel %vm950, %v1853, %v1855
        %v1861 = vsel %vm950, %v1855, %v1857
        %v1862 = vsel %vm950, %v1857, %v1859
        %1867 = vrot.lane.b32.xlu0 %v1826, 125
        %v1868 = vpop.permute.xlu0 %1867
        %1869 = vrot.lane.b32.xlu0 %v1827, 125
        %v1870 = vpop.permute.xlu0 %1869
        %1871 = vrot.lane.b32.xlu0 %v1828, 125
        %v1872 = vpop.permute.xlu0 %1871
        %1873 = vrot.lane.b32.xlu0 %v1832, 125
        %v1874 = vpop.permute.xlu0 %1873
        %vm1875 = vcmask 1022976
        %v1876 = vsel %vm1875, %v1868, %v1870
        %v1877 = vsel %vm1875, %v1870, %v1872
        %v1878 = vsel %vm1875, %v1872, %v1874
        %1883 = vrot.lane.b32.xlu0 %v1826, 124
        %v1884 = vpop.permute.xlu0 %1883
        %1885 = vrot.lane.b32.xlu0 %v1827, 124
        %v1886 = vpop.permute.xlu0 %1885
        %1887 = vrot.lane.b32.xlu0 %v1828, 124
        %v1888 = vpop.permute.xlu0 %1887
        %1889 = vrot.lane.b32.xlu0 %v1832, 124
        %v1890 = vpop.permute.xlu0 %1889
        %vm1891 = vcmask 1014784
        %v1892 = vsel %vm1891, %v1884, %v1886
        %v1893 = vsel %vm1891, %v1886, %v1888
        %v1894 = vsel %vm1891, %v1888, %v1890
        %1899 = vrot.lane.b32.xlu0 %v1826, 106
        %v1900 = vpop.permute.xlu0 %1899
        %1901 = vrot.lane.b32.xlu0 %v1827, 106
        %v1902 = vpop.permute.xlu0 %1901
        %1903 = vrot.lane.b32.xlu0 %v1828, 106
        %v1904 = vpop.permute.xlu0 %1903
        %1905 = vrot.lane.b32.xlu0 %v1832, 106
        %v1906 = vpop.permute.xlu0 %1905
        %v1907 = vsel %vm966, %v1900, %v1902
        %v1908 = vsel %vm966, %v1902, %v1904
        %v1909 = vsel %vm966, %v1904, %v1906
        %1914 = vrot.lane.b32.xlu0 %v1826, 105
        %v1915 = vpop.permute.xlu0 %1914
        %1916 = vrot.lane.b32.xlu0 %v1827, 105
        %v1917 = vpop.permute.xlu0 %1916
        %1918 = vrot.lane.b32.xlu0 %v1828, 105
        %v1919 = vpop.permute.xlu0 %1918
        %1920 = vrot.lane.b32.xlu0 %v1832, 105
        %v1921 = vpop.permute.xlu0 %1920
        %v1922 = vsel %vm982, %v1915, %v1917
        %v1923 = vsel %vm982, %v1917, %v1919
        %v1924 = vsel %vm982, %v1919, %v1921
        %1929 = vrot.lane.b32.xlu0 %v1826, 104
        %v1930 = vpop.permute.xlu0 %1929
        %1931 = vrot.lane.b32.xlu0 %v1827, 104
        %v1932 = vpop.permute.xlu0 %1931
        %1933 = vrot.lane.b32.xlu0 %v1828, 104
        %v1934 = vpop.permute.xlu0 %1933
        %1935 = vrot.lane.b32.xlu0 %v1832, 104
        %v1936 = vpop.permute.xlu0 %1935
        %v1937 = vsel %vm998, %v1930, %v1932
        %v1938 = vsel %vm998, %v1932, %v1934
        %v1939 = vsel %vm998, %v1934, %v1936
        %1944 = vrot.lane.b32.xlu0 %v1826, 103
        %v1945 = vpop.permute.xlu0 %1944
        %1946 = vrot.lane.b32.xlu0 %v1827, 103
        %v1947 = vpop.permute.xlu0 %1946
        %1948 = vrot.lane.b32.xlu0 %v1828, 103
        %v1949 = vpop.permute.xlu0 %1948
        %1950 = vrot.lane.b32.xlu0 %v1832, 103
        %v1951 = vpop.permute.xlu0 %1950
        %vm1952 = vcmask 842752
        %v1953 = vsel %vm1952, %v1945, %v1947
        %v1954 = vsel %vm1952, %v1947, %v1949
        %v1955 = vsel %vm1952, %v1949, %v1951
        %1960 = vrot.lane.b32.xlu0 %v1826, 102
        %v1961 = vpop.permute.xlu0 %1960
        %1962 = vrot.lane.b32.xlu0 %v1827, 102
        %v1963 = vpop.permute.xlu0 %1962
        %1964 = vrot.lane.b32.xlu0 %v1828, 102
        %v1965 = vpop.permute.xlu0 %1964
        %1966 = vrot.lane.b32.xlu0 %v1832, 102
        %v1967 = vpop.permute.xlu0 %1966
        %vm1968 = vcmask 834560
        %v1969 = vsel %vm1968, %v1961, %v1963
        %v1970 = vsel %vm1968, %v1963, %v1965
        %v1971 = vsel %vm1968, %v1965, %v1967
        %1976 = vrot.lane.b32.xlu0 %v1826, 84
        %v1977 = vpop.permute.xlu0 %1976
        %1978 = vrot.lane.b32.xlu0 %v1827, 84
        %v1979 = vpop.permute.xlu0 %1978
        %1980 = vrot.lane.b32.xlu0 %v1828, 84
        %v1981 = vpop.permute.xlu0 %1980
        %1982 = vrot.lane.b32.xlu0 %v1832, 84
        %v1983 = vpop.permute.xlu0 %1982
        %v1984 = vsel %vm1017, %v1977, %v1979
        %v1985 = vsel %vm1017, %v1979, %v1981
        %v1986 = vsel %vm1017, %v1981, %v1983
        %v1987 = vsel %vm1017, %v1983, %v1016
        %1992 = vrot.lane.b32.xlu0 %v1826, 83
        %v1993 = vpop.permute.xlu0 %1992
        %1994 = vrot.lane.b32.xlu0 %v1827, 83
        %v1995 = vpop.permute.xlu0 %1994
        %1996 = vrot.lane.b32.xlu0 %v1828, 83
        %v1997 = vpop.permute.xlu0 %1996
        %1998 = vrot.lane.b32.xlu0 %v1832, 83
        %v1999 = vpop.permute.xlu0 %1998
        %v2000 = vsel %vm1037, %v1993, %v1995
        %v2001 = vsel %vm1037, %v1995, %v1997
        %v2002 = vsel %vm1037, %v1997, %v1999
        %v2003 = vsel %vm1037, %v1999, %v1343
        %2008 = vrot.lane.b32.xlu0 %v1826, 82
        %v2009 = vpop.permute.xlu0 %2008
        %2010 = vrot.lane.b32.xlu0 %v1827, 82
        %v2011 = vpop.permute.xlu0 %2010
        %2012 = vrot.lane.b32.xlu0 %v1828, 82
        %v2013 = vpop.permute.xlu0 %2012
        %2014 = vrot.lane.b32.xlu0 %v1832, 82
        %v2015 = vpop.permute.xlu0 %2014
        %v2016 = vsel %vm1056, %v2009, %v2011
        %v2017 = vsel %vm1056, %v2011, %v2013
        %v2018 = vsel %vm1056, %v2013, %v2015
        %v2019 = vsel %vm1056, %v2015, %v1055
        %2024 = vrot.lane.b32.xlu0 %v1826, 81
        %v2025 = vpop.permute.xlu0 %2024
        %2026 = vrot.lane.b32.xlu0 %v1827, 81
        %v2027 = vpop.permute.xlu0 %2026
        %2028 = vrot.lane.b32.xlu0 %v1828, 81
        %v2029 = vpop.permute.xlu0 %2028
        %2030 = vrot.lane.b32.xlu0 %v1832, 81
        %v2031 = vpop.permute.xlu0 %2030
        %2032 = vrot.lane.b32.xlu0 0.0, 81
        %v2033 = vpop.permute.xlu0 %2032
        %vm2034 = vcmask 662528
        %v2035 = vsel %vm2034, %v2025, %v2027
        %v2036 = vsel %vm2034, %v2027, %v2029
        %v2037 = vsel %vm2034, %v2029, %v2031
        %v2038 = vsel %vm2034, %v2031, %v2033
        %2043 = vrot.lane.b32.xlu0 %v1826, 80
        %v2044 = vpop.permute.xlu0 %2043
        %2045 = vrot.lane.b32.xlu0 %v1827, 80
        %v2046 = vpop.permute.xlu0 %2045
        %2047 = vrot.lane.b32.xlu0 %v1828, 80
        %v2048 = vpop.permute.xlu0 %2047
        %2049 = vrot.lane.b32.xlu0 %v1832, 80
        %v2050 = vpop.permute.xlu0 %2049
        %2051 = vrot.lane.b32.xlu0 0.0, 80
        %v2052 = vpop.permute.xlu0 %2051
        %vm2053 = vcmask 654336
        %v2054 = vsel %vm2053, %v2044, %v2046
        %v2055 = vsel %vm2053, %v2046, %v2048
        %v2056 = vsel %vm2053, %v2048, %v2050
        %v2057 = vsel %vm2053, %v2050, %v2052
        %2062 = vrot.lane.b32.xlu0 %v1826, 62
        %v2063 = vpop.permute.xlu0 %2062
        %2064 = vrot.lane.b32.xlu0 %v1827, 62
        %v2065 = vpop.permute.xlu0 %2064
        %2066 = vrot.lane.b32.xlu0 %v1828, 62
        %v2067 = vpop.permute.xlu0 %2066
        %2068 = vrot.lane.b32.xlu0 %v1832, 62
        %v2069 = vpop.permute.xlu0 %2068
        %2070 = vrot.lane.b32.xlu0 0.0, 62
        %v2071 = vpop.permute.xlu0 %2070
        %vm2072 = vcmask 506880
        %v2073 = vsel %vm2072, %v2063, %v2065
        %v2074 = vsel %vm2072, %v2065, %v2067
        %v2075 = vsel %vm2072, %v2067, %v2069
        %v2076 = vsel %vm2072, %v2069, %v2071
        %2081 = vrot.lane.b32.xlu0 0.0, 127
        %v2082 = vpop.permute.xlu0 %2081
        %v2083 = vsel %vm934, %v1844, %v2082
        %2084 = vrot.lane.b32.xlu0 0.0, 126
        %v2085 = vpop.permute.xlu0 %2084
        %v2086 = vsel %vm950, %v1859, %v2085
        %2087 = vrot.lane.b32.xlu0 0.0, 125
        %v2088 = vpop.permute.xlu0 %2087
        %v2089 = vsel %vm1875, %v1874, %v2088
        %2090 = vrot.lane.b32.xlu0 %v1826, 107
        %v2091 = vpop.permute.xlu0 %2090
        %2092 = vrot.lane.b32.xlu0 %v1827, 107
        %v2093 = vpop.permute.xlu0 %2092
        %2094 = vrot.lane.b32.xlu0 %v1828, 107
        %v2095 = vpop.permute.xlu0 %2094
        %2096 = vrot.lane.b32.xlu0 %v1832, 107
        %v2097 = vpop.permute.xlu0 %2096
        %2098 = vrot.lane.b32.xlu0 0.0, 107
        %v2099 = vpop.permute.xlu0 %2098
        %vm2100 = vcmask 875520
        %v2101 = vsel %vm2100, %v2091, %v2093
        %v2102 = vsel %vm2100, %v2093, %v2095
        %v2103 = vsel %vm2100, %v2095, %v2097
        %v2104 = vsel %vm2100, %v2097, %v2099
        %2105 = vrot.lane.b32.xlu0 0.0, 106
        %v2106 = vpop.permute.xlu0 %2105
        %v2107 = vsel %vm966, %v1906, %v2106
        %2108 = vrot.lane.b32.xlu0 0.0, 105
        %v2109 = vpop.permute.xlu0 %2108
        %v2110 = vsel %vm982, %v1921, %v2109
        %2111 = vrot.lane.b32.xlu0 0.0, 104
        %v2112 = vpop.permute.xlu0 %2111
        %v2113 = vsel %vm998, %v1936, %v2112
        %2114 = vrot.lane.b32.xlu0 0.0, 103
        %v2115 = vpop.permute.xlu0 %2114
        %v2116 = vsel %vm1952, %v1951, %v2115
        %2117 = vrot.lane.b32.xlu0 %v1826, 61
        %v2118 = vpop.permute.xlu0 %2117
        %2119 = vrot.lane.b32.xlu0 %v1827, 61
        %v2120 = vpop.permute.xlu0 %2119
        %2121 = vrot.lane.b32.xlu0 %v1828, 61
        %v2122 = vpop.permute.xlu0 %2121
        %2123 = vrot.lane.b32.xlu0 %v1832, 61
        %v2124 = vpop.permute.xlu0 %2123
        %2125 = vrot.lane.b32.xlu0 0.0, 61
        %v2126 = vpop.permute.xlu0 %2125
        %2127 = vrot.lane.b32.xlu0 %v1845, 61
        %v2128 = vpop.permute.xlu0 %2127
        %2129 = vrot.lane.b32.xlu0 %v1846, 61
        %v2130 = vpop.permute.xlu0 %2129
        %2131 = vrot.lane.b32.xlu0 %v1847, 61
        %v2132 = vpop.permute.xlu0 %2131
        %2133 = vrot.lane.b32.xlu0 %v2083, 61
        %v2134 = vpop.permute.xlu0 %2133
        %2135 = vrot.lane.b32.xlu0 %v2082, 61
        %v2136 = vpop.permute.xlu0 %2135
        %2137 = vrot.lane.b32.xlu0 %v1860, 61
        %v2138 = vpop.permute.xlu0 %2137
        %2139 = vrot.lane.b32.xlu0 %v1861, 61
        %v2140 = vpop.permute.xlu0 %2139
        %2141 = vrot.lane.b32.xlu0 %v1862, 61
        %v2142 = vpop.permute.xlu0 %2141
        %2143 = vrot.lane.b32.xlu0 %v2086, 61
        %v2144 = vpop.permute.xlu0 %2143
        %2145 = vrot.lane.b32.xlu0 %v2085, 61
        %v2146 = vpop.permute.xlu0 %2145
        %2147 = vrot.lane.b32.xlu0 %v1876, 61
        %v2148 = vpop.permute.xlu0 %2147
        %2149 = vrot.lane.b32.xlu0 %v1877, 61
        %v2150 = vpop.permute.xlu0 %2149
        %2151 = vrot.lane.b32.xlu0 %v1878, 61
        %v2152 = vpop.permute.xlu0 %2151
        %2153 = vrot.lane.b32.xlu0 %v2089, 61
        %v2154 = vpop.permute.xlu0 %2153
        %2155 = vrot.lane.b32.xlu0 %v2088, 61
        %v2156 = vpop.permute.xlu0 %2155
        %2157 = vrot.lane.b32.xlu0 %v2101, 61
        %v2158 = vpop.permute.xlu0 %2157
        %2159 = vrot.lane.b32.xlu0 %v2102, 61
        %v2160 = vpop.permute.xlu0 %2159
        %2161 = vrot.lane.b32.xlu0 %v2103, 61
        %v2162 = vpop.permute.xlu0 %2161
        %2163 = vrot.lane.b32.xlu0 %v2104, 61
        %v2164 = vpop.permute.xlu0 %2163
        %2165 = vrot.lane.b32.xlu0 %v2099, 61
        %v2166 = vpop.permute.xlu0 %2165
        %2167 = vrot.lane.b32.xlu0 %v1907, 61
        %v2168 = vpop.permute.xlu0 %2167
        %2169 = vrot.lane.b32.xlu0 %v1908, 61
        %v2170 = vpop.permute.xlu0 %2169
        %2171 = vrot.lane.b32.xlu0 %v1909, 61
        %v2172 = vpop.permute.xlu0 %2171
        %2173 = vrot.lane.b32.xlu0 %v2107, 61
        %v2174 = vpop.permute.xlu0 %2173
        %2175 = vrot.lane.b32.xlu0 %v2106, 61
        %v2176 = vpop.permute.xlu0 %2175
        %2177 = vrot.lane.b32.xlu0 %v1922, 61
        %v2178 = vpop.permute.xlu0 %2177
        %2179 = vrot.lane.b32.xlu0 %v1923, 61
        %v2180 = vpop.permute.xlu0 %2179
        %2181 = vrot.lane.b32.xlu0 %v1924, 61
        %v2182 = vpop.permute.xlu0 %2181
        %2183 = vrot.lane.b32.xlu0 %v2110, 61
        %v2184 = vpop.permute.xlu0 %2183
        %2185 = vrot.lane.b32.xlu0 %v2109, 61
        %v2186 = vpop.permute.xlu0 %2185
        %2187 = vrot.lane.b32.xlu0 %v1937, 61
        %v2188 = vpop.permute.xlu0 %2187
        %2189 = vrot.lane.b32.xlu0 %v1938, 61
        %v2190 = vpop.permute.xlu0 %2189
        %2191 = vrot.lane.b32.xlu0 %v1939, 61
        %v2192 = vpop.permute.xlu0 %2191
        %2193 = vrot.lane.b32.xlu0 %v2113, 61
        %v2194 = vpop.permute.xlu0 %2193
        %2195 = vrot.lane.b32.xlu0 %v2112, 61
        %v2196 = vpop.permute.xlu0 %2195
        %2197 = vrot.lane.b32.xlu0 %v1953, 61
        %v2198 = vpop.permute.xlu0 %2197
        %2199 = vrot.lane.b32.xlu0 %v1954, 61
        %v2200 = vpop.permute.xlu0 %2199
        %2201 = vrot.lane.b32.xlu0 %v1955, 61
        %v2202 = vpop.permute.xlu0 %2201
        %2203 = vrot.lane.b32.xlu0 %v2116, 61
        %v2204 = vpop.permute.xlu0 %2203
        %2205 = vrot.lane.b32.xlu0 %v2115, 61
        %v2206 = vpop.permute.xlu0 %2205
        %vm2207 = vcmask 498688
        %v2208 = vsel %vm2207, %v2118, %v2120
        %v2209 = vsel %vm2207, %v2120, %v2122
        %v2210 = vsel %vm2207, %v2122, %v2124
        %v2211 = vsel %vm2207, %v2124, %v2126
        %v2212 = vsel %vm2207, %v2128, %v2130
        %v2213 = vsel %vm2207, %v2130, %v2132
        %v2214 = vsel %vm2207, %v2132, %v2134
        %v2215 = vsel %vm2207, %v2134, %v2136
        %v2216 = vsel %vm2207, %v2138, %v2140
        %v2217 = vsel %vm2207, %v2140, %v2142
        %v2218 = vsel %vm2207, %v2142, %v2144
        %v2219 = vsel %vm2207, %v2144, %v2146
        %v2220 = vsel %vm2207, %v2148, %v2150
        %v2221 = vsel %vm2207, %v2150, %v2152
        %v2222 = vsel %vm2207, %v2152, %v2154
        %v2223 = vsel %vm2207, %v2154, %v2156
        %v2224 = vsel %vm2207, %v2158, %v2160
        %v2225 = vsel %vm2207, %v2160, %v2162
        %v2226 = vsel %vm2207, %v2162, %v2164
        %v2227 = vsel %vm2207, %v2164, %v2166
        %v2228 = vsel %vm2207, %v2168, %v2170
        %v2229 = vsel %vm2207, %v2170, %v2172
        %v2230 = vsel %vm2207, %v2172, %v2174
        %v2231 = vsel %vm2207, %v2174, %v2176
        %v2232 = vsel %vm2207, %v2178, %v2180
        %v2233 = vsel %vm2207, %v2180, %v2182
        %v2234 = vsel %vm2207, %v2182, %v2184
        %v2235 = vsel %vm2207, %v2184, %v2186
        %v2236 = vsel %vm2207, %v2188, %v2190
        %v2237 = vsel %vm2207, %v2190, %v2192
        %v2238 = vsel %vm2207, %v2192, %v2194
        %v2239 = vsel %vm2207, %v2194, %v2196
        %v2240 = vsel %vm2207, %v2198, %v2200
        %v2241 = vsel %vm2207, %v2200, %v2202
        %v2242 = vsel %vm2207, %v2202, %v2204
        %v2243 = vsel %vm2207, %v2204, %v2206
        %2280 = vset.pattern.permute.xlu0 3
        %2281 = vperm.xlu0 %2280, %v515
        %v2282 = vpop.permute.xlu0 %2281
        %v2285 = vsel %vm1372, %v1831, 0
        %2287 = vmatprep.subr.mxu0 %v1827
        %2288 = vmatpush1.msra.mxu0 %v1826
        %2289 = vmatprep.subr.mxu0 %v1846
        %2290 = vmatpush1.msra.mxu0 %v1845
        %2291 = vmatprep.subr.mxu0 %v1861
        %2292 = vmatpush1.msra.mxu0 %v1860
        %2293 = vmatprep.subr.mxu0 %v1877
        %2294 = vmatpush1.msra.mxu0 %v1876
        %2295 = vmatprep.subr.mxu0 %v1893
        %2296 = vmatpush1.msra.mxu0 %v1892
        %2297 = vmatprep.subr.mxu0 %v1908
        %2298 = vmatpush1.msra.mxu0 %v1907
        %2299 = vmatprep.subr.mxu0 %v1923
        %2300 = vmatpush1.msra.mxu0 %v1922
        %2301 = vmatprep.subr.mxu0 %v1938
        %2302 = vmatpush1.msra.mxu0 %v1937
        %2303 = vmatprep.subr.mxu0 %v1954
        %2304 = vmatpush1.msra.mxu0 %v1953
        %2305 = vmatprep.subr.mxu0 %v1970
        %2306 = vmatpush1.msra.mxu0 %v1969
        %2307 = vmatprep.subr.mxu0 %v1985
        %2308 = vmatpush1.msra.mxu0 %v1984
        %2309 = vmatprep.subr.mxu0 %v2001
        %2310 = vmatpush1.msra.mxu0 %v2000
        %2311 = vmatprep.subr.mxu0 %v2017
        %2312 = vmatpush1.msra.mxu0 %v2016
        %2313 = vmatprep.subr.mxu0 %v2036
        %2314 = vmatpush1.msra.mxu0 %v2035
        %2315 = vmatprep.subr.mxu0 %v2055
        %2316 = vmatpush1.msra.mxu0 %v2054
        %2317 = vmatprep.subr.mxu0 %v2074
        %2318 = vmatpush1.msra.mxu0 %v2073
        %2319 = vmatprep.subr.mxu0 %v2209
        %2320 = vmatpush1.msra.mxu0 %v2208
        %2321 = vmatprep.subr.mxu0 %v2213
        %2322 = vmatpush1.msra.mxu0 %v2212
        %2323 = vmatprep.subr.mxu0 %v2217
        %2324 = vmatpush1.msra.mxu0 %v2216
        %2325 = vmatprep.subr.mxu0 %v2221
        %2326 = vmatpush1.msra.mxu0 %v2220
        %2327 = vmatprep.subr.mxu0 %v2225
        %2328 = vmatpush1.msra.mxu0 %v2224
        %2329 = vmatprep.subr.mxu0 %v2229
        %2330 = vmatpush1.msra.mxu0 %v2228
        %2331 = vmatprep.subr.mxu0 %v2233
        %2332 = vmatpush1.msra.mxu0 %v2232
        %2333 = vmatprep.subr.mxu0 %v2237
        %2334 = vmatpush1.msra.mxu0 %v2236
        %2335 = vmatprep.subr.mxu0 %v2241
        %2336 = vmatpush1.msra.mxu0 %v2240
        %2337 = vmatprep.subr.mxu0 0.0
        %2338 = vmatpush1.msra.mxu0 0.0
        %2339 = vmatprep.subr.mxu0 0.0
        %2340 = vmatpush1.msra.mxu0 0.0
        %2341 = vmatprep.subr.mxu0 0.0
        %2342 = vmatpush1.msra.mxu0 0.0
        %2343 = vmatprep.subr.mxu0 0.0
        %2344 = vmatpush1.msra.mxu0 0.0
        %2345 = vmatprep.subr.mxu0 0.0
        %2346 = vmatpush1.msra.mxu0 0.0
        %2347 = vmatprep.subr.mxu0 0.0
        %2348 = vmatpush1.msra.mxu0 0.0
        %2349 = vmatprep.subr.mxu0 0.0
        %2350 = vmatpush1.msra.mxu0 0.0
        %2351 = vmatprep.mubr.f32.mxu0 %v2285
        %2352 = vmatmul.mubr.f32.gmra.mrb[0].mxu0 %v1830
        %v2353 = vpop.f32.mrb[0].mxu0
        %v2354 = vadd.f32 %v2282, %v2353
        %v2355 = vpop.f32.mrb[0].mxu0
        %v2356 = vadd.f32 %v2282, %v2355
        %2357 = vdwg.mxu0
        %2358 = vmatprep.subr.mxu0 %v1832
        %2359 = vmatpush1.msra.mxu0 %v1828
        %2360 = vmatprep.subr.mxu0 %v1844
        %2361 = vmatpush1.msra.mxu0 %v1847
        %2362 = vmatprep.subr.mxu0 %v1859
        %2363 = vmatpush1.msra.mxu0 %v1862
        %2364 = vmatprep.subr.mxu0 %v1874
        %2365 = vmatpush1.msra.mxu0 %v1878
        %2366 = vmatprep.subr.mxu0 %v1890
        %2367 = vmatpush1.msra.mxu0 %v1894
        %2368 = vmatprep.subr.mxu0 %v1906
        %2369 = vmatpush1.msra.mxu0 %v1909
        %2370 = vmatprep.subr.mxu0 %v1921
        %2371 = vmatpush1.msra.mxu0 %v1924
        %2372 = vmatprep.subr.mxu0 %v1936
        %2373 = vmatpush1.msra.mxu0 %v1939
        %2374 = vmatprep.subr.mxu0 %v1951
        %2375 = vmatpush1.msra.mxu0 %v1955
        %2376 = vmatprep.subr.mxu0 %v1967
        %2377 = vmatpush1.msra.mxu0 %v1971
        %2378 = vmatprep.subr.mxu0 %v1987
        %2379 = vmatpush1.msra.mxu0 %v1986
        %2380 = vmatprep.subr.mxu0 %v2003
        %2381 = vmatpush1.msra.mxu0 %v2002
        %2382 = vmatprep.subr.mxu0 %v2019
        %2383 = vmatpush1.msra.mxu0 %v2018
        %2384 = vmatprep.subr.mxu0 %v2038
        %2385 = vmatpush1.msra.mxu0 %v2037
        %2386 = vmatprep.subr.mxu0 %v2057
        %2387 = vmatpush1.msra.mxu0 %v2056
        %2388 = vmatprep.subr.mxu0 %v2076
        %2389 = vmatpush1.msra.mxu0 %v2075
        %2390 = vmatprep.subr.mxu0 %v2211
        %2391 = vmatpush1.msra.mxu0 %v2210
        %2392 = vmatprep.subr.mxu0 %v2215
        %2393 = vmatpush1.msra.mxu0 %v2214
        %2394 = vmatprep.subr.mxu0 %v2219
        %2395 = vmatpush1.msra.mxu0 %v2218
        %2396 = vmatprep.subr.mxu0 %v2223
        %2397 = vmatpush1.msra.mxu0 %v2222
        %2398 = vmatprep.subr.mxu0 %v2227
        %2399 = vmatpush1.msra.mxu0 %v2226
        %2400 = vmatprep.subr.mxu0 %v2231
        %2401 = vmatpush1.msra.mxu0 %v2230
        %2402 = vmatprep.subr.mxu0 %v2235
        %2403 = vmatpush1.msra.mxu0 %v2234
        %2404 = vmatprep.subr.mxu0 %v2239
        %2405 = vmatpush1.msra.mxu0 %v2238
        %2406 = vmatprep.subr.mxu0 %v2243
        %2407 = vmatpush1.msra.mxu0 %v2242
        %2408 = vmatprep.subr.mxu0 0.0
        %2409 = vmatpush1.msra.mxu0 0.0
        %2410 = vmatprep.subr.mxu0 0.0
        %2411 = vmatpush1.msra.mxu0 0.0
        %2412 = vmatprep.subr.mxu0 0.0
        %2413 = vmatpush1.msra.mxu0 0.0
        %2414 = vmatprep.subr.mxu0 0.0
        %2415 = vmatpush1.msra.mxu0 0.0
        %2416 = vmatprep.subr.mxu0 0.0
        %2417 = vmatpush1.msra.mxu0 0.0
        %2418 = vmatprep.subr.mxu0 0.0
        %2419 = vmatpush1.msra.mxu0 0.0
        %2420 = vmatprep.subr.mxu0 0.0
        %2421 = vmatpush1.msra.mxu0 0.0
        %2422 = vmatprep.mubr.f32.mxu0 %v2285
        %2423 = vmatmul.mubr.f32.gmra.mrb[0].mxu0 %v1830
        %v2424 = vpop.f32.mrb[0].mxu0
        %v2425 = vadd.f32 %v2282, %v2424
        %v2426 = vpop.f32.mrb[0].mxu0
        %v2427 = vadd.f32 %v2282, %v2426
        %2428 = vdwg.mxu0
        %v2429 = vld [vmem:[%s8] sm:$0xff]
        %v2430 = vsel %vm916, %v913, 0.0
        %v2435 = vrot.slane %v840, 5
        %v2436 = vrot.slane %v842, 5
        %v2437 = vrot.slane %v911, 5
        %v2438 = vrot.slane %v2430, 5
        %2439 = vrot.lane.b32.xlu0 %v2435, 127
        %v2440 = vpop.permute.xlu0 %2439
        %2441 = vrot.lane.b32.xlu0 %v2436, 127
        %v2442 = vpop.permute.xlu0 %2441
        %2443 = vrot.lane.b32.xlu0 %v2437, 127
        %v2444 = vpop.permute.xlu0 %2443
        %2445 = vrot.lane.b32.xlu0 %v2438, 127
        %v2446 = vpop.permute.xlu0 %2445
        %v2447 = vsel %vm934, %v2440, %v2442
        %v2448 = vsel %vm934, %v2442, %v2444
        %v2449 = vsel %vm934, %v2444, %v2446
        %v2454 = vrot.slane %v840, 2
        %v2455 = vrot.slane %v842, 2
        %v2456 = vrot.slane %v911, 2
        %v2457 = vrot.slane %v2430, 2
        %2458 = vrot.lane.b32.xlu0 %v2454, 126
        %v2459 = vpop.permute.xlu0 %2458
        %2460 = vrot.lane.b32.xlu0 %v2455, 126
        %v2461 = vpop.permute.xlu0 %2460
        %2462 = vrot.lane.b32.xlu0 %v2456, 126
        %v2463 = vpop.permute.xlu0 %2462
        %2464 = vrot.lane.b32.xlu0 %v2457, 126
        %v2465 = vpop.permute.xlu0 %2464
        %v2466 = vsel %vm950, %v2459, %v2461
        %v2467 = vsel %vm950, %v2461, %v2463
        %v2468 = vsel %vm950, %v2463, %v2465
        %v2473 = vrot.slane %v840, 7
        %v2474 = vrot.slane %v842, 7
        %v2475 = vrot.slane %v911, 7
        %v2476 = vrot.slane %v2430, 7
        %2477 = vrot.lane.b32.xlu0 %v2473, 125
        %v2478 = vpop.permute.xlu0 %2477
        %2479 = vrot.lane.b32.xlu0 %v2474, 125
        %v2480 = vpop.permute.xlu0 %2479
        %2481 = vrot.lane.b32.xlu0 %v2475, 125
        %v2482 = vpop.permute.xlu0 %2481
        %2483 = vrot.lane.b32.xlu0 %v2476, 125
        %v2484 = vpop.permute.xlu0 %2483
        %v2485 = vsel %vm1875, %v2478, %v2480
        %v2486 = vsel %vm1875, %v2480, %v2482
        %v2487 = vsel %vm1875, %v2482, %v2484
        %v2492 = vrot.slane %v840, 4
        %v2493 = vrot.slane %v842, 4
        %v2494 = vrot.slane %v911, 4
        %v2495 = vrot.slane %v2430, 4
        %2496 = vrot.lane.b32.xlu0 %v2492, 124
        %v2497 = vpop.permute.xlu0 %2496
        %2498 = vrot.lane.b32.xlu0 %v2493, 124
        %v2499 = vpop.permute.xlu0 %2498
        %2500 = vrot.lane.b32.xlu0 %v2494, 124
        %v2501 = vpop.permute.xlu0 %2500
        %2502 = vrot.lane.b32.xlu0 %v2495, 124
        %v2503 = vpop.permute.xlu0 %2502
        %v2504 = vsel %vm1891, %v2497, %v2499
        %v2505 = vsel %vm1891, %v2499, %v2501
        %v2506 = vsel %vm1891, %v2501, %v2503
        %v2511 = vrot.slane %v840, 1
        %v2512 = vrot.slane %v842, 1
        %v2513 = vrot.slane %v911, 1
        %v2514 = vrot.slane %v2430, 1
        %2515 = vrot.lane.b32.xlu0 %v2511, 106
        %v2516 = vpop.permute.xlu0 %2515
        %2517 = vrot.lane.b32.xlu0 %v2512, 106
        %v2518 = vpop.permute.xlu0 %2517
        %2519 = vrot.lane.b32.xlu0 %v2513, 106
        %v2520 = vpop.permute.xlu0 %2519
        %2521 = vrot.lane.b32.xlu0 %v2514, 106
        %v2522 = vpop.permute.xlu0 %2521
        %v2523 = vsel %vm966, %v2516, %v2518
        %v2524 = vsel %vm966, %v2518, %v2520
        %v2525 = vsel %vm966, %v2520, %v2522
        %v2530 = vrot.slane %v840, 6
        %v2531 = vrot.slane %v842, 6
        %v2532 = vrot.slane %v911, 6
        %v2533 = vrot.slane %v2430, 6
        %2534 = vrot.lane.b32.xlu0 %v2530, 105
        %v2535 = vpop.permute.xlu0 %2534
        %2536 = vrot.lane.b32.xlu0 %v2531, 105
        %v2537 = vpop.permute.xlu0 %2536
        %2538 = vrot.lane.b32.xlu0 %v2532, 105
        %v2539 = vpop.permute.xlu0 %2538
        %2540 = vrot.lane.b32.xlu0 %v2533, 105
        %v2541 = vpop.permute.xlu0 %2540
        %v2542 = vsel %vm982, %v2535, %v2537
        %v2543 = vsel %vm982, %v2537, %v2539
        %v2544 = vsel %vm982, %v2539, %v2541
        %v2549 = vrot.slane %v840, 3
        %v2550 = vrot.slane %v842, 3
        %v2551 = vrot.slane %v911, 3
        %v2552 = vrot.slane %v2430, 3
        %2553 = vrot.lane.b32.xlu0 %v2549, 104
        %v2554 = vpop.permute.xlu0 %2553
        %2555 = vrot.lane.b32.xlu0 %v2550, 104
        %v2556 = vpop.permute.xlu0 %2555
        %2557 = vrot.lane.b32.xlu0 %v2551, 104
        %v2558 = vpop.permute.xlu0 %2557
        %2559 = vrot.lane.b32.xlu0 %v2552, 104
        %v2560 = vpop.permute.xlu0 %2559
        %v2561 = vsel %vm998, %v2554, %v2556
        %v2562 = vsel %vm998, %v2556, %v2558
        %v2563 = vsel %vm998, %v2558, %v2560
        %2568 = vrot.lane.b32.xlu0 %v840, 103
        %v2569 = vpop.permute.xlu0 %2568
        %2570 = vrot.lane.b32.xlu0 %v842, 103
        %v2571 = vpop.permute.xlu0 %2570
        %2572 = vrot.lane.b32.xlu0 %v911, 103
        %v2573 = vpop.permute.xlu0 %2572
        %2574 = vrot.lane.b32.xlu0 %v2430, 103
        %v2575 = vpop.permute.xlu0 %2574
        %v2576 = vsel %vm1952, %v2569, %v2571
        %v2577 = vsel %vm1952, %v2571, %v2573
        %v2578 = vsel %vm1952, %v2573, %v2575
        %2583 = vrot.lane.b32.xlu0 %v2435, 102
        %v2584 = vpop.permute.xlu0 %2583
        %2585 = vrot.lane.b32.xlu0 %v2436, 102
        %v2586 = vpop.permute.xlu0 %2585
        %2587 = vrot.lane.b32.xlu0 %v2437, 102
        %v2588 = vpop.permute.xlu0 %2587
        %2589 = vrot.lane.b32.xlu0 %v2438, 102
        %v2590 = vpop.permute.xlu0 %2589
        %v2591 = vsel %vm1968, %v2584, %v2586
        %v2592 = vsel %vm1968, %v2586, %v2588
        %v2593 = vsel %vm1968, %v2588, %v2590
        %v2598 = vrot.slane 0.0, 2
        %2599 = vrot.lane.b32.xlu0 %v2454, 84
        %v2600 = vpop.permute.xlu0 %2599
        %2601 = vrot.lane.b32.xlu0 %v2455, 84
        %v2602 = vpop.permute.xlu0 %2601
        %2603 = vrot.lane.b32.xlu0 %v2456, 84
        %v2604 = vpop.permute.xlu0 %2603
        %2605 = vrot.lane.b32.xlu0 %v2457, 84
        %v2606 = vpop.permute.xlu0 %2605
        %2607 = vrot.lane.b32.xlu0 %v2598, 84
        %v2608 = vpop.permute.xlu0 %2607
        %v2609 = vsel %vm1017, %v2600, %v2602
        %v2610 = vsel %vm1017, %v2602, %v2604
        %v2611 = vsel %vm1017, %v2604, %v2606
        %v2612 = vsel %vm1017, %v2606, %v2608
        %v2617 = vrot.slane 0.0, 7
        %2618 = vrot.lane.b32.xlu0 %v2473, 83
        %v2619 = vpop.permute.xlu0 %2618
        %2620 = vrot.lane.b32.xlu0 %v2474, 83
        %v2621 = vpop.permute.xlu0 %2620
        %2622 = vrot.lane.b32.xlu0 %v2475, 83
        %v2623 = vpop.permute.xlu0 %2622
        %2624 = vrot.lane.b32.xlu0 %v2476, 83
        %v2625 = vpop.permute.xlu0 %2624
        %2626 = vrot.lane.b32.xlu0 %v2617, 83
        %v2627 = vpop.permute.xlu0 %2626
        %v2628 = vsel %vm1037, %v2619, %v2621
        %v2629 = vsel %vm1037, %v2621, %v2623
        %v2630 = vsel %vm1037, %v2623, %v2625
        %v2631 = vsel %vm1037, %v2625, %v2627
        %2636 = vrot.lane.b32.xlu0 %v2492, 82
        %v2637 = vpop.permute.xlu0 %2636
        %2638 = vrot.lane.b32.xlu0 %v2493, 82
        %v2639 = vpop.permute.xlu0 %2638
        %2640 = vrot.lane.b32.xlu0 %v2494, 82
        %v2641 = vpop.permute.xlu0 %2640
        %2642 = vrot.lane.b32.xlu0 %v2495, 82
        %v2643 = vpop.permute.xlu0 %2642
        %2644 = vrot.lane.b32.xlu0 %v1026, 82
        %v2645 = vpop.permute.xlu0 %2644
        %v2646 = vsel %vm1056, %v2637, %v2639
        %v2647 = vsel %vm1056, %v2639, %v2641
        %v2648 = vsel %vm1056, %v2641, %v2643
        %v2649 = vsel %vm1056, %v2643, %v2645
        %v2654 = vrot.slane 0.0, 1
        %2655 = vrot.lane.b32.xlu0 %v2511, 81
        %v2656 = vpop.permute.xlu0 %2655
        %2657 = vrot.lane.b32.xlu0 %v2512, 81
        %v2658 = vpop.permute.xlu0 %2657
        %2659 = vrot.lane.b32.xlu0 %v2513, 81
        %v2660 = vpop.permute.xlu0 %2659
        %2661 = vrot.lane.b32.xlu0 %v2514, 81
        %v2662 = vpop.permute.xlu0 %2661
        %2663 = vrot.lane.b32.xlu0 %v2654, 81
        %v2664 = vpop.permute.xlu0 %2663
        %v2665 = vsel %vm2034, %v2656, %v2658
        %v2666 = vsel %vm2034, %v2658, %v2660
        %v2667 = vsel %vm2034, %v2660, %v2662
        %v2668 = vsel %vm2034, %v2662, %v2664
        %v2673 = vrot.slane 0.0, 6
        %2674 = vrot.lane.b32.xlu0 %v2530, 80
        %v2675 = vpop.permute.xlu0 %2674
        %2676 = vrot.lane.b32.xlu0 %v2531, 80
        %v2677 = vpop.permute.xlu0 %2676
        %2678 = vrot.lane.b32.xlu0 %v2532, 80
        %v2679 = vpop.permute.xlu0 %2678
        %2680 = vrot.lane.b32.xlu0 %v2533, 80
        %v2681 = vpop.permute.xlu0 %2680
        %2682 = vrot.lane.b32.xlu0 %v2673, 80
        %v2683 = vpop.permute.xlu0 %2682
        %v2684 = vsel %vm2053, %v2675, %v2677
        %v2685 = vsel %vm2053, %v2677, %v2679
        %v2686 = vsel %vm2053, %v2679, %v2681
        %v2687 = vsel %vm2053, %v2681, %v2683
        %v2692 = vrot.slane 0.0, 3
        %2693 = vrot.lane.b32.xlu0 %v2549, 62
        %v2694 = vpop.permute.xlu0 %2693
        %2695 = vrot.lane.b32.xlu0 %v2550, 62
        %v2696 = vpop.permute.xlu0 %2695
        %2697 = vrot.lane.b32.xlu0 %v2551, 62
        %v2698 = vpop.permute.xlu0 %2697
        %2699 = vrot.lane.b32.xlu0 %v2552, 62
        %v2700 = vpop.permute.xlu0 %2699
        %2701 = vrot.lane.b32.xlu0 %v2692, 62
        %v2702 = vpop.permute.xlu0 %2701
        %v2703 = vsel %vm2072, %v2694, %v2696
        %v2704 = vsel %vm2072, %v2696, %v2698
        %v2705 = vsel %vm2072, %v2698, %v2700
        %v2706 = vsel %vm2072, %v2700, %v2702
        %vm2711 = vcmask 1042432
        %v2712 = vsel %vm2711, %v840, %v2447
        %v2713 = vsel %vm2711, %v842, %v2448
        %v2714 = vsel %vm2711, %v911, %v2449
        %v2715 = vsel %vm2711, %v2430, %v2446
        %vm2716 = vcmask 1045504
        %v2717 = vsel %vm2716, %v2712, %v2466
        %v2718 = vsel %vm2716, %v2713, %v2467
        %v2719 = vsel %vm2716, %v2714, %v2468
        %v2720 = vsel %vm2716, %v2715, %v2465
        %vm2721 = vcmask 1040384
        %v2722 = vsel %vm2721, %v2466, %v2485
        %v2723 = vsel %vm2721, %v2467, %v2486
        %v2724 = vsel %vm2721, %v2468, %v2487
        %v2725 = vsel %vm2721, %v2465, %v2484
        %v2726 = vsel %vm1061, %v2722, %v2504
        %v2727 = vsel %vm1061, %v2723, %v2505
        %v2728 = vsel %vm1061, %v2724, %v2506
        %v2729 = vsel %vm1061, %v2725, %v2503
        %vm2730 = vcmask 1046528
        %v2731 = vsel %vm2730, %v2726, %v2523
        %v2732 = vsel %vm2730, %v2727, %v2524
        %v2733 = vsel %vm2730, %v2728, %v2525
        %v2734 = vsel %vm2730, %v2729, %v2522
        %vm2735 = vcmask 1041408
        %v2736 = vsel %vm2735, %v2523, %v2542
        %v2737 = vsel %vm2735, %v2524, %v2543
        %v2738 = vsel %vm2735, %v2525, %v2544
        %v2739 = vsel %vm2735, %v2522, %v2541
        %vm2740 = vcmask 1044480
        %v2741 = vsel %vm2740, %v2736, %v2561
        %v2742 = vsel %vm2740, %v2737, %v2562
        %v2743 = vsel %vm2740, %v2738, %v2563
        %v2744 = vsel %vm2740, %v2739, %v2560
        %v2745 = vsel %vm2711, %v2576, %v2591
        %v2746 = vsel %vm2711, %v2577, %v2592
        %v2747 = vsel %vm2711, %v2578, %v2593
        %v2748 = vsel %vm2711, %v2575, %v2590
        %v2749 = vsel %vm2716, %v2745, %v2609
        %v2750 = vsel %vm2716, %v2746, %v2610
        %v2751 = vsel %vm2716, %v2747, %v2611
        %v2752 = vsel %vm2716, %v2748, %v2612
        %v2753 = vsel %vm2721, %v2609, %v2628
        %v2754 = vsel %vm2721, %v2610, %v2629
        %v2755 = vsel %vm2721, %v2611, %v2630
        %v2756 = vsel %vm2721, %v2612, %v2631
        %v2757 = vsel %vm1061, %v2753, %v2646
        %v2758 = vsel %vm1061, %v2754, %v2647
        %v2759 = vsel %vm1061, %v2755, %v2648
        %v2760 = vsel %vm1061, %v2756, %v2649
        %v2761 = vsel %vm2730, %v2757, %v2665
        %v2762 = vsel %vm2730, %v2758, %v2666
        %v2763 = vsel %vm2730, %v2759, %v2667
        %v2764 = vsel %vm2730, %v2760, %v2668
        %v2765 = vsel %vm2735, %v2665, %v2684
        %v2766 = vsel %vm2735, %v2666, %v2685
        %v2767 = vsel %vm2735, %v2667, %v2686
        %v2768 = vsel %vm2735, %v2668, %v2687
        %v2769 = vsel %vm2740, %v2765, %v2703
        %v2770 = vsel %vm2740, %v2766, %v2704
        %v2771 = vsel %vm2740, %v2767, %v2705
        %v2772 = vsel %vm2740, %v2768, %v2706
        %v2773 = vrot.slane 0.0, 5
        %2774 = vrot.lane.b32.xlu0 %v2773, 127
        %v2775 = vpop.permute.xlu0 %2774
        %v2776 = vsel %vm934, %v2446, %v2775
        %2779 = vrot.lane.b32.xlu0 %v2598, 126
        %v2780 = vpop.permute.xlu0 %2779
        %v2781 = vsel %vm950, %v2465, %v2780
        %2784 = vrot.lane.b32.xlu0 %v2617, 125
        %v2785 = vpop.permute.xlu0 %2784
        %v2786 = vsel %vm1875, %v2484, %v2785
        %2789 = vrot.lane.b32.xlu0 %v2492, 107
        %v2790 = vpop.permute.xlu0 %2789
        %2791 = vrot.lane.b32.xlu0 %v2493, 107
        %v2792 = vpop.permute.xlu0 %2791
        %2793 = vrot.lane.b32.xlu0 %v2494, 107
        %v2794 = vpop.permute.xlu0 %2793
        %2795 = vrot.lane.b32.xlu0 %v2495, 107
        %v2796 = vpop.permute.xlu0 %2795
        %2797 = vrot.lane.b32.xlu0 %v1026, 107
        %v2798 = vpop.permute.xlu0 %2797
        %v2799 = vsel %vm2100, %v2790, %v2792
        %v2800 = vsel %vm2100, %v2792, %v2794
        %v2801 = vsel %vm2100, %v2794, %v2796
        %v2802 = vsel %vm2100, %v2796, %v2798
        %2808 = vrot.lane.b32.xlu0 %v2654, 106
        %v2809 = vpop.permute.xlu0 %2808
        %v2810 = vsel %vm966, %v2522, %v2809
        %2813 = vrot.lane.b32.xlu0 %v2673, 105
        %v2814 = vpop.permute.xlu0 %2813
        %v2815 = vsel %vm982, %v2541, %v2814
        %2818 = vrot.lane.b32.xlu0 %v2692, 104
        %v2819 = vpop.permute.xlu0 %2818
        %v2820 = vsel %vm998, %v2560, %v2819
        %v2823 = vsel %vm1952, %v2575, %v2115
        %v2824 = vsel %vm2711, %v2430, %v2776
        %v2825 = vsel %vm2711, 0.0, %v2775
        %v2826 = vsel %vm2716, %v2824, %v2781
        %v2827 = vsel %vm2716, %v2825, %v2780
        %v2828 = vsel %vm2721, %v2781, %v2786
        %v2829 = vsel %vm2721, %v2780, %v2785
        %v2830 = vsel %vm1061, %v2722, %v2799
        %v2831 = vsel %vm1061, %v2723, %v2800
        %v2832 = vsel %vm1061, %v2724, %v2801
        %v2833 = vsel %vm1061, %v2828, %v2802
        %v2834 = vsel %vm1061, %v2829, %v2798
        %v2835 = vsel %vm2730, %v2830, %v2523
        %v2836 = vsel %vm2730, %v2831, %v2524
        %v2837 = vsel %vm2730, %v2832, %v2525
        %v2838 = vsel %vm2730, %v2833, %v2810
        %v2839 = vsel %vm2730, %v2834, %v2809
        %v2840 = vsel %vm2735, %v2810, %v2815
        %v2841 = vsel %vm2735, %v2809, %v2814
        %v2842 = vsel %vm2740, %v2840, %v2820
        %v2843 = vsel %vm2740, %v2841, %v2819
        %2859 = vrot.lane.b32.xlu0 %v2717, 61
        %v2860 = vpop.permute.xlu0 %2859
        %2861 = vrot.lane.b32.xlu0 %v2718, 61
        %v2862 = vpop.permute.xlu0 %2861
        %2863 = vrot.lane.b32.xlu0 %v2719, 61
        %v2864 = vpop.permute.xlu0 %2863
        %2865 = vrot.lane.b32.xlu0 %v2826, 61
        %v2866 = vpop.permute.xlu0 %2865
        %2867 = vrot.lane.b32.xlu0 %v2827, 61
        %v2868 = vpop.permute.xlu0 %2867
        %2869 = vrot.lane.b32.xlu0 %v2835, 61
        %v2870 = vpop.permute.xlu0 %2869
        %2871 = vrot.lane.b32.xlu0 %v2836, 61
        %v2872 = vpop.permute.xlu0 %2871
        %2873 = vrot.lane.b32.xlu0 %v2837, 61
        %v2874 = vpop.permute.xlu0 %2873
        %2875 = vrot.lane.b32.xlu0 %v2838, 61
        %v2876 = vpop.permute.xlu0 %2875
        %2877 = vrot.lane.b32.xlu0 %v2839, 61
        %v2878 = vpop.permute.xlu0 %2877
        %2879 = vrot.lane.b32.xlu0 %v2741, 61
        %v2880 = vpop.permute.xlu0 %2879
        %2881 = vrot.lane.b32.xlu0 %v2742, 61
        %v2882 = vpop.permute.xlu0 %2881
        %2883 = vrot.lane.b32.xlu0 %v2743, 61
        %v2884 = vpop.permute.xlu0 %2883
        %2885 = vrot.lane.b32.xlu0 %v2842, 61
        %v2886 = vpop.permute.xlu0 %2885
        %2887 = vrot.lane.b32.xlu0 %v2843, 61
        %v2888 = vpop.permute.xlu0 %2887
        %2889 = vrot.lane.b32.xlu0 %v2576, 61
        %v2890 = vpop.permute.xlu0 %2889
        %2891 = vrot.lane.b32.xlu0 %v2577, 61
        %v2892 = vpop.permute.xlu0 %2891
        %2893 = vrot.lane.b32.xlu0 %v2578, 61
        %v2894 = vpop.permute.xlu0 %2893
        %2895 = vrot.lane.b32.xlu0 %v2823, 61
        %v2896 = vpop.permute.xlu0 %2895
        %v2897 = vsel %vm2207, %v2860, %v2862
        %v2898 = vsel %vm2207, %v2862, %v2864
        %v2899 = vsel %vm2207, %v2864, %v2866
        %v2900 = vsel %vm2207, %v2866, %v2868
        %v2901 = vsel %vm2207, %v2870, %v2872
        %v2902 = vsel %vm2207, %v2872, %v2874
        %v2903 = vsel %vm2207, %v2874, %v2876
        %v2904 = vsel %vm2207, %v2876, %v2878
        %v2905 = vsel %vm2207, %v2880, %v2882
        %v2906 = vsel %vm2207, %v2882, %v2884
        %v2907 = vsel %vm2207, %v2884, %v2886
        %v2908 = vsel %vm2207, %v2886, %v2888
        %v2909 = vsel %vm2207, %v2890, %v2892
        %v2910 = vsel %vm2207, %v2892, %v2894
        %v2911 = vsel %vm2207, %v2894, %v2896
        %v2912 = vsel %vm2207, %v2896, %v2206
        %2925 = vset.pattern.permute.xlu0 4
        %2926 = vperm.xlu0 %2925, %v515
        %v2927 = vpop.permute.xlu0 %2926
        %vm2929 = vcmask 613376
        %v2931 = vsel %vm2929, %v2429, 0
        %v2933 = vsel %vm2711, %v2909, 0
        %v2935 = vsel %vm2711, %v2910, 0
        %v2937 = vsel %vm2711, %v2911, 0
        %v2939 = vsel %vm2711, %v2912, 0
        %2941 = vmatprep.subr.mxu0 %v2718
        %2942 = vmatpush1.msra.mxu0 %v2717
        %2943 = vmatprep.subr.mxu0 %v2732
        %2944 = vmatpush1.msra.mxu0 %v2731
        %2945 = vmatprep.subr.mxu0 %v2742
        %2946 = vmatpush1.msra.mxu0 %v2741
        %2947 = vmatprep.subr.mxu0 %v2750
        %2948 = vmatpush1.msra.mxu0 %v2749
        %2949 = vmatprep.subr.mxu0 %v2762
        %2950 = vmatpush1.msra.mxu0 %v2761
        %2951 = vmatprep.subr.mxu0 %v2770
        %2952 = vmatpush1.msra.mxu0 %v2769
        %2953 = vmatprep.subr.mxu0 %v2898
        %2954 = vmatpush1.msra.mxu0 %v2897
        %2955 = vmatprep.subr.mxu0 %v2902
        %2956 = vmatpush1.msra.mxu0 %v2901
        %2957 = vmatprep.subr.mxu0 %v2906
        %2958 = vmatpush1.msra.mxu0 %v2905
        %2959 = vmatprep.subr.mxu0 %v2935
        %2960 = vmatpush1.msra.mxu0 %v2933
        %2961 = vmatprep.subr.mxu0 0.0
        %2962 = vmatpush1.msra.mxu0 0.0
        %2963 = vmatprep.subr.mxu0 0.0
        %2964 = vmatpush1.msra.mxu0 0.0
        %2965 = vmatprep.subr.mxu0 0.0
        %2966 = vmatpush1.msra.mxu0 0.0
        %2967 = vmatprep.subr.mxu0 0.0
        %2968 = vmatpush1.msra.mxu0 0.0
        %2969 = vmatprep.subr.mxu0 0.0
        %2970 = vmatpush1.msra.mxu0 0.0
        %2971 = vmatprep.subr.mxu0 0.0
        %2972 = vmatpush1.msra.mxu0 0.0
        %2973 = vmatprep.subr.mxu0 0.0
        %2974 = vmatpush1.msra.mxu0 0.0
        %2975 = vmatprep.subr.mxu0 0.0
        %2976 = vmatpush1.msra.mxu0 0.0
        %2977 = vmatprep.subr.mxu0 0.0
        %2978 = vmatpush1.msra.mxu0 0.0
        %2979 = vmatprep.subr.mxu0 0.0
        %2980 = vmatpush1.msra.mxu0 0.0
        %2981 = vmatprep.subr.mxu0 0.0
        %2982 = vmatpush1.msra.mxu0 0.0
        %2983 = vmatprep.subr.mxu0 0.0
        %2984 = vmatpush1.msra.mxu0 0.0
        %2985 = vmatprep.subr.mxu0 0.0
        %2986 = vmatpush1.msra.mxu0 0.0
        %2987 = vmatprep.subr.mxu0 0.0
        %2988 = vmatpush1.msra.mxu0 0.0
        %2989 = vmatprep.subr.mxu0 0.0
        %2990 = vmatpush1.msra.mxu0 0.0
        %2991 = vmatprep.subr.mxu0 0.0
        %2992 = vmatpush1.msra.mxu0 0.0
        %2993 = vmatprep.subr.mxu0 0.0
        %2994 = vmatpush1.msra.mxu0 0.0
        %2995 = vmatprep.subr.mxu0 0.0
        %2996 = vmatpush1.msra.mxu0 0.0
        %2997 = vmatprep.subr.mxu0 0.0
        %2998 = vmatpush1.msra.mxu0 0.0
        %2999 = vmatprep.subr.mxu0 0.0
        %3000 = vmatpush1.msra.mxu0 0.0
        %3001 = vmatprep.subr.mxu0 0.0
        %3002 = vmatpush1.msra.mxu0 0.0
        %3003 = vmatprep.subr.mxu0 0.0
        %3004 = vmatpush1.msra.mxu0 0.0
        %3005 = vmatprep.mubr.f32.mxu0 0.0
        %3006 = vmatmul.mubr.f32.gmra.mrb[0].mxu0 %v2931
        %v3007 = vpop.f32.mrb[0].mxu0
        %v3008 = vadd.f32 %v2927, %v3007
        %v3009 = vpop.f32.mrb[0].mxu0
        %v3010 = vadd.f32 %v2927, %v3009
        %3011 = vdwg.mxu0
        %3012 = vmatprep.subr.mxu0 %v2720
        %3013 = vmatpush1.msra.mxu0 %v2719
        %3014 = vmatprep.subr.mxu0 %v2734
        %3015 = vmatpush1.msra.mxu0 %v2733
        %3016 = vmatprep.subr.mxu0 %v2744
        %3017 = vmatpush1.msra.mxu0 %v2743
        %3018 = vmatprep.subr.mxu0 %v2752
        %3019 = vmatpush1.msra.mxu0 %v2751
        %3020 = vmatprep.subr.mxu0 %v2764
        %3021 = vmatpush1.msra.mxu0 %v2763
        %3022 = vmatprep.subr.mxu0 %v2772
        %3023 = vmatpush1.msra.mxu0 %v2771
        %3024 = vmatprep.subr.mxu0 %v2900
        %3025 = vmatpush1.msra.mxu0 %v2899
        %3026 = vmatprep.subr.mxu0 %v2904
        %3027 = vmatpush1.msra.mxu0 %v2903
        %3028 = vmatprep.subr.mxu0 %v2908
        %3029 = vmatpush1.msra.mxu0 %v2907
        %3030 = vmatprep.subr.mxu0 %v2939
        %3031 = vmatpush1.msra.mxu0 %v2937
        %3032 = vmatprep.subr.mxu0 0.0
        %3033 = vmatpush1.msra.mxu0 0.0
        %3034 = vmatprep.subr.mxu0 0.0
        %3035 = vmatpush1.msra.mxu0 0.0
        %3036 = vmatprep.subr.mxu0 0.0
        %3037 = vmatpush1.msra.mxu0 0.0
        %3038 = vmatprep.subr.mxu0 0.0
        %3039 = vmatpush1.msra.mxu0 0.0
        %3040 = vmatprep.subr.mxu0 0.0
        %3041 = vmatpush1.msra.mxu0 0.0
        %3042 = vmatprep.subr.mxu0 0.0
        %3043 = vmatpush1.msra.mxu0 0.0
        %3044 = vmatprep.subr.mxu0 0.0
        %3045 = vmatpush1.msra.mxu0 0.0
        %3046 = vmatprep.subr.mxu0 0.0
        %3047 = vmatpush1.msra.mxu0 0.0
        %3048 = vmatprep.subr.mxu0 0.0
        %3049 = vmatpush1.msra.mxu0 0.0
        %3050 = vmatprep.subr.mxu0 0.0
        %3051 = vmatpush1.msra.mxu0 0.0
        %3052 = vmatprep.subr.mxu0 0.0
        %3053 = vmatpush1.msra.mxu0 0.0
        %3054 = vmatprep.subr.mxu0 0.0
        %3055 = vmatpush1.msra.mxu0 0.0
        %3056 = vmatprep.subr.mxu0 0.0
        %3057 = vmatpush1.msra.mxu0 0.0
        %3058 = vmatprep.subr.mxu0 0.0
        %3059 = vmatpush1.msra.mxu0 0.0
        %3060 = vmatprep.subr.mxu0 0.0
        %3061 = vmatpush1.msra.mxu0 0.0
        %3062 = vmatprep.subr.mxu0 0.0
        %3063 = vmatpush1.msra.mxu0 0.0
        %3064 = vmatprep.subr.mxu0 0.0
        %3065 = vmatpush1.msra.mxu0 0.0
        %3066 = vmatprep.subr.mxu0 0.0
        %3067 = vmatpush1.msra.mxu0 0.0
        %3068 = vmatprep.subr.mxu0 0.0
        %3069 = vmatpush1.msra.mxu0 0.0
        %3070 = vmatprep.subr.mxu0 0.0
        %3071 = vmatpush1.msra.mxu0 0.0
        %3072 = vmatprep.subr.mxu0 0.0
        %3073 = vmatpush1.msra.mxu0 0.0
        %3074 = vmatprep.subr.mxu0 0.0
        %3075 = vmatpush1.msra.mxu0 0.0
        %3076 = vmatprep.mubr.f32.mxu0 0.0
        %3077 = vmatmul.mubr.f32.gmra.mrb[0].mxu0 %v2931
        %v3078 = vpop.f32.mrb[0].mxu0
        %v3079 = vadd.f32 %v2927, %v3078
        %v3080 = vpop.f32.mrb[0].mxu0
        %v3081 = vadd.f32 %v2927, %v3080
        %3082 = vdwg.mxu0
        %v3083 = vld [vmem:[%s9] sm:$0xff]
        %v3084 = vld [vmem:[%s10] sm:$0xff]
        %vm3085 = vcmask 64512
        %v3087 = vsel %vm3085, %v3084, 0
        %3089 = vmatprep.subr.mxu0 %v3010
        %3090 = vmatpush1.msra.mxu0 %v3008
        %3091 = vmatprep.subr.mxu0 0.0
        %3092 = vmatpush1.msra.mxu0 0.0
        %3093 = vmatprep.subr.mxu0 0.0
        %3094 = vmatpush1.msra.mxu0 0.0
        %3095 = vmatprep.subr.mxu0 0.0
        %3096 = vmatpush1.msra.mxu0 0.0
        %3097 = vmatprep.subr.mxu0 0.0
        %3098 = vmatpush1.msra.mxu0 0.0
        %3099 = vmatprep.subr.mxu0 0.0
        %3100 = vmatpush1.msra.mxu0 0.0
        %3101 = vmatprep.subr.mxu0 0.0
        %3102 = vmatpush1.msra.mxu0 0.0
        %3103 = vmatprep.subr.mxu0 0.0
        %3104 = vmatpush1.msra.mxu0 0.0
        %3105 = vmatprep.subr.mxu0 0.0
        %3106 = vmatpush1.msra.mxu0 0.0
        %3107 = vmatprep.subr.mxu0 0.0
        %3108 = vmatpush1.msra.mxu0 0.0
        %3109 = vmatprep.subr.mxu0 0.0
        %3110 = vmatpush1.msra.mxu0 0.0
        %3111 = vmatprep.subr.mxu0 0.0
        %3112 = vmatpush1.msra.mxu0 0.0
        %3113 = vmatprep.subr.mxu0 0.0
        %3114 = vmatpush1.msra.mxu0 0.0
        %3115 = vmatprep.subr.mxu0 0.0
        %3116 = vmatpush1.msra.mxu0 0.0
        %3117 = vmatprep.subr.mxu0 0.0
        %3118 = vmatpush1.msra.mxu0 0.0
        %3119 = vmatprep.subr.mxu0 0.0
        %3120 = vmatpush1.msra.mxu0 0.0
        %3121 = vmatprep.subr.mxu0 0.0
        %3122 = vmatpush1.msra.mxu0 0.0
        %3123 = vmatprep.subr.mxu0 0.0
        %3124 = vmatpush1.msra.mxu0 0.0
        %3125 = vmatprep.subr.mxu0 0.0
        %3126 = vmatpush1.msra.mxu0 0.0
        %3127 = vmatprep.subr.mxu0 0.0
        %3128 = vmatpush1.msra.mxu0 0.0
        %3129 = vmatprep.subr.mxu0 0.0
        %3130 = vmatpush1.msra.mxu0 0.0
        %3131 = vmatprep.subr.mxu0 0.0
        %3132 = vmatpush1.msra.mxu0 0.0
        %3133 = vmatprep.subr.mxu0 0.0
        %3134 = vmatpush1.msra.mxu0 0.0
        %3135 = vmatprep.subr.mxu0 0.0
        %3136 = vmatpush1.msra.mxu0 0.0
        %3137 = vmatprep.subr.mxu0 0.0
        %3138 = vmatpush1.msra.mxu0 0.0
        %3139 = vmatprep.subr.mxu0 0.0
        %3140 = vmatpush1.msra.mxu0 0.0
        %3141 = vmatprep.subr.mxu0 0.0
        %3142 = vmatpush1.msra.mxu0 0.0
        %3143 = vmatprep.subr.mxu0 0.0
        %3144 = vmatpush1.msra.mxu0 0.0
        %3145 = vmatprep.subr.mxu0 0.0
        %3146 = vmatpush1.msra.mxu0 0.0
        %3147 = vmatprep.subr.mxu0 0.0
        %3148 = vmatpush1.msra.mxu0 0.0
        %3149 = vmatprep.subr.mxu0 0.0
        %3150 = vmatpush1.msra.mxu0 0.0
        %3151 = vmatprep.subr.mxu0 0.0
        %3152 = vmatpush1.msra.mxu0 0.0
        %3153 = vmatprep.mubr.f32.mxu0 0.0
        %3154 = vmatmul.mubr.f32.gmra.mrb[0].mxu0 %v3087
        %v3155 = vpop.f32.mrb[0].mxu0
        %v3156 = vadd.f32 0.0, %v3155
        %v3157 = vpop.f32.mrb[0].mxu0
        %v3158 = vadd.f32 0.0, %v3157
        %3159 = vdwg.mxu0
        %3160 = vmatprep.subr.mxu0 %v3081
        %3161 = vmatpush1.msra.mxu0 %v3079
        %3162 = vmatprep.subr.mxu0 0.0
        %3163 = vmatpush1.msra.mxu0 0.0
        %3164 = vmatprep.subr.mxu0 0.0
        %3165 = vmatpush1.msra.mxu0 0.0
        %3166 = vmatprep.subr.mxu0 0.0
        %3167 = vmatpush1.msra.mxu0 0.0
        %3168 = vmatprep.subr.mxu0 0.0
        %3169 = vmatpush1.msra.mxu0 0.0
        %3170 = vmatprep.subr.mxu0 0.0
        %3171 = vmatpush1.msra.mxu0 0.0
        %3172 = vmatprep.subr.mxu0 0.0
        %3173 = vmatpush1.msra.mxu0 0.0
        %3174 = vmatprep.subr.mxu0 0.0
        %3175 = vmatpush1.msra.mxu0 0.0
        %3176 = vmatprep.subr.mxu0 0.0
        %3177 = vmatpush1.msra.mxu0 0.0
        %3178 = vmatprep.subr.mxu0 0.0
        %3179 = vmatpush1.msra.mxu0 0.0
        %3180 = vmatprep.subr.mxu0 0.0
        %3181 = vmatpush1.msra.mxu0 0.0
        %3182 = vmatprep.subr.mxu0 0.0
        %3183 = vmatpush1.msra.mxu0 0.0
        %3184 = vmatprep.subr.mxu0 0.0
        %3185 = vmatpush1.msra.mxu0 0.0
        %3186 = vmatprep.subr.mxu0 0.0
        %3187 = vmatpush1.msra.mxu0 0.0
        %3188 = vmatprep.subr.mxu0 0.0
        %3189 = vmatpush1.msra.mxu0 0.0
        %3190 = vmatprep.subr.mxu0 0.0
        %3191 = vmatpush1.msra.mxu0 0.0
        %3192 = vmatprep.subr.mxu0 0.0
        %3193 = vmatpush1.msra.mxu0 0.0
        %3194 = vmatprep.subr.mxu0 0.0
        %3195 = vmatpush1.msra.mxu0 0.0
        %3196 = vmatprep.subr.mxu0 0.0
        %3197 = vmatpush1.msra.mxu0 0.0
        %3198 = vmatprep.subr.mxu0 0.0
        %3199 = vmatpush1.msra.mxu0 0.0
        %3200 = vmatprep.subr.mxu0 0.0
        %3201 = vmatpush1.msra.mxu0 0.0
        %3202 = vmatprep.subr.mxu0 0.0
        %3203 = vmatpush1.msra.mxu0 0.0
        %3204 = vmatprep.subr.mxu0 0.0
        %3205 = vmatpush1.msra.mxu0 0.0
        %3206 = vmatprep.subr.mxu0 0.0
        %3207 = vmatpush1.msra.mxu0 0.0
        %3208 = vmatprep.subr.mxu0 0.0
        %3209 = vmatpush1.msra.mxu0 0.0
        %3210 = vmatprep.subr.mxu0 0.0
        %3211 = vmatpush1.msra.mxu0 0.0
        %3212 = vmatprep.subr.mxu0 0.0
        %3213 = vmatpush1.msra.mxu0 0.0
        %3214 = vmatprep.subr.mxu0 0.0
        %3215 = vmatpush1.msra.mxu0 0.0
        %3216 = vmatprep.subr.mxu0 0.0
        %3217 = vmatpush1.msra.mxu0 0.0
        %3218 = vmatprep.subr.mxu0 0.0
        %3219 = vmatpush1.msra.mxu0 0.0
        %3220 = vmatprep.subr.mxu0 0.0
        %3221 = vmatpush1.msra.mxu0 0.0
        %3222 = vmatprep.subr.mxu0 0.0
        %3223 = vmatpush1.msra.mxu0 0.0
        %3224 = vmatprep.mubr.f32.mxu0 0.0
        %3225 = vmatmul.mubr.f32.gmra.mrb[0].mxu0 %v3087
        %v3226 = vpop.f32.mrb[0].mxu0
        %v3227 = vadd.f32 0.0, %v3226
        %v3228 = vpop.f32.mrb[0].mxu0
        %v3229 = vadd.f32 0.0, %v3228
        %3230 = vdwg.mxu0
        %v3232 = vsel %vm3085, %v3083, 0
        %3234 = vmatprep.subr.mxu0 %v2356
        %3235 = vmatpush1.msra.mxu0 %v2354
        %3236 = vmatprep.subr.mxu0 0.0
        %3237 = vmatpush1.msra.mxu0 0.0
        %3238 = vmatprep.subr.mxu0 0.0
        %3239 = vmatpush1.msra.mxu0 0.0
        %3240 = vmatprep.subr.mxu0 0.0
        %3241 = vmatpush1.msra.mxu0 0.0
        %3242 = vmatprep.subr.mxu0 0.0
        %3243 = vmatpush1.msra.mxu0 0.0
        %3244 = vmatprep.subr.mxu0 0.0
        %3245 = vmatpush1.msra.mxu0 0.0
        %3246 = vmatprep.subr.mxu0 0.0
        %3247 = vmatpush1.msra.mxu0 0.0
        %3248 = vmatprep.subr.mxu0 0.0
        %3249 = vmatpush1.msra.mxu0 0.0
        %3250 = vmatprep.subr.mxu0 0.0
        %3251 = vmatpush1.msra.mxu0 0.0
        %3252 = vmatprep.subr.mxu0 0.0
        %3253 = vmatpush1.msra.mxu0 0.0
        %3254 = vmatprep.subr.mxu0 0.0
        %3255 = vmatpush1.msra.mxu0 0.0
        %3256 = vmatprep.subr.mxu0 0.0
        %3257 = vmatpush1.msra.mxu0 0.0
        %3258 = vmatprep.subr.mxu0 0.0
        %3259 = vmatpush1.msra.mxu0 0.0
        %3260 = vmatprep.subr.mxu0 0.0
        %3261 = vmatpush1.msra.mxu0 0.0
        %3262 = vmatprep.subr.mxu0 0.0
        %3263 = vmatpush1.msra.mxu0 0.0
        %3264 = vmatprep.subr.mxu0 0.0
        %3265 = vmatpush1.msra.mxu0 0.0
        %3266 = vmatprep.subr.mxu0 0.0
        %3267 = vmatpush1.msra.mxu0 0.0
        %3268 = vmatprep.subr.mxu0 0.0
        %3269 = vmatpush1.msra.mxu0 0.0
        %3270 = vmatprep.subr.mxu0 0.0
        %3271 = vmatpush1.msra.mxu0 0.0
        %3272 = vmatprep.subr.mxu0 0.0
        %3273 = vmatpush1.msra.mxu0 0.0
        %3274 = vmatprep.subr.mxu0 0.0
        %3275 = vmatpush1.msra.mxu0 0.0
        %3276 = vmatprep.subr.mxu0 0.0
        %3277 = vmatpush1.msra.mxu0 0.0
        %3278 = vmatprep.subr.mxu0 0.0
        %3279 = vmatpush1.msra.mxu0 0.0
        %3280 = vmatprep.subr.mxu0 0.0
        %3281 = vmatpush1.msra.mxu0 0.0
        %3282 = vmatprep.subr.mxu0 0.0
        %3283 = vmatpush1.msra.mxu0 0.0
        %3284 = vmatprep.subr.mxu0 0.0
        %3285 = vmatpush1.msra.mxu0 0.0
        %3286 = vmatprep.subr.mxu0 0.0
        %3287 = vmatpush1.msra.mxu0 0.0
        %3288 = vmatprep.subr.mxu0 0.0
        %3289 = vmatpush1.msra.mxu0 0.0
        %3290 = vmatprep.subr.mxu0 0.0
        %3291 = vmatpush1.msra.mxu0 0.0
        %3292 = vmatprep.subr.mxu0 0.0
        %3293 = vmatpush1.msra.mxu0 0.0
        %3294 = vmatprep.subr.mxu0 0.0
        %3295 = vmatpush1.msra.mxu0 0.0
        %3296 = vmatprep.subr.mxu0 0.0
        %3297 = vmatpush1.msra.mxu0 0.0
        %3298 = vmatprep.mubr.f32.mxu0 0.0
        %3299 = vmatmul.mubr.f32.gmra.mrb[0].mxu0 %v3232
        %v3300 = vpop.f32.mrb[0].mxu0
        %v3301 = vadd.f32 %v3156, %v3300
        %v3302 = vpop.f32.mrb[0].mxu0
        %v3303 = vadd.f32 %v3158, %v3302
        %3304 = vdwg.mxu0
        %3305 = vmatprep.subr.mxu0 %v2427
        %3306 = vmatpush1.msra.mxu0 %v2425
        %3307 = vmatprep.subr.mxu0 0.0
        %3308 = vmatpush1.msra.mxu0 0.0
        %3309 = vmatprep.subr.mxu0 0.0
        %3310 = vmatpush1.msra.mxu0 0.0
        %3311 = vmatprep.subr.mxu0 0.0
        %3312 = vmatpush1.msra.mxu0 0.0
        %3313 = vmatprep.subr.mxu0 0.0
        %3314 = vmatpush1.msra.mxu0 0.0
        %3315 = vmatprep.subr.mxu0 0.0
        %3316 = vmatpush1.msra.mxu0 0.0
        %3317 = vmatprep.subr.mxu0 0.0
        %3318 = vmatpush1.msra.mxu0 0.0
        %3319 = vmatprep.subr.mxu0 0.0
        %3320 = vmatpush1.msra.mxu0 0.0
        %3321 = vmatprep.subr.mxu0 0.0
        %3322 = vmatpush1.msra.mxu0 0.0
        %3323 = vmatprep.subr.mxu0 0.0
        %3324 = vmatpush1.msra.mxu0 0.0
        %3325 = vmatprep.subr.mxu0 0.0
        %3326 = vmatpush1.msra.mxu0 0.0
        %3327 = vmatprep.subr.mxu0 0.0
        %3328 = vmatpush1.msra.mxu0 0.0
        %3329 = vmatprep.subr.mxu0 0.0
        %3330 = vmatpush1.msra.mxu0 0.0
        %3331 = vmatprep.subr.mxu0 0.0
        %3332 = vmatpush1.msra.mxu0 0.0
        %3333 = vmatprep.subr.mxu0 0.0
        %3334 = vmatpush1.msra.mxu0 0.0
        %3335 = vmatprep.subr.mxu0 0.0
        %3336 = vmatpush1.msra.mxu0 0.0
        %3337 = vmatprep.subr.mxu0 0.0
        %3338 = vmatpush1.msra.mxu0 0.0
        %3339 = vmatprep.subr.mxu0 0.0
        %3340 = vmatpush1.msra.mxu0 0.0
        %3341 = vmatprep.subr.mxu0 0.0
        %3342 = vmatpush1.msra.mxu0 0.0
        %3343 = vmatprep.subr.mxu0 0.0
        %3344 = vmatpush1.msra.mxu0 0.0
        %3345 = vmatprep.subr.mxu0 0.0
        %3346 = vmatpush1.msra.mxu0 0.0
        %3347 = vmatprep.subr.mxu0 0.0
        %3348 = vmatpush1.msra.mxu0 0.0
        %3349 = vmatprep.subr.mxu0 0.0
        %3350 = vmatpush1.msra.mxu0 0.0
        %3351 = vmatprep.subr.mxu0 0.0
        %3352 = vmatpush1.msra.mxu0 0.0
        %3353 = vmatprep.subr.mxu0 0.0
        %3354 = vmatpush1.msra.mxu0 0.0
        %3355 = vmatprep.subr.mxu0 0.0
        %3356 = vmatpush1.msra.mxu0 0.0
        %3357 = vmatprep.subr.mxu0 0.0
        %3358 = vmatpush1.msra.mxu0 0.0
        %3359 = vmatprep.subr.mxu0 0.0
        %3360 = vmatpush1.msra.mxu0 0.0
        %3361 = vmatprep.subr.mxu0 0.0
        %3362 = vmatpush1.msra.mxu0 0.0
        %3363 = vmatprep.subr.mxu0 0.0
        %3364 = vmatpush1.msra.mxu0 0.0
        %3365 = vmatprep.subr.mxu0 0.0
        %3366 = vmatpush1.msra.mxu0 0.0
        %3367 = vmatprep.subr.mxu0 0.0
        %3368 = vmatpush1.msra.mxu0 0.0
        %3369 = vmatprep.mubr.f32.mxu0 0.0
        %3370 = vmatmul.mubr.f32.gmra.mrb[0].mxu0 %v3232
        %v3371 = vpop.f32.mrb[0].mxu0
        %v3372 = vadd.f32 %v3227, %v3371
        %v3373 = vpop.f32.mrb[0].mxu0
        %v3374 = vadd.f32 %v3229, %v3373
        %3375 = vdwg.mxu0
        %3376 = vset.pattern.permute.xlu0 5
        %3377 = vperm.xlu0 %3376, %v515
        %v3378 = vpop.permute.xlu0 %3377
        %v3380 = vadd.f32 %v3301, %v3378
        %v3381 = vadd.f32 %v3303, %v3378
        %v3382 = vadd.f32 %v3372, %v3378
        %v3383 = vadd.f32 %v3374, %v3378
        %v3384 = vmax.f32 %v3380, 0.0
        %v3385 = vmax.f32 %v3381, 0.0
        %v3386 = vmax.f32 %v3382, 0.0
        %v3387 = vmax.f32 %v3383, 0.0
        %v3388 = vld [vmem:[#allocation4] sm:$0xff]
        %v3389 = vld [vmem:[#allocation4 + $0x8] sm:$0xff]
        %v3390 = vld [vmem:[#allocation4 + $0x10] sm:$0xff]
        %v3391 = vld [vmem:[#allocation4 + $0x18] sm:$0xff]
        %v3392 = vld [vmem:[#allocation4 + $0x20] sm:$0xff]
        %v3393 = vld [vmem:[#allocation4 + $0x28] sm:$0xff]
        %v3394 = vld [vmem:[#allocation4 + $0x30] sm:$0xff]
        %v3395 = vld [vmem:[#allocation4 + $0x38] sm:$0xff]
        %v3396 = vld [vmem:[#allocation4 + $0x40] sm:$0xff]
        %v3397 = vld [vmem:[#allocation4 + $0x48] sm:$0xff]
        %v3398 = vld [vmem:[#allocation4 + $0x50] sm:$0xff]
        %v3399 = vld [vmem:[#allocation4 + $0x58] sm:$0xff]
        %v3400 = vld [vmem:[#allocation4 + $0x60] sm:$0xff]
        %v3401 = vld [vmem:[#allocation4 + $0x68] sm:$0xff]
        %v3402 = vld [vmem:[#allocation4 + $0x70] sm:$0xff]
        %v3403 = vld [vmem:[#allocation4 + $0x78] sm:$0xff]
        %v3404 = vld [vmem:[#allocation4 + $0x80] sm:$0xff]
        %v3405 = vld [vmem:[#allocation4 + $0x88] sm:$0xff]
        %v3406 = vld [vmem:[#allocation4 + $0x90] sm:$0xff]
        %v3407 = vld [vmem:[#allocation4 + $0x98] sm:$0xff]
        %v3408 = vld [vmem:[#allocation4 + $0xa0] sm:$0xff]
        %v3409 = vld [vmem:[#allocation4 + $0xa8] sm:$0xff]
        %v3410 = vld [vmem:[#allocation4 + $0xb0] sm:$0xff]
        %v3411 = vld [vmem:[#allocation4 + $0xb8] sm:$0xff]
        %v3412 = vld [vmem:[#allocation4 + $0xc0] sm:$0xff]
        %v3413 = vld [vmem:[#allocation4 + $0xc8] sm:$0xff]
        %v3414 = vld [vmem:[#allocation4 + $0xd0] sm:$0xff]
        %v3415 = vld [vmem:[#allocation4 + $0xd8] sm:$0xff]
        %v3416 = vld [vmem:[#allocation4 + $0xe0] sm:$0xff]
        %v3417 = vld [vmem:[#allocation4 + $0xe8] sm:$0xff]
        %v3418 = vld [vmem:[#allocation4 + $0xf0] sm:$0xff]
        %v3419 = vld [vmem:[#allocation4 + $0xf8] sm:$0xff]
        %v3420 = vld [vmem:[#allocation4 + $0x100] sm:$0xff]
        %v3421 = vld [vmem:[#allocation4 + $0x108] sm:$0xff]
        %v3422 = vld [vmem:[#allocation4 + $0x110] sm:$0xff]
        %v3423 = vld [vmem:[#allocation4 + $0x118] sm:$0xff]
        %v3424 = vld [vmem:[#allocation4 + $0x120] sm:$0xff]
        %v3425 = vld [vmem:[#allocation4 + $0x128] sm:$0xff]
        %v3426 = vld [vmem:[#allocation4 + $0x130] sm:$0xff]
        %v3427 = vld [vmem:[#allocation4 + $0x138] sm:$0xff]
        %v3428 = vld [vmem:[#allocation4 + $0x140] sm:$0xff]
        %v3429 = vld [vmem:[#allocation4 + $0x148] sm:$0xff]
        %v3430 = vld [vmem:[#allocation4 + $0x150] sm:$0xff]
        %v3431 = vld [vmem:[#allocation4 + $0x158] sm:$0xff]
        %v3432 = vld [vmem:[#allocation4 + $0x160] sm:$0xff]
        %v3433 = vld [vmem:[#allocation4 + $0x168] sm:$0xff]
        %v3434 = vld [vmem:[#allocation4 + $0x170] sm:$0xff]
        %v3435 = vld [vmem:[#allocation4 + $0x178] sm:$0xff]
        %v3436 = vld [vmem:[#allocation4 + $0x180] sm:$0xff]
        %v3437 = vld [vmem:[#allocation4 + $0x188] sm:$0xff]
        %v3438 = vld [vmem:[#allocation4 + $0x190] sm:$0xff]
        %v3439 = vld [vmem:[#allocation4 + $0x198] sm:$0xff]
        %v3440 = vld [vmem:[#allocation4 + $0x1a0] sm:$0xff]
        %v3441 = vld [vmem:[#allocation4 + $0x1a8] sm:$0xff]
        %v3442 = vld [vmem:[#allocation4 + $0x1b0] sm:$0xff]
        %v3443 = vld [vmem:[#allocation4 + $0x1b8] sm:$0xff]
        %v3444 = vld [vmem:[#allocation4 + $0x1c0] sm:$0xff]
        %v3445 = vld [vmem:[#allocation4 + $0x1c8] sm:$0xff]
        %v3446 = vld [vmem:[#allocation4 + $0x1d0] sm:$0xff]
        %v3447 = vld [vmem:[#allocation4 + $0x1d8] sm:$0xff]
        %v3448 = vld [vmem:[#allocation4 + $0x1e0] sm:$0xff]
        %v3449 = vld [vmem:[#allocation4 + $0x1e8] sm:$0xff]
        %v3450 = vld [vmem:[#allocation4 + $0x1f0] sm:$0xff]
        %v3451 = vld [vmem:[#allocation4 + $0x1f8] sm:$0xff]
        %v3452 = vld [vmem:[#allocation4 + $0x200] sm:$0xff]
        %v3453 = vld [vmem:[#allocation4 + $0x208] sm:$0xff]
        %v3454 = vld [vmem:[#allocation4 + $0x210] sm:$0xff]
        %v3455 = vld [vmem:[#allocation4 + $0x218] sm:$0xff]
        %v3456 = vld [vmem:[#allocation4 + $0x220] sm:$0xff]
        %v3457 = vld [vmem:[#allocation4 + $0x228] sm:$0xff]
        %v3458 = vld [vmem:[#allocation4 + $0x230] sm:$0xff]
        %v3459 = vld [vmem:[#allocation4 + $0x238] sm:$0xff]
        %v3460 = vld [vmem:[#allocation4 + $0x240] sm:$0xff]
        %v3461 = vld [vmem:[#allocation4 + $0x248] sm:$0xff]
        %v3462 = vld [vmem:[#allocation4 + $0x250] sm:$0xff]
        %v3463 = vld [vmem:[#allocation4 + $0x258] sm:$0xff]
        %v3464 = vld [vmem:[#allocation4 + $0x260] sm:$0xff]
        %v3465 = vld [vmem:[#allocation4 + $0x268] sm:$0xff]
        %v3466 = vld [vmem:[#allocation4 + $0x270] sm:$0xff]
        %v3467 = vld [vmem:[#allocation4 + $0x278] sm:$0xff]
        %v3468 = vld [vmem:[#allocation4 + $0x280] sm:$0xff]
        %v3469 = vld [vmem:[#allocation4 + $0x288] sm:$0xff]
        %v3470 = vld [vmem:[#allocation4 + $0x290] sm:$0xff]
        %v3471 = vld [vmem:[#allocation4 + $0x298] sm:$0xff]
        %v3472 = vld [vmem:[#allocation4 + $0x2a0] sm:$0xff]
        %v3473 = vld [vmem:[#allocation4 + $0x2a8] sm:$0xff]
        %v3474 = vld [vmem:[#allocation4 + $0x2b0] sm:$0xff]
        %v3475 = vld [vmem:[#allocation4 + $0x2b8] sm:$0xff]
        %v3476 = vld [vmem:[#allocation4 + $0x2c0] sm:$0xff]
        %v3477 = vld [vmem:[#allocation4 + $0x2c8] sm:$0xff]
        %v3478 = vld [vmem:[#allocation4 + $0x2d0] sm:$0xff]
        %v3479 = vld [vmem:[#allocation4 + $0x2d8] sm:$0xff]
        %v3480 = vld [vmem:[#allocation4 + $0x2e0] sm:$0xff]
        %v3481 = vld [vmem:[#allocation4 + $0x2e8] sm:$0xff]
        %v3482 = vld [vmem:[#allocation4 + $0x2f0] sm:$0xff]
        %v3483 = vld [vmem:[#allocation4 + $0x2f8] sm:$0xff]
        %v3484 = vld [vmem:[#allocation4 + $0x300] sm:$0xff]
        %v3485 = vld [vmem:[#allocation4 + $0x308] sm:$0xff]
        %v3486 = vld [vmem:[#allocation4 + $0x310] sm:$0xff]
        %v3487 = vld [vmem:[#allocation4 + $0x318] sm:$0xff]
        %v3488 = vld [vmem:[#allocation4 + $0x320] sm:$0xff]
        %v3489 = vld [vmem:[#allocation4 + $0x328] sm:$0xff]
        %v3490 = vld [vmem:[#allocation4 + $0x330] sm:$0xff]
        %v3491 = vld [vmem:[#allocation4 + $0x338] sm:$0xff]
        %v3492 = vld [vmem:[#allocation4 + $0x340] sm:$0xff]
        %v3493 = vld [vmem:[#allocation4 + $0x348] sm:$0xff]
        %v3494 = vld [vmem:[#allocation4 + $0x350] sm:$0xff]
        %v3495 = vld [vmem:[#allocation4 + $0x358] sm:$0xff]
        %v3496 = vld [vmem:[#allocation4 + $0x360] sm:$0xff]
        %v3497 = vld [vmem:[#allocation4 + $0x368] sm:$0xff]
        %v3498 = vld [vmem:[#allocation4 + $0x370] sm:$0xff]
        %v3499 = vld [vmem:[#allocation4 + $0x378] sm:$0xff]
        %v3500 = vld [vmem:[#allocation4 + $0x380] sm:$0xff]
        %v3501 = vld [vmem:[#allocation4 + $0x388] sm:$0xff]
        %v3502 = vld [vmem:[#allocation4 + $0x390] sm:$0xff]
        %v3503 = vld [vmem:[#allocation4 + $0x398] sm:$0xff]
        %v3504 = vld [vmem:[#allocation4 + $0x3a0] sm:$0xff]
        %v3505 = vld [vmem:[#allocation4 + $0x3a8] sm:$0xff]
        %v3506 = vld [vmem:[#allocation4 + $0x3b0] sm:$0xff]
        %v3507 = vld [vmem:[#allocation4 + $0x3b8] sm:$0xff]
        %v3508 = vld [vmem:[#allocation4 + $0x3c0] sm:$0xf]
        %v3509 = vld [vmem:[#allocation4 + $0x3c8] sm:$0xf]
        %v3511 = vsel %vm916, %v3387, 0
        %v3514 = vsel %vm1061, %v3508, 0
        %v3517 = vsel %vm1061, %v3509, 0
        %3519 = vmatprep.subr.mxu0 %v3389
        %3520 = vmatpush1.msra.mxu0 %v3388
        %3521 = vmatprep.subr.mxu0 %v3391
        %3522 = vmatpush1.msra.mxu0 %v3390
        %3523 = vmatprep.subr.mxu0 %v3393
        %3524 = vmatpush1.msra.mxu0 %v3392
        %3525 = vmatprep.subr.mxu0 %v3395
        %3526 = vmatpush1.msra.mxu0 %v3394
        %3527 = vmatprep.subr.mxu0 %v3397
        %3528 = vmatpush1.msra.mxu0 %v3396
        %3529 = vmatprep.subr.mxu0 %v3399
        %3530 = vmatpush1.msra.mxu0 %v3398
        %3531 = vmatprep.subr.mxu0 %v3401
        %3532 = vmatpush1.msra.mxu0 %v3400
        %3533 = vmatprep.subr.mxu0 %v3403
        %3534 = vmatpush1.msra.mxu0 %v3402
        %3535 = vmatprep.subr.mxu0 %v3405
        %3536 = vmatpush1.msra.mxu0 %v3404
        %3537 = vmatprep.subr.mxu0 %v3407
        %3538 = vmatpush1.msra.mxu0 %v3406
        %3539 = vmatprep.subr.mxu0 %v3409
        %3540 = vmatpush1.msra.mxu0 %v3408
        %3541 = vmatprep.subr.mxu0 %v3411
        %3542 = vmatpush1.msra.mxu0 %v3410
        %3543 = vmatprep.subr.mxu0 %v3413
        %3544 = vmatpush1.msra.mxu0 %v3412
        %3545 = vmatprep.subr.mxu0 %v3415
        %3546 = vmatpush1.msra.mxu0 %v3414
        %3547 = vmatprep.subr.mxu0 %v3417
        %3548 = vmatpush1.msra.mxu0 %v3416
        %3549 = vmatprep.subr.mxu0 %v3419
        %3550 = vmatpush1.msra.mxu0 %v3418
        %3551 = vmatprep.subr.mxu0 %v3421
        %3552 = vmatpush1.msra.mxu0 %v3420
        %3553 = vmatprep.subr.mxu0 %v3423
        %3554 = vmatpush1.msra.mxu0 %v3422
        %3555 = vmatprep.subr.mxu0 %v3425
        %3556 = vmatpush1.msra.mxu0 %v3424
        %3557 = vmatprep.subr.mxu0 %v3427
        %3558 = vmatpush1.msra.mxu0 %v3426
        %3559 = vmatprep.subr.mxu0 %v3429
        %3560 = vmatpush1.msra.mxu0 %v3428
        %3561 = vmatprep.subr.mxu0 %v3431
        %3562 = vmatpush1.msra.mxu0 %v3430
        %3563 = vmatprep.subr.mxu0 %v3433
        %3564 = vmatpush1.msra.mxu0 %v3432
        %3565 = vmatprep.subr.mxu0 %v3435
        %3566 = vmatpush1.msra.mxu0 %v3434
        %3567 = vmatprep.subr.mxu0 %v3437
        %3568 = vmatpush1.msra.mxu0 %v3436
        %3569 = vmatprep.subr.mxu0 %v3439
        %3570 = vmatpush1.msra.mxu0 %v3438
        %3571 = vmatprep.subr.mxu0 %v3441
        %3572 = vmatpush1.msra.mxu0 %v3440
        %3573 = vmatprep.subr.mxu0 %v3443
        %3574 = vmatpush1.msra.mxu0 %v3442
        %3575 = vmatprep.subr.mxu0 %v3445
        %3576 = vmatpush1.msra.mxu0 %v3444
        %3577 = vmatprep.subr.mxu0 %v3447
        %3578 = vmatpush1.msra.mxu0 %v3446
        %3579 = vmatprep.subr.mxu0 %v3449
        %3580 = vmatpush1.msra.mxu0 %v3448
        %3581 = vmatprep.subr.mxu0 %v3451
        %3582 = vmatpush1.msra.mxu0 %v3450
        %3583 = vmatprep.mubr.f32.mxu0 %v3385
        %3584 = vmatmul.mubr.f32.gmra.mrb[0].mxu0 %v3384
        %v3585 = vpop.f32.mrb[0].mxu0
        %v3586 = vadd.f32 0.0, %v3585
        %v3587 = vpop.f32.mrb[0].mxu0
        %v3588 = vadd.f32 0.0, %v3587
        %3589 = vdwg.mxu0
        %3590 = vmatprep.subr.mxu0 %v3453
        %3591 = vmatpush1.msra.mxu0 %v3452
        %3592 = vmatprep.subr.mxu0 %v3455
        %3593 = vmatpush1.msra.mxu0 %v3454
        %3594 = vmatprep.subr.mxu0 %v3457
        %3595 = vmatpush1.msra.mxu0 %v3456
        %3596 = vmatprep.subr.mxu0 %v3459
        %3597 = vmatpush1.msra.mxu0 %v3458
        %3598 = vmatprep.subr.mxu0 %v3461
        %3599 = vmatpush1.msra.mxu0 %v3460
        %3600 = vmatprep.subr.mxu0 %v3463
        %3601 = vmatpush1.msra.mxu0 %v3462
        %3602 = vmatprep.subr.mxu0 %v3465
        %3603 = vmatpush1.msra.mxu0 %v3464
        %3604 = vmatprep.subr.mxu0 %v3467
        %3605 = vmatpush1.msra.mxu0 %v3466
        %3606 = vmatprep.subr.mxu0 %v3469
        %3607 = vmatpush1.msra.mxu0 %v3468
        %3608 = vmatprep.subr.mxu0 %v3471
        %3609 = vmatpush1.msra.mxu0 %v3470
        %3610 = vmatprep.subr.mxu0 %v3473
        %3611 = vmatpush1.msra.mxu0 %v3472
        %3612 = vmatprep.subr.mxu0 %v3475
        %3613 = vmatpush1.msra.mxu0 %v3474
        %3614 = vmatprep.subr.mxu0 %v3477
        %3615 = vmatpush1.msra.mxu0 %v3476
        %3616 = vmatprep.subr.mxu0 %v3479
        %3617 = vmatpush1.msra.mxu0 %v3478
        %3618 = vmatprep.subr.mxu0 %v3481
        %3619 = vmatpush1.msra.mxu0 %v3480
        %3620 = vmatprep.subr.mxu0 %v3483
        %3621 = vmatpush1.msra.mxu0 %v3482
        %3622 = vmatprep.subr.mxu0 %v3485
        %3623 = vmatpush1.msra.mxu0 %v3484
        %3624 = vmatprep.subr.mxu0 %v3487
        %3625 = vmatpush1.msra.mxu0 %v3486
        %3626 = vmatprep.subr.mxu0 %v3489
        %3627 = vmatpush1.msra.mxu0 %v3488
        %3628 = vmatprep.subr.mxu0 %v3491
        %3629 = vmatpush1.msra.mxu0 %v3490
        %3630 = vmatprep.subr.mxu0 %v3493
        %3631 = vmatpush1.msra.mxu0 %v3492
        %3632 = vmatprep.subr.mxu0 %v3495
        %3633 = vmatpush1.msra.mxu0 %v3494
        %3634 = vmatprep.subr.mxu0 %v3497
        %3635 = vmatpush1.msra.mxu0 %v3496
        %3636 = vmatprep.subr.mxu0 %v3499
        %3637 = vmatpush1.msra.mxu0 %v3498
        %3638 = vmatprep.subr.mxu0 %v3501
        %3639 = vmatpush1.msra.mxu0 %v3500
        %3640 = vmatprep.subr.mxu0 %v3503
        %3641 = vmatpush1.msra.mxu0 %v3502
        %3642 = vmatprep.subr.mxu0 %v3505
        %3643 = vmatpush1.msra.mxu0 %v3504
        %3644 = vmatprep.subr.mxu0 %v3507
        %3645 = vmatpush1.msra.mxu0 %v3506
        %3646 = vmatprep.subr.mxu0 %v3517
        %3647 = vmatpush1.msra.mxu0 %v3514
        %3648 = vmatprep.subr.mxu0 0.0
        %3649 = vmatpush1.msra.mxu0 0.0
        %3650 = vmatprep.subr.mxu0 0.0
        %3651 = vmatpush1.msra.mxu0 0.0
        %3652 = vmatprep.subr.mxu0 0.0
        %3653 = vmatpush1.msra.mxu0 0.0
        %3654 = vmatprep.mubr.f32.mxu0 %v3511
        %3655 = vmatmul.mubr.f32.gmra.mrb[0].mxu0 %v3386
        %v3656 = vpop.f32.mrb[0].mxu0
        %v3657 = vadd.f32 %v3586, %v3656
        %v3658 = vpop.f32.mrb[0].mxu0
        %v3659 = vadd.f32 %v3588, %v3658
        %3660 = vdwg.mxu0
        %3661 = vst [vmem:[%s514] sm:$0xff] %v3657
        %3662 = vst [vmem:[%s514 + $0x8] sm:$0xff] %v3659
        %p3663 = scmp.lt.s32.totalorder %s27, 1
        %s3664 = scalar_select %p3663, %s27, 1
        %s3665 = smul.addr %s3664, 2
        %s3666 = smul.addr %s3665, 8
        %s3667 = scalar_lea.vmem %s14, %s3666
        // Predicated region
        $region85: #{up_block_forward.1} parent=75 // pred_check
          %p3668 = pneg %p349
        $region86: #{up_block_forward.1} parent=75 // pred_check_branch
          %3670 = sbr.rel (%p3668) target = $region88
        $region87: #{up_block_forward.1} parent=75 // pred_region
          _
        $region88: #{up_block_forward.1} parent=75 // pred_fallthru
          _
      $region76: #{up_block_forward.1} parent=5 // pred_fallthru
        _
      %p3671 = scmp.le.s32.totalorder 2, %s22
      // Predicated region
      $region89: #{up_block_forward.1} parent=5 // pred_check
        %p3672 = pneg %p3671
      $region90: #{up_block_forward.1} parent=5 // pred_check_branch
        %3674 = sbr.rel (%p3672) target = $region92
      $region91: #{up_block_forward.1} parent=5 // pred_region
        %s3675 = ssub.s32 %s22, 2
        // Predicated region
        $region93: #{up_block_forward.1} parent=91 // pred_check
          %p3676 = pneg %p355
        $region94: #{up_block_forward.1} parent=91 // pred_check_branch
          %3678 = sbr.rel (%p3676) target = $region96
        $region95: #{up_block_forward.1} parent=91 // pred_region
          %p3679 = scmp.lt.s32.totalorder %s28, 1
          %s3680 = scalar_select %p3679, %s28, 1
          %s3681 = smul.addr %s3680, 2
          %s3682 = smul.addr %s3681, 8
          %s3683 = scalar_lea.vmem %s14, %s3682
        $region96: #{up_block_forward.1} parent=91 // pred_fallthru
          _
      $region92: #{up_block_forward.1} parent=5 // pred_fallthru
        _
    $region6: #{up_block_forward.1} parent=1 // loop_footer
      %s26 = sadd.s32 1, %s22
    $region7: #{up_block_forward.1} parent=1 // loop_footer_branch
      %21 = sbr.rel target = $region3
    $region8: #{up_block_forward.1} parent=1 // loop_exit
      _
    %3684 = vsyncpa [#allocation3], 1
    %s3685 = scalar_lea.sflag [#allocation3], 1
    %3686 = vsyncpa %s3685, 1
    %3687 = vsyncpa [#allocation5], 1

</llo_original>
